<compile_context>
chip_gen: v5e
topology: v5e:2x2
jax: 0.10.0
libtpu: 0.0.40
codegen_flags: <defaults>
</compile_context>

<pallas_src>
import functools
import math

import jax
import jax.numpy as jnp
from jax import lax
from jax.experimental import pallas as pl
from jax.experimental.pallas import tpu as pltpu


# --------------------------- fused encoder kernel (embed + L layers) ---------------------------

def _encoder_kernel(tok_ref, table_ref, pe_ref,
                    wqkv_ref, bqkv_ref, wo_ref, bo_ref,
                    g1_ref, be1_ref, w1_ref, b1_ref, w2_ref, b2_ref,
                    g2_ref, be2_ref, o_ref, *, n_layers, attn_span, eps):
    s = o_ref.shape[1]
    e = o_ref.shape[2]
    vocab = table_ref.shape[0]
    span = attn_span

    # --- token embedding: one-hot matmul (fused into the mega-kernel) ---
    ids = tok_ref[0]                                              # [S, 1] int32
    lanes_v = lax.broadcasted_iota(jnp.int32, (s, vocab), 1)
    onehot = (lanes_v == ids).astype(jnp.float32)                 # [S, V]
    xb = jnp.dot(onehot, table_ref[...],
                 preferred_element_type=jnp.float32)              # [S, E]

    # --- banded-window helpers, hoisted out of the layer loop (JAX does not CSE iotas) ---
    row = lax.broadcasted_iota(jnp.int32, (s, s), 0)
    col = lax.broadcasted_iota(jnp.int32, (s, s), 1)
    idx = col - row + (span - 1)            # window slot id: in-band iff 0 <= idx < span
    window = (idx >= 0) & (idx < span)

    pe = pe_ref[...]                        # [span, E], shared by all layers (ref never bumps i)

    for l in range(n_layers):               # static unroll: weights indexed at static layer l
        # fused Q/K/V projection; 1/sqrt(d_k) already folded into wq/bq on the host
        qkv = jnp.dot(xb, wqkv_ref[l],
                      preferred_element_type=jnp.float32) + bqkv_ref[l]   # [S, 3E]
        q = qkv[:, :e]
        k = qkv[:, e:2 * e]
        vv = qkv[:, 2 * e:]

        # content scores q @ k^T : [S, S]   (already scaled by 1/sqrt(d_k) via q)
        cont = lax.dot_general(q, k, (((1,), (1,)), ((), ())),
                               preferred_element_type=jnp.float32)
        # relative-position scores q @ key_pe^T : [S, span]
        pos = lax.dot_general(q, pe, (((1,), (1,)), ((), ())),
                              preferred_element_type=jnp.float32)

        # Scatter [S, span] positional scores onto the banded [S, S] layout:
        # window slot j of query i corresponds to key column c = i + j + 1 - span
        # (exactly torch's _unskew/_skew index arithmetic, without the flatten tricks).
        pos_ss = jnp.zeros((s, s), jnp.float32)
        for j in range(span):
            band = (idx == j).astype(jnp.float32)
            pos_ss = pos_ss + band * pos[:, j:j + 1]              # static lane slice

        # == reference masked_fill(attn_cont_unskewed == 0, -1e9)
        valid = window & (cont != 0.0)
        attn = jnp.where(valid, cont + pos_ss, jnp.float32(-1e9))
        m = jnp.max(attn, axis=-1, keepdims=True)
        ex = jnp.exp(attn - m)
        w = ex * pl.reciprocal(jnp.sum(ex, axis=-1, keepdims=True), approx=True)

        ctx = jnp.dot(w, vv, preferred_element_type=jnp.float32)  # [S, E]
        att = jnp.dot(ctx, wo_ref[l],
                      preferred_element_type=jnp.float32) + bo_ref[l]

        # residual + LayerNorm1
        h = xb + att
        mu = jnp.mean(h, axis=-1, keepdims=True)
        var = jnp.mean((h - mu) ** 2, axis=-1, keepdims=True)
        hn = (h - mu) * lax.rsqrt(var + eps) * g1_ref[l] + be1_ref[l]

        # feed-forward (Linear -> ReLU -> Linear)
        f = jnp.dot(hn, w1_ref[l], preferred_element_type=jnp.float32) + b1_ref[l]
        f = jnp.maximum(f, jnp.float32(0.0))
        ffo = jnp.dot(f, w2_ref[l], preferred_element_type=jnp.float32) + b2_ref[l]

        # residual + LayerNorm2
        h2 = hn + ffo
        mu2 = jnp.mean(h2, axis=-1, keepdims=True)
        var2 = jnp.mean((h2 - mu2) ** 2, axis=-1, keepdims=True)
        xb = (h2 - mu2) * lax.rsqrt(var2 + eps) * g2_ref[l] + be2_ref[l]

    o_ref[0] = xb


# ----------------------------- parameters & forward -----------------------------

def init_params(key, vocab_size, hidden, n_layers, max_rel_pos):
    ff = hidden * 2
    keys = jax.random.split(key, 2 + n_layers)

    def linear(k, fan_in, fan_out):
        kw, kb = jax.random.split(k)
        bound = 1.0 / math.sqrt(fan_in)
        w = jax.random.uniform(kw, (fan_in, fan_out), jnp.float32, -bound, bound)
        b = jax.random.uniform(kb, (1, fan_out), jnp.float32, -bound, bound)
        return w, b

    params = {
        "tok_emb": jax.random.normal(keys[0], (vocab_size, hidden), jnp.float32),
        "rel_emb": jax.random.normal(keys[1], (max_rel_pos + 1, hidden), jnp.float32),
        "layers": [],
    }
    for li in range(n_layers):
        lk = jax.random.split(keys[2 + li], 6)
        wq, bq = linear(lk[0], hidden, hidden)
        wk, bk = linear(lk[1], hidden, hidden)
        wv, bv = linear(lk[2], hidden, hidden)
        wo, bo = linear(lk[3], hidden, hidden)
        w1, b1 = linear(lk[4], hidden, ff)
        w2, b2 = linear(lk[5], ff, hidden)
        params["layers"].append(dict(
            wq=wq, bq=bq, wk=wk, bk=bk, wv=wv, bv=bv, wo=wo, bo=bo,
            w1=w1, b1=b1, w2=w2, b2=b2,
            g1=jnp.ones((1, hidden), jnp.float32),
            be1=jnp.zeros((1, hidden), jnp.float32),
            g2=jnp.ones((1, hidden), jnp.float32),
            be2=jnp.zeros((1, hidden), jnp.float32)))
    return params


def pro_encoder_forward(tokens, params, attn_span_list, max_rel_pos):
    n, s = tokens.shape
    e = params["tok_emb"].shape[1]
    vocab = params["tok_emb"].shape[0]
    ff = params["layers"][0]["w1"].shape[1]
    n_layers = len(params["layers"])

    # Reference forward() never increments `i`: every layer uses attn_span_list[0].
    span = int(attn_span_list[0])
    assert span < s
    # TODO(synk): attn_span >= seq_len (full relative attention) branch not implemented.

    sqrt_dk = math.sqrt(e)      # num_heads == 1 -> d_k == hidden

    # get_pos_embed (host-side glue gather); same key_pe for every layer.
    rel_idx = jnp.clip(span - 1 - jnp.arange(span), 0, max_rel_pos)
    key_pe = params["rel_emb"][rel_idx]                               # [span, E]

    # Stack per-layer weights as [L, ...]; fuse QKV and fold 1/sqrt(d_k) into wq/bq.
    layers = params["layers"]
    wqkv = jnp.stack([jnp.concatenate([lp["wq"] / sqrt_dk, lp["wk"], lp["wv"]], axis=1)
                      for lp in layers])                              # [L, E, 3E]
    bqkv = jnp.stack([jnp.concatenate([lp["bq"] / sqrt_dk, lp["bk"], lp["bv"]], axis=1)
                      for lp in layers])                              # [L, 1, 3E]

    def stack(name):
        return jnp.stack([lp[name] for lp in layers])

    wo, bo = stack("wo"), stack("bo")
    g1, be1 = stack("g1"), stack("be1")
    w1, b1 = stack("w1"), stack("b1")
    w2, b2 = stack("w2"), stack("b2")
    g2, be2 = stack("g2"), stack("be2")

    tok3 = tokens.reshape(n, s, 1).astype(jnp.int32)

    def rep(shape):
        nd = len(shape)
        return pl.BlockSpec(shape, lambda b, _nd=nd: (0,) * _nd)       # resident across grid

    kernel = functools.partial(_encoder_kernel, n_layers=n_layers,
                               attn_span=span, eps=1e-5)
    return pl.pallas_call(
        kernel,
        out_shape=jax.ShapeDtypeStruct((n, s, e), jnp.float32),
        grid=(n,),
        in_specs=[
            pl.BlockSpec((1, s, 1), lambda b: (b, 0, 0)),              # tokens (one batch row)
            rep((vocab, e)),                                            # embedding table
            rep((span, e)),                                             # key_pe
            rep((n_layers, e, 3 * e)), rep((n_layers, 1, 3 * e)),       # Wqkv, bqkv
            rep((n_layers, e, e)), rep((n_layers, 1, e)),               # Wo, bo
            rep((n_layers, 1, e)), rep((n_layers, 1, e)),               # gamma1, beta1
            rep((n_layers, e, ff)), rep((n_layers, 1, ff)),             # W1, b1
            rep((n_layers, ff, e)), rep((n_layers, 1, e)),              # W2, b2
            rep((n_layers, 1, e)), rep((n_layers, 1, e)),               # gamma2, beta2
        ],
        out_specs=pl.BlockSpec((1, s, e), lambda b: (b, 0, 0)),
        compiler_params=pltpu.CompilerParams(
            dimension_semantics=("parallel",)),
    )(tok3, params["tok_emb"], key_pe,
      wqkv, bqkv, wo, bo, g1, be1, w1, b1, w2, b2, g2, be2)


# -------------------------------------- main --------------------------------------

if __name__ == "__main__":
    vocab_size = 23
    hidden = 32
    n_layers = 3
    attn_heads = 1            # key_pe matmul in the reference requires d_k == hidden
    max_rel_pos = 300
    attn_span_list = [8, 8, 8]
    N, S = 2, 16
    assert len(attn_span_list) == n_layers and hidden % attn_heads == 0

    root = jax.random.PRNGKey(0)
    pkey, dkey = jax.random.split(root)
    params = init_params(pkey, vocab_size, hidden, n_layers, max_rel_pos)
    tokens = jax.random.randint(dkey, (N, S), 0, vocab_size, dtype=jnp.int32)

    out = pro_encoder_forward(tokens, params, attn_span_list, max_rel_pos)
    out = jax.block_until_ready(out)

    assert out.shape == (N, S, hidden) and out.dtype == jnp.float32
    assert bool(jnp.all(jnp.isfinite(out)))
    print("KERNEL_OK")
</pallas_src>

<mosaic_0001>
module attributes {stable_mosaic.version = 11 : i64} {
  func.func @_encoder_kernel(%arg0: i32, %arg1: memref<1x16x1xi32, #tpu.memory_space<vmem>>, %arg2: memref<23x32xf32, #tpu.memory_space<vmem>>, %arg3: memref<8x32xf32, #tpu.memory_space<vmem>>, %arg4: memref<3x32x96xf32, #tpu.memory_space<vmem>>, %arg5: memref<3x1x96xf32, #tpu.memory_space<vmem>>, %arg6: memref<3x32x32xf32, #tpu.memory_space<vmem>>, %arg7: memref<3x1x32xf32, #tpu.memory_space<vmem>>, %arg8: memref<3x1x32xf32, #tpu.memory_space<vmem>>, %arg9: memref<3x1x32xf32, #tpu.memory_space<vmem>>, %arg10: memref<3x32x64xf32, #tpu.memory_space<vmem>>, %arg11: memref<3x1x64xf32, #tpu.memory_space<vmem>>, %arg12: memref<3x64x32xf32, #tpu.memory_space<vmem>>, %arg13: memref<3x1x32xf32, #tpu.memory_space<vmem>>, %arg14: memref<3x1x32xf32, #tpu.memory_space<vmem>>, %arg15: memref<3x1x32xf32, #tpu.memory_space<vmem>>, %arg16: memref<1x16x32xf32, #tpu.memory_space<vmem>>) attributes {dimension_semantics = [#tpu.dimension_semantics<parallel>], iteration_bounds = array<i64: 2>, scalar_prefetch = 0 : i64, scratch_operands = 0 : i64, tpu.core_type = #tpu.core_type<tc>, window_params = [{transform_indices = @transform_0, window_bounds = array<i64: 1, 16, 1>}, {pipeline_mode = #tpu.pipeline_mode<synchronous>, transform_indices = @transform_1, window_bounds = array<i64: 23, 32>}, {pipeline_mode = #tpu.pipeline_mode<synchronous>, transform_indices = @transform_2, window_bounds = array<i64: 8, 32>}, {pipeline_mode = #tpu.pipeline_mode<synchronous>, transform_indices = @transform_3, window_bounds = array<i64: 3, 32, 96>}, {pipeline_mode = #tpu.pipeline_mode<synchronous>, transform_indices = @transform_4, window_bounds = array<i64: 3, 1, 96>}, {pipeline_mode = #tpu.pipeline_mode<synchronous>, transform_indices = @transform_5, window_bounds = array<i64: 3, 32, 32>}, {pipeline_mode = #tpu.pipeline_mode<synchronous>, transform_indices = @transform_6, window_bounds = array<i64: 3, 1, 32>}, {pipeline_mode = #tpu.pipeline_mode<synchronous>, transform_indices = @transform_7, window_bounds = array<i64: 3, 1, 32>}, {pipeline_mode = #tpu.pipeline_mode<synchronous>, transform_indices = @transform_8, window_bounds = array<i64: 3, 1, 32>}, {pipeline_mode = #tpu.pipeline_mode<synchronous>, transform_indices = @transform_9, window_bounds = array<i64: 3, 32, 64>}, {pipeline_mode = #tpu.pipeline_mode<synchronous>, transform_indices = @transform_10, window_bounds = array<i64: 3, 1, 64>}, {pipeline_mode = #tpu.pipeline_mode<synchronous>, transform_indices = @transform_11, window_bounds = array<i64: 3, 64, 32>}, {pipeline_mode = #tpu.pipeline_mode<synchronous>, transform_indices = @transform_12, window_bounds = array<i64: 3, 1, 32>}, {pipeline_mode = #tpu.pipeline_mode<synchronous>, transform_indices = @transform_13, window_bounds = array<i64: 3, 1, 32>}, {pipeline_mode = #tpu.pipeline_mode<synchronous>, transform_indices = @transform_14, window_bounds = array<i64: 3, 1, 32>}, {transform_indices = @transform_15, window_bounds = array<i64: 1, 16, 32>}]} {
    %c0 = arith.constant 0 : index
    %c0_0 = arith.constant 0 : index
    %c0_1 = arith.constant 0 : index
    %0 = vector.load %arg1[%c0, %c0_0, %c0_1] : memref<1x16x1xi32, #tpu.memory_space<vmem>>, vector<1x16x1xi32>
    %1 = vector.shape_cast %0 : vector<1x16x1xi32> to vector<16x1xi32>
    %2 = tpu.iota {dimensions = array<i32: 1>} : vector<16x23xi32>
    %3 = vector.broadcast %1 : vector<16x1xi32> to vector<16x23xi32>
    %4 = arith.cmpi eq, %2, %3 : vector<16x23xi32>
    %5 = arith.extui %4 : vector<16x23xi1> to vector<16x23xi32>
    %6 = arith.sitofp %5 : vector<16x23xi32> to vector<16x23xf32>
    %c0_2 = arith.constant 0 : index
    %c0_3 = arith.constant 0 : index
    %7 = vector.load %arg2[%c0_2, %c0_3] : memref<23x32xf32, #tpu.memory_space<vmem>>, vector<23x32xf32>
    %cst = arith.constant dense<0.000000e+00> : vector<16x32xf32>
    %8 = tpu.matmul %6, %7, %cst {dimension_numbers = #tpu.dot_dimension_numbers<[1], [0], [0], [1], [0, 0, 1, 1], [], []>} : vector<16x23xf32>, vector<23x32xf32>, vector<16x32xf32> -> vector<16x32xf32>
    %9 = tpu.iota {dimensions = array<i32: 0>} : vector<16x16xi32>
    %10 = tpu.iota {dimensions = array<i32: 1>} : vector<16x16xi32>
    %11 = arith.subi %10, %9 : vector<16x16xi32>
    %c7_i32 = arith.constant 7 : i32
    %12 = vector.broadcast %c7_i32 : i32 to vector<16x16xi32>
    %13 = arith.addi %11, %12 : vector<16x16xi32>
    %c0_i32 = arith.constant 0 : i32
    %14 = vector.broadcast %c0_i32 : i32 to vector<16x16xi32>
    %15 = arith.cmpi sge, %13, %14 : vector<16x16xi32>
    %c8_i32 = arith.constant 8 : i32
    %16 = vector.broadcast %c8_i32 : i32 to vector<16x16xi32>
    %17 = arith.cmpi slt, %13, %16 : vector<16x16xi32>
    %18 = arith.andi %15, %17 : vector<16x16xi1>
    %c0_4 = arith.constant 0 : index
    %c0_5 = arith.constant 0 : index
    %19 = vector.load %arg3[%c0_4, %c0_5] : memref<8x32xf32, #tpu.memory_space<vmem>>, vector<8x32xf32>
    %c0_6 = arith.constant 0 : index
    %c0_7 = arith.constant 0 : index
    %c0_8 = arith.constant 0 : index
    %20 = vector.load %arg4[%c0_6, %c0_7, %c0_8] : memref<3x32x96xf32, #tpu.memory_space<vmem>>, vector<1x32x96xf32>
    %21 = vector.shape_cast %20 : vector<1x32x96xf32> to vector<32x96xf32>
    %cst_9 = arith.constant dense<0.000000e+00> : vector<16x96xf32>
    %22 = tpu.matmul %8, %21, %cst_9 {dimension_numbers = #tpu.dot_dimension_numbers<[1], [0], [0], [1], [0, 0, 1, 1], [], []>} : vector<16x32xf32>, vector<32x96xf32>, vector<16x96xf32> -> vector<16x96xf32>
    %c0_10 = arith.constant 0 : index
    %c0_11 = arith.constant 0 : index
    %c0_12 = arith.constant 0 : index
    %23 = vector.load %arg5[%c0_10, %c0_11, %c0_12] : memref<3x1x96xf32, #tpu.memory_space<vmem>>, vector<1x1x96xf32>
    %24 = vector.shape_cast %23 : vector<1x1x96xf32> to vector<1x96xf32>
    %25 = vector.broadcast %24 : vector<1x96xf32> to vector<16x96xf32>
    %26 = arith.addf %22, %25 : vector<16x96xf32>
    %27 = vector.extract_strided_slice %26 {offsets = [0, 0], sizes = [16, 32], strides = [1, 1]} : vector<16x96xf32> to vector<16x32xf32>
    %28 = vector.extract_strided_slice %26 {offsets = [0, 32], sizes = [16, 32], strides = [1, 1]} : vector<16x96xf32> to vector<16x32xf32>
    %29 = vector.extract_strided_slice %26 {offsets = [0, 64], sizes = [16, 32], strides = [1, 1]} : vector<16x96xf32> to vector<16x32xf32>
    %cst_13 = arith.constant dense<0.000000e+00> : vector<16x16xf32>
    %30 = tpu.matmul %27, %28, %cst_13 {dimension_numbers = #tpu.dot_dimension_numbers<[1], [1], [0], [0], [0, 0, 1, 0], [], []>} : vector<16x32xf32>, vector<16x32xf32>, vector<16x16xf32> -> vector<16x16xf32>
    %cst_14 = arith.constant dense<0.000000e+00> : vector<16x8xf32>
    %31 = tpu.matmul %27, %19, %cst_14 {dimension_numbers = #tpu.dot_dimension_numbers<[1], [1], [0], [0], [0, 0, 1, 0], [], []>} : vector<16x32xf32>, vector<8x32xf32>, vector<16x8xf32> -> vector<16x8xf32>
    %cst_15 = arith.constant 0.000000e+00 : f32
    %32 = vector.broadcast %cst_15 : f32 to vector<16x16xf32>
    %c0_i32_16 = arith.constant 0 : i32
    %33 = vector.broadcast %c0_i32_16 : i32 to vector<16x16xi32>
    %34 = arith.cmpi eq, %13, %33 : vector<16x16xi32>
    %35 = arith.extui %34 : vector<16x16xi1> to vector<16x16xi32>
    %36 = arith.sitofp %35 : vector<16x16xi32> to vector<16x16xf32>
    %37 = vector.extract_strided_slice %31 {offsets = [0, 0], sizes = [16, 1], strides = [1, 1]} : vector<16x8xf32> to vector<16x1xf32>
    %38 = vector.broadcast %37 : vector<16x1xf32> to vector<16x16xf32>
    %39 = arith.mulf %36, %38 : vector<16x16xf32>
    %40 = arith.addf %32, %39 : vector<16x16xf32>
    %c1_i32 = arith.constant 1 : i32
    %41 = vector.broadcast %c1_i32 : i32 to vector<16x16xi32>
    %42 = arith.cmpi eq, %13, %41 : vector<16x16xi32>
    %43 = arith.extui %42 : vector<16x16xi1> to vector<16x16xi32>
    %44 = arith.sitofp %43 : vector<16x16xi32> to vector<16x16xf32>
    %45 = vector.extract_strided_slice %31 {offsets = [0, 1], sizes = [16, 1], strides = [1, 1]} : vector<16x8xf32> to vector<16x1xf32>
    %46 = vector.broadcast %45 : vector<16x1xf32> to vector<16x16xf32>
    %47 = arith.mulf %44, %46 : vector<16x16xf32>
    %48 = arith.addf %40, %47 : vector<16x16xf32>
    %c2_i32 = arith.constant 2 : i32
    %49 = vector.broadcast %c2_i32 : i32 to vector<16x16xi32>
    %50 = arith.cmpi eq, %13, %49 : vector<16x16xi32>
    %51 = arith.extui %50 : vector<16x16xi1> to vector<16x16xi32>
    %52 = arith.sitofp %51 : vector<16x16xi32> to vector<16x16xf32>
    %53 = vector.extract_strided_slice %31 {offsets = [0, 2], sizes = [16, 1], strides = [1, 1]} : vector<16x8xf32> to vector<16x1xf32>
    %54 = vector.broadcast %53 : vector<16x1xf32> to vector<16x16xf32>
    %55 = arith.mulf %52, %54 : vector<16x16xf32>
    %56 = arith.addf %48, %55 : vector<16x16xf32>
    %c3_i32 = arith.constant 3 : i32
    %57 = vector.broadcast %c3_i32 : i32 to vector<16x16xi32>
    %58 = arith.cmpi eq, %13, %57 : vector<16x16xi32>
    %59 = arith.extui %58 : vector<16x16xi1> to vector<16x16xi32>
    %60 = arith.sitofp %59 : vector<16x16xi32> to vector<16x16xf32>
    %61 = vector.extract_strided_slice %31 {offsets = [0, 3], sizes = [16, 1], strides = [1, 1]} : vector<16x8xf32> to vector<16x1xf32>
    %62 = vector.broadcast %61 : vector<16x1xf32> to vector<16x16xf32>
    %63 = arith.mulf %60, %62 : vector<16x16xf32>
    %64 = arith.addf %56, %63 : vector<16x16xf32>
    %c4_i32 = arith.constant 4 : i32
    %65 = vector.broadcast %c4_i32 : i32 to vector<16x16xi32>
    %66 = arith.cmpi eq, %13, %65 : vector<16x16xi32>
    %67 = arith.extui %66 : vector<16x16xi1> to vector<16x16xi32>
    %68 = arith.sitofp %67 : vector<16x16xi32> to vector<16x16xf32>
    %69 = vector.extract_strided_slice %31 {offsets = [0, 4], sizes = [16, 1], strides = [1, 1]} : vector<16x8xf32> to vector<16x1xf32>
    %70 = vector.broadcast %69 : vector<16x1xf32> to vector<16x16xf32>
    %71 = arith.mulf %68, %70 : vector<16x16xf32>
    %72 = arith.addf %64, %71 : vector<16x16xf32>
    %c5_i32 = arith.constant 5 : i32
    %73 = vector.broadcast %c5_i32 : i32 to vector<16x16xi32>
    %74 = arith.cmpi eq, %13, %73 : vector<16x16xi32>
    %75 = arith.extui %74 : vector<16x16xi1> to vector<16x16xi32>
    %76 = arith.sitofp %75 : vector<16x16xi32> to vector<16x16xf32>
    %77 = vector.extract_strided_slice %31 {offsets = [0, 5], sizes = [16, 1], strides = [1, 1]} : vector<16x8xf32> to vector<16x1xf32>
    %78 = vector.broadcast %77 : vector<16x1xf32> to vector<16x16xf32>
    %79 = arith.mulf %76, %78 : vector<16x16xf32>
    %80 = arith.addf %72, %79 : vector<16x16xf32>
    %c6_i32 = arith.constant 6 : i32
    %81 = vector.broadcast %c6_i32 : i32 to vector<16x16xi32>
    %82 = arith.cmpi eq, %13, %81 : vector<16x16xi32>
    %83 = arith.extui %82 : vector<16x16xi1> to vector<16x16xi32>
    %84 = arith.sitofp %83 : vector<16x16xi32> to vector<16x16xf32>
    %85 = vector.extract_strided_slice %31 {offsets = [0, 6], sizes = [16, 1], strides = [1, 1]} : vector<16x8xf32> to vector<16x1xf32>
    %86 = vector.broadcast %85 : vector<16x1xf32> to vector<16x16xf32>
    %87 = arith.mulf %84, %86 : vector<16x16xf32>
    %88 = arith.addf %80, %87 : vector<16x16xf32>
    %c7_i32_17 = arith.constant 7 : i32
    %89 = vector.broadcast %c7_i32_17 : i32 to vector<16x16xi32>
    %90 = arith.cmpi eq, %13, %89 : vector<16x16xi32>
    %91 = arith.extui %90 : vector<16x16xi1> to vector<16x16xi32>
    %92 = arith.sitofp %91 : vector<16x16xi32> to vector<16x16xf32>
    %93 = vector.extract_strided_slice %31 {offsets = [0, 7], sizes = [16, 1], strides = [1, 1]} : vector<16x8xf32> to vector<16x1xf32>
    %94 = vector.broadcast %93 : vector<16x1xf32> to vector<16x16xf32>
    %95 = arith.mulf %92, %94 : vector<16x16xf32>
    %96 = arith.addf %88, %95 : vector<16x16xf32>
    %cst_18 = arith.constant 0.000000e+00 : f32
    %97 = vector.broadcast %cst_18 : f32 to vector<16x16xf32>
    %98 = arith.cmpf one, %30, %97 : vector<16x16xf32>
    %99 = arith.andi %18, %98 : vector<16x16xi1>
    %100 = arith.addf %30, %96 : vector<16x16xf32>
    %cst_19 = arith.constant -1.000000e+09 : f32
    %101 = vector.broadcast %cst_19 : f32 to vector<16x16xf32>
    %102 = arith.select %99, %100, %101 : vector<16x16xi1>, vector<16x16xf32>
    %cst_20 = arith.constant dense<0xFF800000> : vector<16xf32>
    %103 = vector.multi_reduction <maximumf>, %102, %cst_20 [1] : vector<16x16xf32> to vector<16xf32>
    %104 = vector.shape_cast %103 : vector<16xf32> to vector<16x1xf32>
    %105 = vector.broadcast %104 : vector<16x1xf32> to vector<16x16xf32>
    %106 = arith.subf %102, %105 : vector<16x16xf32>
    %107 = math.exp %106 : vector<16x16xf32>
    %cst_21 = arith.constant dense<0.000000e+00> : vector<16xf32>
    %108 = vector.multi_reduction <add>, %107, %cst_21 [1] : vector<16x16xf32> to vector<16xf32>
    %109 = vector.shape_cast %108 : vector<16xf32> to vector<16x1xf32>
    %110 = tpu.reciprocal %109 {approx = true} : vector<16x1xf32> -> vector<16x1xf32>
    %111 = vector.broadcast %110 : vector<16x1xf32> to vector<16x16xf32>
    %112 = arith.mulf %107, %111 : vector<16x16xf32>
    %cst_22 = arith.constant dense<0.000000e+00> : vector<16x32xf32>
    %113 = tpu.matmul %112, %29, %cst_22 {dimension_numbers = #tpu.dot_dimension_numbers<[1], [0], [0], [1], [0, 0, 1, 1], [], []>} : vector<16x16xf32>, vector<16x32xf32>, vector<16x32xf32> -> vector<16x32xf32>
    %c0_23 = arith.constant 0 : index
    %c0_24 = arith.constant 0 : index
    %c0_25 = arith.constant 0 : index
    %114 = vector.load %arg6[%c0_23, %c0_24, %c0_25] : memref<3x32x32xf32, #tpu.memory_space<vmem>>, vector<1x32x32xf32>
    %115 = vector.shape_cast %114 : vector<1x32x32xf32> to vector<32x32xf32>
    %cst_26 = arith.constant dense<0.000000e+00> : vector<16x32xf32>
    %116 = tpu.matmul %113, %115, %cst_26 {dimension_numbers = #tpu.dot_dimension_numbers<[1], [0], [0], [1], [0, 0, 1, 1], [], []>} : vector<16x32xf32>, vector<32x32xf32>, vector<16x32xf32> -> vector<16x32xf32>
    %c0_27 = arith.constant 0 : index
    %c0_28 = arith.constant 0 : index
    %c0_29 = arith.constant 0 : index
    %117 = vector.load %arg7[%c0_27, %c0_28, %c0_29] : memref<3x1x32xf32, #tpu.memory_space<vmem>>, vector<1x1x32xf32>
    %118 = vector.shape_cast %117 : vector<1x1x32xf32> to vector<1x32xf32>
    %119 = vector.broadcast %118 : vector<1x32xf32> to vector<16x32xf32>
    %120 = arith.addf %116, %119 : vector<16x32xf32>
    %121 = arith.addf %8, %120 : vector<16x32xf32>
    %cst_30 = arith.constant dense<0.000000e+00> : vector<16xf32>
    %122 = vector.multi_reduction <add>, %121, %cst_30 [1] : vector<16x32xf32> to vector<16xf32>
    %123 = vector.shape_cast %122 : vector<16xf32> to vector<16x1xf32>
    %cst_31 = arith.constant 3.200000e+01 : f32
    %124 = vector.broadcast %cst_31 : f32 to vector<16x1xf32>
    %125 = arith.divf %123, %124 : vector<16x1xf32>
    %126 = vector.broadcast %125 : vector<16x1xf32> to vector<16x32xf32>
    %127 = arith.subf %121, %126 : vector<16x32xf32>
    %128 = arith.mulf %127, %127 : vector<16x32xf32>
    %cst_32 = arith.constant dense<0.000000e+00> : vector<16xf32>
    %129 = vector.multi_reduction <add>, %128, %cst_32 [1] : vector<16x32xf32> to vector<16xf32>
    %130 = vector.shape_cast %129 : vector<16xf32> to vector<16x1xf32>
    %cst_33 = arith.constant 3.200000e+01 : f32
    %131 = vector.broadcast %cst_33 : f32 to vector<16x1xf32>
    %132 = arith.divf %130, %131 : vector<16x1xf32>
    %133 = vector.broadcast %125 : vector<16x1xf32> to vector<16x32xf32>
    %134 = arith.subf %121, %133 : vector<16x32xf32>
    %cst_34 = arith.constant 9.99999974E-6 : f32
    %135 = vector.broadcast %cst_34 : f32 to vector<16x1xf32>
    %136 = arith.addf %132, %135 : vector<16x1xf32>
    %137 = math.rsqrt %136 : vector<16x1xf32>
    %138 = vector.broadcast %137 : vector<16x1xf32> to vector<16x32xf32>
    %139 = arith.mulf %134, %138 : vector<16x32xf32>
    %c0_35 = arith.constant 0 : index
    %c0_36 = arith.constant 0 : index
    %c0_37 = arith.constant 0 : index
    %140 = vector.load %arg8[%c0_35, %c0_36, %c0_37] : memref<3x1x32xf32, #tpu.memory_space<vmem>>, vector<1x1x32xf32>
    %141 = vector.shape_cast %140 : vector<1x1x32xf32> to vector<1x32xf32>
    %142 = vector.broadcast %141 : vector<1x32xf32> to vector<16x32xf32>
    %143 = arith.mulf %139, %142 : vector<16x32xf32>
    %c0_38 = arith.constant 0 : index
    %c0_39 = arith.constant 0 : index
    %c0_40 = arith.constant 0 : index
    %144 = vector.load %arg9[%c0_38, %c0_39, %c0_40] : memref<3x1x32xf32, #tpu.memory_space<vmem>>, vector<1x1x32xf32>
    %145 = vector.shape_cast %144 : vector<1x1x32xf32> to vector<1x32xf32>
    %146 = vector.broadcast %145 : vector<1x32xf32> to vector<16x32xf32>
    %147 = arith.addf %143, %146 : vector<16x32xf32>
    %c0_41 = arith.constant 0 : index
    %c0_42 = arith.constant 0 : index
    %c0_43 = arith.constant 0 : index
    %148 = vector.load %arg10[%c0_41, %c0_42, %c0_43] : memref<3x32x64xf32, #tpu.memory_space<vmem>>, vector<1x32x64xf32>
    %149 = vector.shape_cast %148 : vector<1x32x64xf32> to vector<32x64xf32>
    %cst_44 = arith.constant dense<0.000000e+00> : vector<16x64xf32>
    %150 = tpu.matmul %147, %149, %cst_44 {dimension_numbers = #tpu.dot_dimension_numbers<[1], [0], [0], [1], [0, 0, 1, 1], [], []>} : vector<16x32xf32>, vector<32x64xf32>, vector<16x64xf32> -> vector<16x64xf32>
    %c0_45 = arith.constant 0 : index
    %c0_46 = arith.constant 0 : index
    %c0_47 = arith.constant 0 : index
    %151 = vector.load %arg11[%c0_45, %c0_46, %c0_47] : memref<3x1x64xf32, #tpu.memory_space<vmem>>, vector<1x1x64xf32>
    %152 = vector.shape_cast %151 : vector<1x1x64xf32> to vector<1x64xf32>
    %153 = vector.broadcast %152 : vector<1x64xf32> to vector<16x64xf32>
    %154 = arith.addf %150, %153 : vector<16x64xf32>
    %cst_48 = arith.constant 0.000000e+00 : f32
    %155 = vector.broadcast %cst_48 : f32 to vector<16x64xf32>
    %156 = arith.maximumf %154, %155 : vector<16x64xf32>
    %c0_49 = arith.constant 0 : index
    %c0_50 = arith.constant 0 : index
    %c0_51 = arith.constant 0 : index
    %157 = vector.load %arg12[%c0_49, %c0_50, %c0_51] : memref<3x64x32xf32, #tpu.memory_space<vmem>>, vector<1x64x32xf32>
    %158 = vector.shape_cast %157 : vector<1x64x32xf32> to vector<64x32xf32>
    %cst_52 = arith.constant dense<0.000000e+00> : vector<16x32xf32>
    %159 = tpu.matmul %156, %158, %cst_52 {dimension_numbers = #tpu.dot_dimension_numbers<[1], [0], [0], [1], [0, 0, 1, 1], [], []>} : vector<16x64xf32>, vector<64x32xf32>, vector<16x32xf32> -> vector<16x32xf32>
    %c0_53 = arith.constant 0 : index
    %c0_54 = arith.constant 0 : index
    %c0_55 = arith.constant 0 : index
    %160 = vector.load %arg13[%c0_53, %c0_54, %c0_55] : memref<3x1x32xf32, #tpu.memory_space<vmem>>, vector<1x1x32xf32>
    %161 = vector.shape_cast %160 : vector<1x1x32xf32> to vector<1x32xf32>
    %162 = vector.broadcast %161 : vector<1x32xf32> to vector<16x32xf32>
    %163 = arith.addf %159, %162 : vector<16x32xf32>
    %164 = arith.addf %147, %163 : vector<16x32xf32>
    %cst_56 = arith.constant dense<0.000000e+00> : vector<16xf32>
    %165 = vector.multi_reduction <add>, %164, %cst_56 [1] : vector<16x32xf32> to vector<16xf32>
    %166 = vector.shape_cast %165 : vector<16xf32> to vector<16x1xf32>
    %cst_57 = arith.constant 3.200000e+01 : f32
    %167 = vector.broadcast %cst_57 : f32 to vector<16x1xf32>
    %168 = arith.divf %166, %167 : vector<16x1xf32>
    %169 = vector.broadcast %168 : vector<16x1xf32> to vector<16x32xf32>
    %170 = arith.subf %164, %169 : vector<16x32xf32>
    %171 = arith.mulf %170, %170 : vector<16x32xf32>
    %cst_58 = arith.constant dense<0.000000e+00> : vector<16xf32>
    %172 = vector.multi_reduction <add>, %171, %cst_58 [1] : vector<16x32xf32> to vector<16xf32>
    %173 = vector.shape_cast %172 : vector<16xf32> to vector<16x1xf32>
    %cst_59 = arith.constant 3.200000e+01 : f32
    %174 = vector.broadcast %cst_59 : f32 to vector<16x1xf32>
    %175 = arith.divf %173, %174 : vector<16x1xf32>
    %176 = vector.broadcast %168 : vector<16x1xf32> to vector<16x32xf32>
    %177 = arith.subf %164, %176 : vector<16x32xf32>
    %cst_60 = arith.constant 9.99999974E-6 : f32
    %178 = vector.broadcast %cst_60 : f32 to vector<16x1xf32>
    %179 = arith.addf %175, %178 : vector<16x1xf32>
    %180 = math.rsqrt %179 : vector<16x1xf32>
    %181 = vector.broadcast %180 : vector<16x1xf32> to vector<16x32xf32>
    %182 = arith.mulf %177, %181 : vector<16x32xf32>
    %c0_61 = arith.constant 0 : index
    %c0_62 = arith.constant 0 : index
    %c0_63 = arith.constant 0 : index
    %183 = vector.load %arg14[%c0_61, %c0_62, %c0_63] : memref<3x1x32xf32, #tpu.memory_space<vmem>>, vector<1x1x32xf32>
    %184 = vector.shape_cast %183 : vector<1x1x32xf32> to vector<1x32xf32>
    %185 = vector.broadcast %184 : vector<1x32xf32> to vector<16x32xf32>
    %186 = arith.mulf %182, %185 : vector<16x32xf32>
    %c0_64 = arith.constant 0 : index
    %c0_65 = arith.constant 0 : index
    %c0_66 = arith.constant 0 : index
    %187 = vector.load %arg15[%c0_64, %c0_65, %c0_66] : memref<3x1x32xf32, #tpu.memory_space<vmem>>, vector<1x1x32xf32>
    %188 = vector.shape_cast %187 : vector<1x1x32xf32> to vector<1x32xf32>
    %189 = vector.broadcast %188 : vector<1x32xf32> to vector<16x32xf32>
    %190 = arith.addf %186, %189 : vector<16x32xf32>
    %c1 = arith.constant 1 : index
    %c0_67 = arith.constant 0 : index
    %c0_68 = arith.constant 0 : index
    %191 = vector.load %arg4[%c1, %c0_67, %c0_68] : memref<3x32x96xf32, #tpu.memory_space<vmem>>, vector<1x32x96xf32>
    %192 = vector.shape_cast %191 : vector<1x32x96xf32> to vector<32x96xf32>
    %cst_69 = arith.constant dense<0.000000e+00> : vector<16x96xf32>
    %193 = tpu.matmul %190, %192, %cst_69 {dimension_numbers = #tpu.dot_dimension_numbers<[1], [0], [0], [1], [0, 0, 1, 1], [], []>} : vector<16x32xf32>, vector<32x96xf32>, vector<16x96xf32> -> vector<16x96xf32>
    %c1_70 = arith.constant 1 : index
    %c0_71 = arith.constant 0 : index
    %c0_72 = arith.constant 0 : index
    %194 = vector.load %arg5[%c1_70, %c0_71, %c0_72] : memref<3x1x96xf32, #tpu.memory_space<vmem>>, vector<1x1x96xf32>
    %195 = vector.shape_cast %194 : vector<1x1x96xf32> to vector<1x96xf32>
    %196 = vector.broadcast %195 : vector<1x96xf32> to vector<16x96xf32>
    %197 = arith.addf %193, %196 : vector<16x96xf32>
    %198 = vector.extract_strided_slice %197 {offsets = [0, 0], sizes = [16, 32], strides = [1, 1]} : vector<16x96xf32> to vector<16x32xf32>
    %199 = vector.extract_strided_slice %197 {offsets = [0, 32], sizes = [16, 32], strides = [1, 1]} : vector<16x96xf32> to vector<16x32xf32>
    %200 = vector.extract_strided_slice %197 {offsets = [0, 64], sizes = [16, 32], strides = [1, 1]} : vector<16x96xf32> to vector<16x32xf32>
    %cst_73 = arith.constant dense<0.000000e+00> : vector<16x16xf32>
    %201 = tpu.matmul %198, %199, %cst_73 {dimension_numbers = #tpu.dot_dimension_numbers<[1], [1], [0], [0], [0, 0, 1, 0], [], []>} : vector<16x32xf32>, vector<16x32xf32>, vector<16x16xf32> -> vector<16x16xf32>
    %cst_74 = arith.constant dense<0.000000e+00> : vector<16x8xf32>
    %202 = tpu.matmul %198, %19, %cst_74 {dimension_numbers = #tpu.dot_dimension_numbers<[1], [1], [0], [0], [0, 0, 1, 0], [], []>} : vector<16x32xf32>, vector<8x32xf32>, vector<16x8xf32> -> vector<16x8xf32>
    %cst_75 = arith.constant 0.000000e+00 : f32
    %203 = vector.broadcast %cst_75 : f32 to vector<16x16xf32>
    %c0_i32_76 = arith.constant 0 : i32
    %204 = vector.broadcast %c0_i32_76 : i32 to vector<16x16xi32>
    %205 = arith.cmpi eq, %13, %204 : vector<16x16xi32>
    %206 = arith.extui %205 : vector<16x16xi1> to vector<16x16xi32>
    %207 = arith.sitofp %206 : vector<16x16xi32> to vector<16x16xf32>
    %208 = vector.extract_strided_slice %202 {offsets = [0, 0], sizes = [16, 1], strides = [1, 1]} : vector<16x8xf32> to vector<16x1xf32>
    %209 = vector.broadcast %208 : vector<16x1xf32> to vector<16x16xf32>
    %210 = arith.mulf %207, %209 : vector<16x16xf32>
    %211 = arith.addf %203, %210 : vector<16x16xf32>
    %c1_i32_77 = arith.constant 1 : i32
    %212 = vector.broadcast %c1_i32_77 : i32 to vector<16x16xi32>
    %213 = arith.cmpi eq, %13, %212 : vector<16x16xi32>
    %214 = arith.extui %213 : vector<16x16xi1> to vector<16x16xi32>
    %215 = arith.sitofp %214 : vector<16x16xi32> to vector<16x16xf32>
    %216 = vector.extract_strided_slice %202 {offsets = [0, 1], sizes = [16, 1], strides = [1, 1]} : vector<16x8xf32> to vector<16x1xf32>
    %217 = vector.broadcast %216 : vector<16x1xf32> to vector<16x16xf32>
    %218 = arith.mulf %215, %217 : vector<16x16xf32>
    %219 = arith.addf %211, %218 : vector<16x16xf32>
    %c2_i32_78 = arith.constant 2 : i32
    %220 = vector.broadcast %c2_i32_78 : i32 to vector<16x16xi32>
    %221 = arith.cmpi eq, %13, %220 : vector<16x16xi32>
    %222 = arith.extui %221 : vector<16x16xi1> to vector<16x16xi32>
    %223 = arith.sitofp %222 : vector<16x16xi32> to vector<16x16xf32>
    %224 = vector.extract_strided_slice %202 {offsets = [0, 2], sizes = [16, 1], strides = [1, 1]} : vector<16x8xf32> to vector<16x1xf32>
    %225 = vector.broadcast %224 : vector<16x1xf32> to vector<16x16xf32>
    %226 = arith.mulf %223, %225 : vector<16x16xf32>
    %227 = arith.addf %219, %226 : vector<16x16xf32>
    %c3_i32_79 = arith.constant 3 : i32
    %228 = vector.broadcast %c3_i32_79 : i32 to vector<16x16xi32>
    %229 = arith.cmpi eq, %13, %228 : vector<16x16xi32>
    %230 = arith.extui %229 : vector<16x16xi1> to vector<16x16xi32>
    %231 = arith.sitofp %230 : vector<16x16xi32> to vector<16x16xf32>
    %232 = vector.extract_strided_slice %202 {offsets = [0, 3], sizes = [16, 1], strides = [1, 1]} : vector<16x8xf32> to vector<16x1xf32>
    %233 = vector.broadcast %232 : vector<16x1xf32> to vector<16x16xf32>
    %234 = arith.mulf %231, %233 : vector<16x16xf32>
    %235 = arith.addf %227, %234 : vector<16x16xf32>
    %c4_i32_80 = arith.constant 4 : i32
    %236 = vector.broadcast %c4_i32_80 : i32 to vector<16x16xi32>
    %237 = arith.cmpi eq, %13, %236 : vector<16x16xi32>
    %238 = arith.extui %237 : vector<16x16xi1> to vector<16x16xi32>
    %239 = arith.sitofp %238 : vector<16x16xi32> to vector<16x16xf32>
    %240 = vector.extract_strided_slice %202 {offsets = [0, 4], sizes = [16, 1], strides = [1, 1]} : vector<16x8xf32> to vector<16x1xf32>
    %241 = vector.broadcast %240 : vector<16x1xf32> to vector<16x16xf32>
    %242 = arith.mulf %239, %241 : vector<16x16xf32>
    %243 = arith.addf %235, %242 : vector<16x16xf32>
    %c5_i32_81 = arith.constant 5 : i32
    %244 = vector.broadcast %c5_i32_81 : i32 to vector<16x16xi32>
    %245 = arith.cmpi eq, %13, %244 : vector<16x16xi32>
    %246 = arith.extui %245 : vector<16x16xi1> to vector<16x16xi32>
    %247 = arith.sitofp %246 : vector<16x16xi32> to vector<16x16xf32>
    %248 = vector.extract_strided_slice %202 {offsets = [0, 5], sizes = [16, 1], strides = [1, 1]} : vector<16x8xf32> to vector<16x1xf32>
    %249 = vector.broadcast %248 : vector<16x1xf32> to vector<16x16xf32>
    %250 = arith.mulf %247, %249 : vector<16x16xf32>
    %251 = arith.addf %243, %250 : vector<16x16xf32>
    %c6_i32_82 = arith.constant 6 : i32
    %252 = vector.broadcast %c6_i32_82 : i32 to vector<16x16xi32>
    %253 = arith.cmpi eq, %13, %252 : vector<16x16xi32>
    %254 = arith.extui %253 : vector<16x16xi1> to vector<16x16xi32>
    %255 = arith.sitofp %254 : vector<16x16xi32> to vector<16x16xf32>
    %256 = vector.extract_strided_slice %202 {offsets = [0, 6], sizes = [16, 1], strides = [1, 1]} : vector<16x8xf32> to vector<16x1xf32>
    %257 = vector.broadcast %256 : vector<16x1xf32> to vector<16x16xf32>
    %258 = arith.mulf %255, %257 : vector<16x16xf32>
    %259 = arith.addf %251, %258 : vector<16x16xf32>
    %c7_i32_83 = arith.constant 7 : i32
    %260 = vector.broadcast %c7_i32_83 : i32 to vector<16x16xi32>
    %261 = arith.cmpi eq, %13, %260 : vector<16x16xi32>
    %262 = arith.extui %261 : vector<16x16xi1> to vector<16x16xi32>
    %263 = arith.sitofp %262 : vector<16x16xi32> to vector<16x16xf32>
    %264 = vector.extract_strided_slice %202 {offsets = [0, 7], sizes = [16, 1], strides = [1, 1]} : vector<16x8xf32> to vector<16x1xf32>
    %265 = vector.broadcast %264 : vector<16x1xf32> to vector<16x16xf32>
    %266 = arith.mulf %263, %265 : vector<16x16xf32>
    %267 = arith.addf %259, %266 : vector<16x16xf32>
    %cst_84 = arith.constant 0.000000e+00 : f32
    %268 = vector.broadcast %cst_84 : f32 to vector<16x16xf32>
    %269 = arith.cmpf one, %201, %268 : vector<16x16xf32>
    %270 = arith.andi %18, %269 : vector<16x16xi1>
    %271 = arith.addf %201, %267 : vector<16x16xf32>
    %cst_85 = arith.constant -1.000000e+09 : f32
    %272 = vector.broadcast %cst_85 : f32 to vector<16x16xf32>
    %273 = arith.select %270, %271, %272 : vector<16x16xi1>, vector<16x16xf32>
    %cst_86 = arith.constant dense<0xFF800000> : vector<16xf32>
    %274 = vector.multi_reduction <maximumf>, %273, %cst_86 [1] : vector<16x16xf32> to vector<16xf32>
    %275 = vector.shape_cast %274 : vector<16xf32> to vector<16x1xf32>
    %276 = vector.broadcast %275 : vector<16x1xf32> to vector<16x16xf32>
    %277 = arith.subf %273, %276 : vector<16x16xf32>
    %278 = math.exp %277 : vector<16x16xf32>
    %cst_87 = arith.constant dense<0.000000e+00> : vector<16xf32>
    %279 = vector.multi_reduction <add>, %278, %cst_87 [1] : vector<16x16xf32> to vector<16xf32>
    %280 = vector.shape_cast %279 : vector<16xf32> to vector<16x1xf32>
    %281 = tpu.reciprocal %280 {approx = true} : vector<16x1xf32> -> vector<16x1xf32>
    %282 = vector.broadcast %281 : vector<16x1xf32> to vector<16x16xf32>
    %283 = arith.mulf %278, %282 : vector<16x16xf32>
    %cst_88 = arith.constant dense<0.000000e+00> : vector<16x32xf32>
    %284 = tpu.matmul %283, %200, %cst_88 {dimension_numbers = #tpu.dot_dimension_numbers<[1], [0], [0], [1], [0, 0, 1, 1], [], []>} : vector<16x16xf32>, vector<16x32xf32>, vector<16x32xf32> -> vector<16x32xf32>
    %c1_89 = arith.constant 1 : index
    %c0_90 = arith.constant 0 : index
    %c0_91 = arith.constant 0 : index
    %285 = vector.load %arg6[%c1_89, %c0_90, %c0_91] : memref<3x32x32xf32, #tpu.memory_space<vmem>>, vector<1x32x32xf32>
    %286 = vector.shape_cast %285 : vector<1x32x32xf32> to vector<32x32xf32>
    %cst_92 = arith.constant dense<0.000000e+00> : vector<16x32xf32>
    %287 = tpu.matmul %284, %286, %cst_92 {dimension_numbers = #tpu.dot_dimension_numbers<[1], [0], [0], [1], [0, 0, 1, 1], [], []>} : vector<16x32xf32>, vector<32x32xf32>, vector<16x32xf32> -> vector<16x32xf32>
    %c1_93 = arith.constant 1 : index
    %c0_94 = arith.constant 0 : index
    %c0_95 = arith.constant 0 : index
    %288 = vector.load %arg7[%c1_93, %c0_94, %c0_95] : memref<3x1x32xf32, #tpu.memory_space<vmem>>, vector<1x1x32xf32>
    %289 = vector.shape_cast %288 : vector<1x1x32xf32> to vector<1x32xf32>
    %290 = vector.broadcast %289 : vector<1x32xf32> to vector<16x32xf32>
    %291 = arith.addf %287, %290 : vector<16x32xf32>
    %292 = arith.addf %190, %291 : vector<16x32xf32>
    %cst_96 = arith.constant dense<0.000000e+00> : vector<16xf32>
    %293 = vector.multi_reduction <add>, %292, %cst_96 [1] : vector<16x32xf32> to vector<16xf32>
    %294 = vector.shape_cast %293 : vector<16xf32> to vector<16x1xf32>
    %cst_97 = arith.constant 3.200000e+01 : f32
    %295 = vector.broadcast %cst_97 : f32 to vector<16x1xf32>
    %296 = arith.divf %294, %295 : vector<16x1xf32>
    %297 = vector.broadcast %296 : vector<16x1xf32> to vector<16x32xf32>
    %298 = arith.subf %292, %297 : vector<16x32xf32>
    %299 = arith.mulf %298, %298 : vector<16x32xf32>
    %cst_98 = arith.constant dense<0.000000e+00> : vector<16xf32>
    %300 = vector.multi_reduction <add>, %299, %cst_98 [1] : vector<16x32xf32> to vector<16xf32>
    %301 = vector.shape_cast %300 : vector<16xf32> to vector<16x1xf32>
    %cst_99 = arith.constant 3.200000e+01 : f32
    %302 = vector.broadcast %cst_99 : f32 to vector<16x1xf32>
    %303 = arith.divf %301, %302 : vector<16x1xf32>
    %304 = vector.broadcast %296 : vector<16x1xf32> to vector<16x32xf32>
    %305 = arith.subf %292, %304 : vector<16x32xf32>
    %cst_100 = arith.constant 9.99999974E-6 : f32
    %306 = vector.broadcast %cst_100 : f32 to vector<16x1xf32>
    %307 = arith.addf %303, %306 : vector<16x1xf32>
    %308 = math.rsqrt %307 : vector<16x1xf32>
    %309 = vector.broadcast %308 : vector<16x1xf32> to vector<16x32xf32>
    %310 = arith.mulf %305, %309 : vector<16x32xf32>
    %c1_101 = arith.constant 1 : index
    %c0_102 = arith.constant 0 : index
    %c0_103 = arith.constant 0 : index
    %311 = vector.load %arg8[%c1_101, %c0_102, %c0_103] : memref<3x1x32xf32, #tpu.memory_space<vmem>>, vector<1x1x32xf32>
    %312 = vector.shape_cast %311 : vector<1x1x32xf32> to vector<1x32xf32>
    %313 = vector.broadcast %312 : vector<1x32xf32> to vector<16x32xf32>
    %314 = arith.mulf %310, %313 : vector<16x32xf32>
    %c1_104 = arith.constant 1 : index
    %c0_105 = arith.constant 0 : index
    %c0_106 = arith.constant 0 : index
    %315 = vector.load %arg9[%c1_104, %c0_105, %c0_106] : memref<3x1x32xf32, #tpu.memory_space<vmem>>, vector<1x1x32xf32>
    %316 = vector.shape_cast %315 : vector<1x1x32xf32> to vector<1x32xf32>
    %317 = vector.broadcast %316 : vector<1x32xf32> to vector<16x32xf32>
    %318 = arith.addf %314, %317 : vector<16x32xf32>
    %c1_107 = arith.constant 1 : index
    %c0_108 = arith.constant 0 : index
    %c0_109 = arith.constant 0 : index
    %319 = vector.load %arg10[%c1_107, %c0_108, %c0_109] : memref<3x32x64xf32, #tpu.memory_space<vmem>>, vector<1x32x64xf32>
    %320 = vector.shape_cast %319 : vector<1x32x64xf32> to vector<32x64xf32>
    %cst_110 = arith.constant dense<0.000000e+00> : vector<16x64xf32>
    %321 = tpu.matmul %318, %320, %cst_110 {dimension_numbers = #tpu.dot_dimension_numbers<[1], [0], [0], [1], [0, 0, 1, 1], [], []>} : vector<16x32xf32>, vector<32x64xf32>, vector<16x64xf32> -> vector<16x64xf32>
    %c1_111 = arith.constant 1 : index
    %c0_112 = arith.constant 0 : index
    %c0_113 = arith.constant 0 : index
    %322 = vector.load %arg11[%c1_111, %c0_112, %c0_113] : memref<3x1x64xf32, #tpu.memory_space<vmem>>, vector<1x1x64xf32>
    %323 = vector.shape_cast %322 : vector<1x1x64xf32> to vector<1x64xf32>
    %324 = vector.broadcast %323 : vector<1x64xf32> to vector<16x64xf32>
    %325 = arith.addf %321, %324 : vector<16x64xf32>
    %cst_114 = arith.constant 0.000000e+00 : f32
    %326 = vector.broadcast %cst_114 : f32 to vector<16x64xf32>
    %327 = arith.maximumf %325, %326 : vector<16x64xf32>
    %c1_115 = arith.constant 1 : index
    %c0_116 = arith.constant 0 : index
    %c0_117 = arith.constant 0 : index
    %328 = vector.load %arg12[%c1_115, %c0_116, %c0_117] : memref<3x64x32xf32, #tpu.memory_space<vmem>>, vector<1x64x32xf32>
    %329 = vector.shape_cast %328 : vector<1x64x32xf32> to vector<64x32xf32>
    %cst_118 = arith.constant dense<0.000000e+00> : vector<16x32xf32>
    %330 = tpu.matmul %327, %329, %cst_118 {dimension_numbers = #tpu.dot_dimension_numbers<[1], [0], [0], [1], [0, 0, 1, 1], [], []>} : vector<16x64xf32>, vector<64x32xf32>, vector<16x32xf32> -> vector<16x32xf32>
    %c1_119 = arith.constant 1 : index
    %c0_120 = arith.constant 0 : index
    %c0_121 = arith.constant 0 : index
    %331 = vector.load %arg13[%c1_119, %c0_120, %c0_121] : memref<3x1x32xf32, #tpu.memory_space<vmem>>, vector<1x1x32xf32>
    %332 = vector.shape_cast %331 : vector<1x1x32xf32> to vector<1x32xf32>
    %333 = vector.broadcast %332 : vector<1x32xf32> to vector<16x32xf32>
    %334 = arith.addf %330, %333 : vector<16x32xf32>
    %335 = arith.addf %318, %334 : vector<16x32xf32>
    %cst_122 = arith.constant dense<0.000000e+00> : vector<16xf32>
    %336 = vector.multi_reduction <add>, %335, %cst_122 [1] : vector<16x32xf32> to vector<16xf32>
    %337 = vector.shape_cast %336 : vector<16xf32> to vector<16x1xf32>
    %cst_123 = arith.constant 3.200000e+01 : f32
    %338 = vector.broadcast %cst_123 : f32 to vector<16x1xf32>
    %339 = arith.divf %337, %338 : vector<16x1xf32>
    %340 = vector.broadcast %339 : vector<16x1xf32> to vector<16x32xf32>
    %341 = arith.subf %335, %340 : vector<16x32xf32>
    %342 = arith.mulf %341, %341 : vector<16x32xf32>
    %cst_124 = arith.constant dense<0.000000e+00> : vector<16xf32>
    %343 = vector.multi_reduction <add>, %342, %cst_124 [1] : vector<16x32xf32> to vector<16xf32>
    %344 = vector.shape_cast %343 : vector<16xf32> to vector<16x1xf32>
    %cst_125 = arith.constant 3.200000e+01 : f32
    %345 = vector.broadcast %cst_125 : f32 to vector<16x1xf32>
    %346 = arith.divf %344, %345 : vector<16x1xf32>
    %347 = vector.broadcast %339 : vector<16x1xf32> to vector<16x32xf32>
    %348 = arith.subf %335, %347 : vector<16x32xf32>
    %cst_126 = arith.constant 9.99999974E-6 : f32
    %349 = vector.broadcast %cst_126 : f32 to vector<16x1xf32>
    %350 = arith.addf %346, %349 : vector<16x1xf32>
    %351 = math.rsqrt %350 : vector<16x1xf32>
    %352 = vector.broadcast %351 : vector<16x1xf32> to vector<16x32xf32>
    %353 = arith.mulf %348, %352 : vector<16x32xf32>
    %c1_127 = arith.constant 1 : index
    %c0_128 = arith.constant 0 : index
    %c0_129 = arith.constant 0 : index
    %354 = vector.load %arg14[%c1_127, %c0_128, %c0_129] : memref<3x1x32xf32, #tpu.memory_space<vmem>>, vector<1x1x32xf32>
    %355 = vector.shape_cast %354 : vector<1x1x32xf32> to vector<1x32xf32>
    %356 = vector.broadcast %355 : vector<1x32xf32> to vector<16x32xf32>
    %357 = arith.mulf %353, %356 : vector<16x32xf32>
    %c1_130 = arith.constant 1 : index
    %c0_131 = arith.constant 0 : index
    %c0_132 = arith.constant 0 : index
    %358 = vector.load %arg15[%c1_130, %c0_131, %c0_132] : memref<3x1x32xf32, #tpu.memory_space<vmem>>, vector<1x1x32xf32>
    %359 = vector.shape_cast %358 : vector<1x1x32xf32> to vector<1x32xf32>
    %360 = vector.broadcast %359 : vector<1x32xf32> to vector<16x32xf32>
    %361 = arith.addf %357, %360 : vector<16x32xf32>
    %c2 = arith.constant 2 : index
    %c0_133 = arith.constant 0 : index
    %c0_134 = arith.constant 0 : index
    %362 = vector.load %arg4[%c2, %c0_133, %c0_134] : memref<3x32x96xf32, #tpu.memory_space<vmem>>, vector<1x32x96xf32>
    %363 = vector.shape_cast %362 : vector<1x32x96xf32> to vector<32x96xf32>
    %cst_135 = arith.constant dense<0.000000e+00> : vector<16x96xf32>
    %364 = tpu.matmul %361, %363, %cst_135 {dimension_numbers = #tpu.dot_dimension_numbers<[1], [0], [0], [1], [0, 0, 1, 1], [], []>} : vector<16x32xf32>, vector<32x96xf32>, vector<16x96xf32> -> vector<16x96xf32>
    %c2_136 = arith.constant 2 : index
    %c0_137 = arith.constant 0 : index
    %c0_138 = arith.constant 0 : index
    %365 = vector.load %arg5[%c2_136, %c0_137, %c0_138] : memref<3x1x96xf32, #tpu.memory_space<vmem>>, vector<1x1x96xf32>
    %366 = vector.shape_cast %365 : vector<1x1x96xf32> to vector<1x96xf32>
    %367 = vector.broadcast %366 : vector<1x96xf32> to vector<16x96xf32>
    %368 = arith.addf %364, %367 : vector<16x96xf32>
    %369 = vector.extract_strided_slice %368 {offsets = [0, 0], sizes = [16, 32], strides = [1, 1]} : vector<16x96xf32> to vector<16x32xf32>
    %370 = vector.extract_strided_slice %368 {offsets = [0, 32], sizes = [16, 32], strides = [1, 1]} : vector<16x96xf32> to vector<16x32xf32>
    %371 = vector.extract_strided_slice %368 {offsets = [0, 64], sizes = [16, 32], strides = [1, 1]} : vector<16x96xf32> to vector<16x32xf32>
    %cst_139 = arith.constant dense<0.000000e+00> : vector<16x16xf32>
    %372 = tpu.matmul %369, %370, %cst_139 {dimension_numbers = #tpu.dot_dimension_numbers<[1], [1], [0], [0], [0, 0, 1, 0], [], []>} : vector<16x32xf32>, vector<16x32xf32>, vector<16x16xf32> -> vector<16x16xf32>
    %cst_140 = arith.constant dense<0.000000e+00> : vector<16x8xf32>
    %373 = tpu.matmul %369, %19, %cst_140 {dimension_numbers = #tpu.dot_dimension_numbers<[1], [1], [0], [0], [0, 0, 1, 0], [], []>} : vector<16x32xf32>, vector<8x32xf32>, vector<16x8xf32> -> vector<16x8xf32>
    %cst_141 = arith.constant 0.000000e+00 : f32
    %374 = vector.broadcast %cst_141 : f32 to vector<16x16xf32>
    %c0_i32_142 = arith.constant 0 : i32
    %375 = vector.broadcast %c0_i32_142 : i32 to vector<16x16xi32>
    %376 = arith.cmpi eq, %13, %375 : vector<16x16xi32>
    %377 = arith.extui %376 : vector<16x16xi1> to vector<16x16xi32>
    %378 = arith.sitofp %377 : vector<16x16xi32> to vector<16x16xf32>
    %379 = vector.extract_strided_slice %373 {offsets = [0, 0], sizes = [16, 1], strides = [1, 1]} : vector<16x8xf32> to vector<16x1xf32>
    %380 = vector.broadcast %379 : vector<16x1xf32> to vector<16x16xf32>
    %381 = arith.mulf %378, %380 : vector<16x16xf32>
    %382 = arith.addf %374, %381 : vector<16x16xf32>
    %c1_i32_143 = arith.constant 1 : i32
    %383 = vector.broadcast %c1_i32_143 : i32 to vector<16x16xi32>
    %384 = arith.cmpi eq, %13, %383 : vector<16x16xi32>
    %385 = arith.extui %384 : vector<16x16xi1> to vector<16x16xi32>
    %386 = arith.sitofp %385 : vector<16x16xi32> to vector<16x16xf32>
    %387 = vector.extract_strided_slice %373 {offsets = [0, 1], sizes = [16, 1], strides = [1, 1]} : vector<16x8xf32> to vector<16x1xf32>
    %388 = vector.broadcast %387 : vector<16x1xf32> to vector<16x16xf32>
    %389 = arith.mulf %386, %388 : vector<16x16xf32>
    %390 = arith.addf %382, %389 : vector<16x16xf32>
    %c2_i32_144 = arith.constant 2 : i32
    %391 = vector.broadcast %c2_i32_144 : i32 to vector<16x16xi32>
    %392 = arith.cmpi eq, %13, %391 : vector<16x16xi32>
    %393 = arith.extui %392 : vector<16x16xi1> to vector<16x16xi32>
    %394 = arith.sitofp %393 : vector<16x16xi32> to vector<16x16xf32>
    %395 = vector.extract_strided_slice %373 {offsets = [0, 2], sizes = [16, 1], strides = [1, 1]} : vector<16x8xf32> to vector<16x1xf32>
    %396 = vector.broadcast %395 : vector<16x1xf32> to vector<16x16xf32>
    %397 = arith.mulf %394, %396 : vector<16x16xf32>
    %398 = arith.addf %390, %397 : vector<16x16xf32>
    %c3_i32_145 = arith.constant 3 : i32
    %399 = vector.broadcast %c3_i32_145 : i32 to vector<16x16xi32>
    %400 = arith.cmpi eq, %13, %399 : vector<16x16xi32>
    %401 = arith.extui %400 : vector<16x16xi1> to vector<16x16xi32>
    %402 = arith.sitofp %401 : vector<16x16xi32> to vector<16x16xf32>
    %403 = vector.extract_strided_slice %373 {offsets = [0, 3], sizes = [16, 1], strides = [1, 1]} : vector<16x8xf32> to vector<16x1xf32>
    %404 = vector.broadcast %403 : vector<16x1xf32> to vector<16x16xf32>
    %405 = arith.mulf %402, %404 : vector<16x16xf32>
    %406 = arith.addf %398, %405 : vector<16x16xf32>
    %c4_i32_146 = arith.constant 4 : i32
    %407 = vector.broadcast %c4_i32_146 : i32 to vector<16x16xi32>
    %408 = arith.cmpi eq, %13, %407 : vector<16x16xi32>
    %409 = arith.extui %408 : vector<16x16xi1> to vector<16x16xi32>
    %410 = arith.sitofp %409 : vector<16x16xi32> to vector<16x16xf32>
    %411 = vector.extract_strided_slice %373 {offsets = [0, 4], sizes = [16, 1], strides = [1, 1]} : vector<16x8xf32> to vector<16x1xf32>
    %412 = vector.broadcast %411 : vector<16x1xf32> to vector<16x16xf32>
    %413 = arith.mulf %410, %412 : vector<16x16xf32>
    %414 = arith.addf %406, %413 : vector<16x16xf32>
    %c5_i32_147 = arith.constant 5 : i32
    %415 = vector.broadcast %c5_i32_147 : i32 to vector<16x16xi32>
    %416 = arith.cmpi eq, %13, %415 : vector<16x16xi32>
    %417 = arith.extui %416 : vector<16x16xi1> to vector<16x16xi32>
    %418 = arith.sitofp %417 : vector<16x16xi32> to vector<16x16xf32>
    %419 = vector.extract_strided_slice %373 {offsets = [0, 5], sizes = [16, 1], strides = [1, 1]} : vector<16x8xf32> to vector<16x1xf32>
    %420 = vector.broadcast %419 : vector<16x1xf32> to vector<16x16xf32>
    %421 = arith.mulf %418, %420 : vector<16x16xf32>
    %422 = arith.addf %414, %421 : vector<16x16xf32>
    %c6_i32_148 = arith.constant 6 : i32
    %423 = vector.broadcast %c6_i32_148 : i32 to vector<16x16xi32>
    %424 = arith.cmpi eq, %13, %423 : vector<16x16xi32>
    %425 = arith.extui %424 : vector<16x16xi1> to vector<16x16xi32>
    %426 = arith.sitofp %425 : vector<16x16xi32> to vector<16x16xf32>
    %427 = vector.extract_strided_slice %373 {offsets = [0, 6], sizes = [16, 1], strides = [1, 1]} : vector<16x8xf32> to vector<16x1xf32>
    %428 = vector.broadcast %427 : vector<16x1xf32> to vector<16x16xf32>
    %429 = arith.mulf %426, %428 : vector<16x16xf32>
    %430 = arith.addf %422, %429 : vector<16x16xf32>
    %c7_i32_149 = arith.constant 7 : i32
    %431 = vector.broadcast %c7_i32_149 : i32 to vector<16x16xi32>
    %432 = arith.cmpi eq, %13, %431 : vector<16x16xi32>
    %433 = arith.extui %432 : vector<16x16xi1> to vector<16x16xi32>
    %434 = arith.sitofp %433 : vector<16x16xi32> to vector<16x16xf32>
    %435 = vector.extract_strided_slice %373 {offsets = [0, 7], sizes = [16, 1], strides = [1, 1]} : vector<16x8xf32> to vector<16x1xf32>
    %436 = vector.broadcast %435 : vector<16x1xf32> to vector<16x16xf32>
    %437 = arith.mulf %434, %436 : vector<16x16xf32>
    %438 = arith.addf %430, %437 : vector<16x16xf32>
    %cst_150 = arith.constant 0.000000e+00 : f32
    %439 = vector.broadcast %cst_150 : f32 to vector<16x16xf32>
    %440 = arith.cmpf one, %372, %439 : vector<16x16xf32>
    %441 = arith.andi %18, %440 : vector<16x16xi1>
    %442 = arith.addf %372, %438 : vector<16x16xf32>
    %cst_151 = arith.constant -1.000000e+09 : f32
    %443 = vector.broadcast %cst_151 : f32 to vector<16x16xf32>
    %444 = arith.select %441, %442, %443 : vector<16x16xi1>, vector<16x16xf32>
    %cst_152 = arith.constant dense<0xFF800000> : vector<16xf32>
    %445 = vector.multi_reduction <maximumf>, %444, %cst_152 [1] : vector<16x16xf32> to vector<16xf32>
    %446 = vector.shape_cast %445 : vector<16xf32> to vector<16x1xf32>
    %447 = vector.broadcast %446 : vector<16x1xf32> to vector<16x16xf32>
    %448 = arith.subf %444, %447 : vector<16x16xf32>
    %449 = math.exp %448 : vector<16x16xf32>
    %cst_153 = arith.constant dense<0.000000e+00> : vector<16xf32>
    %450 = vector.multi_reduction <add>, %449, %cst_153 [1] : vector<16x16xf32> to vector<16xf32>
    %451 = vector.shape_cast %450 : vector<16xf32> to vector<16x1xf32>
    %452 = tpu.reciprocal %451 {approx = true} : vector<16x1xf32> -> vector<16x1xf32>
    %453 = vector.broadcast %452 : vector<16x1xf32> to vector<16x16xf32>
    %454 = arith.mulf %449, %453 : vector<16x16xf32>
    %cst_154 = arith.constant dense<0.000000e+00> : vector<16x32xf32>
    %455 = tpu.matmul %454, %371, %cst_154 {dimension_numbers = #tpu.dot_dimension_numbers<[1], [0], [0], [1], [0, 0, 1, 1], [], []>} : vector<16x16xf32>, vector<16x32xf32>, vector<16x32xf32> -> vector<16x32xf32>
    %c2_155 = arith.constant 2 : index
    %c0_156 = arith.constant 0 : index
    %c0_157 = arith.constant 0 : index
    %456 = vector.load %arg6[%c2_155, %c0_156, %c0_157] : memref<3x32x32xf32, #tpu.memory_space<vmem>>, vector<1x32x32xf32>
    %457 = vector.shape_cast %456 : vector<1x32x32xf32> to vector<32x32xf32>
    %cst_158 = arith.constant dense<0.000000e+00> : vector<16x32xf32>
    %458 = tpu.matmul %455, %457, %cst_158 {dimension_numbers = #tpu.dot_dimension_numbers<[1], [0], [0], [1], [0, 0, 1, 1], [], []>} : vector<16x32xf32>, vector<32x32xf32>, vector<16x32xf32> -> vector<16x32xf32>
    %c2_159 = arith.constant 2 : index
    %c0_160 = arith.constant 0 : index
    %c0_161 = arith.constant 0 : index
    %459 = vector.load %arg7[%c2_159, %c0_160, %c0_161] : memref<3x1x32xf32, #tpu.memory_space<vmem>>, vector<1x1x32xf32>
    %460 = vector.shape_cast %459 : vector<1x1x32xf32> to vector<1x32xf32>
    %461 = vector.broadcast %460 : vector<1x32xf32> to vector<16x32xf32>
    %462 = arith.addf %458, %461 : vector<16x32xf32>
    %463 = arith.addf %361, %462 : vector<16x32xf32>
    %cst_162 = arith.constant dense<0.000000e+00> : vector<16xf32>
    %464 = vector.multi_reduction <add>, %463, %cst_162 [1] : vector<16x32xf32> to vector<16xf32>
    %465 = vector.shape_cast %464 : vector<16xf32> to vector<16x1xf32>
    %cst_163 = arith.constant 3.200000e+01 : f32
    %466 = vector.broadcast %cst_163 : f32 to vector<16x1xf32>
    %467 = arith.divf %465, %466 : vector<16x1xf32>
    %468 = vector.broadcast %467 : vector<16x1xf32> to vector<16x32xf32>
    %469 = arith.subf %463, %468 : vector<16x32xf32>
    %470 = arith.mulf %469, %469 : vector<16x32xf32>
    %cst_164 = arith.constant dense<0.000000e+00> : vector<16xf32>
    %471 = vector.multi_reduction <add>, %470, %cst_164 [1] : vector<16x32xf32> to vector<16xf32>
    %472 = vector.shape_cast %471 : vector<16xf32> to vector<16x1xf32>
    %cst_165 = arith.constant 3.200000e+01 : f32
    %473 = vector.broadcast %cst_165 : f32 to vector<16x1xf32>
    %474 = arith.divf %472, %473 : vector<16x1xf32>
    %475 = vector.broadcast %467 : vector<16x1xf32> to vector<16x32xf32>
    %476 = arith.subf %463, %475 : vector<16x32xf32>
    %cst_166 = arith.constant 9.99999974E-6 : f32
    %477 = vector.broadcast %cst_166 : f32 to vector<16x1xf32>
    %478 = arith.addf %474, %477 : vector<16x1xf32>
    %479 = math.rsqrt %478 : vector<16x1xf32>
    %480 = vector.broadcast %479 : vector<16x1xf32> to vector<16x32xf32>
    %481 = arith.mulf %476, %480 : vector<16x32xf32>
    %c2_167 = arith.constant 2 : index
    %c0_168 = arith.constant 0 : index
    %c0_169 = arith.constant 0 : index
    %482 = vector.load %arg8[%c2_167, %c0_168, %c0_169] : memref<3x1x32xf32, #tpu.memory_space<vmem>>, vector<1x1x32xf32>
    %483 = vector.shape_cast %482 : vector<1x1x32xf32> to vector<1x32xf32>
    %484 = vector.broadcast %483 : vector<1x32xf32> to vector<16x32xf32>
    %485 = arith.mulf %481, %484 : vector<16x32xf32>
    %c2_170 = arith.constant 2 : index
    %c0_171 = arith.constant 0 : index
    %c0_172 = arith.constant 0 : index
    %486 = vector.load %arg9[%c2_170, %c0_171, %c0_172] : memref<3x1x32xf32, #tpu.memory_space<vmem>>, vector<1x1x32xf32>
    %487 = vector.shape_cast %486 : vector<1x1x32xf32> to vector<1x32xf32>
    %488 = vector.broadcast %487 : vector<1x32xf32> to vector<16x32xf32>
    %489 = arith.addf %485, %488 : vector<16x32xf32>
    %c2_173 = arith.constant 2 : index
    %c0_174 = arith.constant 0 : index
    %c0_175 = arith.constant 0 : index
    %490 = vector.load %arg10[%c2_173, %c0_174, %c0_175] : memref<3x32x64xf32, #tpu.memory_space<vmem>>, vector<1x32x64xf32>
    %491 = vector.shape_cast %490 : vector<1x32x64xf32> to vector<32x64xf32>
    %cst_176 = arith.constant dense<0.000000e+00> : vector<16x64xf32>
    %492 = tpu.matmul %489, %491, %cst_176 {dimension_numbers = #tpu.dot_dimension_numbers<[1], [0], [0], [1], [0, 0, 1, 1], [], []>} : vector<16x32xf32>, vector<32x64xf32>, vector<16x64xf32> -> vector<16x64xf32>
    %c2_177 = arith.constant 2 : index
    %c0_178 = arith.constant 0 : index
    %c0_179 = arith.constant 0 : index
    %493 = vector.load %arg11[%c2_177, %c0_178, %c0_179] : memref<3x1x64xf32, #tpu.memory_space<vmem>>, vector<1x1x64xf32>
    %494 = vector.shape_cast %493 : vector<1x1x64xf32> to vector<1x64xf32>
    %495 = vector.broadcast %494 : vector<1x64xf32> to vector<16x64xf32>
    %496 = arith.addf %492, %495 : vector<16x64xf32>
    %cst_180 = arith.constant 0.000000e+00 : f32
    %497 = vector.broadcast %cst_180 : f32 to vector<16x64xf32>
    %498 = arith.maximumf %496, %497 : vector<16x64xf32>
    %c2_181 = arith.constant 2 : index
    %c0_182 = arith.constant 0 : index
    %c0_183 = arith.constant 0 : index
    %499 = vector.load %arg12[%c2_181, %c0_182, %c0_183] : memref<3x64x32xf32, #tpu.memory_space<vmem>>, vector<1x64x32xf32>
    %500 = vector.shape_cast %499 : vector<1x64x32xf32> to vector<64x32xf32>
    %cst_184 = arith.constant dense<0.000000e+00> : vector<16x32xf32>
    %501 = tpu.matmul %498, %500, %cst_184 {dimension_numbers = #tpu.dot_dimension_numbers<[1], [0], [0], [1], [0, 0, 1, 1], [], []>} : vector<16x64xf32>, vector<64x32xf32>, vector<16x32xf32> -> vector<16x32xf32>
    %c2_185 = arith.constant 2 : index
    %c0_186 = arith.constant 0 : index
    %c0_187 = arith.constant 0 : index
    %502 = vector.load %arg13[%c2_185, %c0_186, %c0_187] : memref<3x1x32xf32, #tpu.memory_space<vmem>>, vector<1x1x32xf32>
    %503 = vector.shape_cast %502 : vector<1x1x32xf32> to vector<1x32xf32>
    %504 = vector.broadcast %503 : vector<1x32xf32> to vector<16x32xf32>
    %505 = arith.addf %501, %504 : vector<16x32xf32>
    %506 = arith.addf %489, %505 : vector<16x32xf32>
    %cst_188 = arith.constant dense<0.000000e+00> : vector<16xf32>
    %507 = vector.multi_reduction <add>, %506, %cst_188 [1] : vector<16x32xf32> to vector<16xf32>
    %508 = vector.shape_cast %507 : vector<16xf32> to vector<16x1xf32>
    %cst_189 = arith.constant 3.200000e+01 : f32
    %509 = vector.broadcast %cst_189 : f32 to vector<16x1xf32>
    %510 = arith.divf %508, %509 : vector<16x1xf32>
    %511 = vector.broadcast %510 : vector<16x1xf32> to vector<16x32xf32>
    %512 = arith.subf %506, %511 : vector<16x32xf32>
    %513 = arith.mulf %512, %512 : vector<16x32xf32>
    %cst_190 = arith.constant dense<0.000000e+00> : vector<16xf32>
    %514 = vector.multi_reduction <add>, %513, %cst_190 [1] : vector<16x32xf32> to vector<16xf32>
    %515 = vector.shape_cast %514 : vector<16xf32> to vector<16x1xf32>
    %cst_191 = arith.constant 3.200000e+01 : f32
    %516 = vector.broadcast %cst_191 : f32 to vector<16x1xf32>
    %517 = arith.divf %515, %516 : vector<16x1xf32>
    %518 = vector.broadcast %510 : vector<16x1xf32> to vector<16x32xf32>
    %519 = arith.subf %506, %518 : vector<16x32xf32>
    %cst_192 = arith.constant 9.99999974E-6 : f32
    %520 = vector.broadcast %cst_192 : f32 to vector<16x1xf32>
    %521 = arith.addf %517, %520 : vector<16x1xf32>
    %522 = math.rsqrt %521 : vector<16x1xf32>
    %523 = vector.broadcast %522 : vector<16x1xf32> to vector<16x32xf32>
    %524 = arith.mulf %519, %523 : vector<16x32xf32>
    %c2_193 = arith.constant 2 : index
    %c0_194 = arith.constant 0 : index
    %c0_195 = arith.constant 0 : index
    %525 = vector.load %arg14[%c2_193, %c0_194, %c0_195] : memref<3x1x32xf32, #tpu.memory_space<vmem>>, vector<1x1x32xf32>
    %526 = vector.shape_cast %525 : vector<1x1x32xf32> to vector<1x32xf32>
    %527 = vector.broadcast %526 : vector<1x32xf32> to vector<16x32xf32>
    %528 = arith.mulf %524, %527 : vector<16x32xf32>
    %c2_196 = arith.constant 2 : index
    %c0_197 = arith.constant 0 : index
    %c0_198 = arith.constant 0 : index
    %529 = vector.load %arg15[%c2_196, %c0_197, %c0_198] : memref<3x1x32xf32, #tpu.memory_space<vmem>>, vector<1x1x32xf32>
    %530 = vector.shape_cast %529 : vector<1x1x32xf32> to vector<1x32xf32>
    %531 = vector.broadcast %530 : vector<1x32xf32> to vector<16x32xf32>
    %532 = arith.addf %528, %531 : vector<16x32xf32>
    %c0_199 = arith.constant 0 : index
    %c0_200 = arith.constant 0 : index
    %c0_201 = arith.constant 0 : index
    %533 = vector.load %arg16[%c0_199, %c0_200, %c0_201] : memref<1x16x32xf32, #tpu.memory_space<vmem>>, vector<1x16x32xf32>
    %534 = vector.shape_cast %533 : vector<1x16x32xf32> to vector<16x32xf32>
    %535 = vector.shape_cast %532 : vector<16x32xf32> to vector<1x16x32xf32>
    tpu.vector_store %arg16[%c0_199, %c0_200, %c0_201], %535 {strides = array<i32>} : memref<1x16x32xf32, #tpu.memory_space<vmem>>, vector<1x16x32xf32>,
    return
  }
  func.func @transform_0(%arg0: i32) -> (i32, i32, i32) {
    %c0_i32 = arith.constant 0 : i32
    %c0_i32_0 = arith.constant 0 : i32
    %c0_i32_1 = arith.constant 0 : i32
    return %arg0, %c0_i32, %c0_i32_0 : i32, i32, i32
  }
  func.func @transform_1(%arg0: i32) -> (i32, i32) {
    %c0_i32 = arith.constant 0 : i32
    %c0_i32_0 = arith.constant 0 : i32
    %c0_i32_1 = arith.constant 0 : i32
    return %c0_i32, %c0_i32_0 : i32, i32
  }
  func.func @transform_2(%arg0: i32) -> (i32, i32) {
    %c0_i32 = arith.constant 0 : i32
    %c0_i32_0 = arith.constant 0 : i32
    %c0_i32_1 = arith.constant 0 : i32
    return %c0_i32, %c0_i32_0 : i32, i32
  }
  func.func @transform_3(%arg0: i32) -> (i32, i32, i32) {
    %c0_i32 = arith.constant 0 : i32
    %c0_i32_0 = arith.constant 0 : i32
    %c0_i32_1 = arith.constant 0 : i32
    %c0_i32_2 = arith.constant 0 : i32
    return %c0_i32, %c0_i32_0, %c0_i32_1 : i32, i32, i32
  }
  func.func @transform_4(%arg0: i32) -> (i32, i32, i32) {
    %c0_i32 = arith.constant 0 : i32
    %c0_i32_0 = arith.constant 0 : i32
    %c0_i32_1 = arith.constant 0 : i32
    %c0_i32_2 = arith.constant 0 : i32
    return %c0_i32, %c0_i32_0, %c0_i32_1 : i32, i32, i32
  }
  func.func @transform_5(%arg0: i32) -> (i32, i32, i32) {
    %c0_i32 = arith.constant 0 : i32
    %c0_i32_0 = arith.constant 0 : i32
    %c0_i32_1 = arith.constant 0 : i32
    %c0_i32_2 = arith.constant 0 : i32
    return %c0_i32, %c0_i32_0, %c0_i32_1 : i32, i32, i32
  }
  func.func @transform_6(%arg0: i32) -> (i32, i32, i32) {
    %c0_i32 = arith.constant 0 : i32
    %c0_i32_0 = arith.constant 0 : i32
    %c0_i32_1 = arith.constant 0 : i32
    %c0_i32_2 = arith.constant 0 : i32
    return %c0_i32, %c0_i32_0, %c0_i32_1 : i32, i32, i32
  }
  func.func @transform_7(%arg0: i32) -> (i32, i32, i32) {
    %c0_i32 = arith.constant 0 : i32
    %c0_i32_0 = arith.constant 0 : i32
    %c0_i32_1 = arith.constant 0 : i32
    %c0_i32_2 = arith.constant 0 : i32
    return %c0_i32, %c0_i32_0, %c0_i32_1 : i32, i32, i32
  }
  func.func @transform_8(%arg0: i32) -> (i32, i32, i32) {
    %c0_i32 = arith.constant 0 : i32
    %c0_i32_0 = arith.constant 0 : i32
    %c0_i32_1 = arith.constant 0 : i32
    %c0_i32_2 = arith.constant 0 : i32
    return %c0_i32, %c0_i32_0, %c0_i32_1 : i32, i32, i32
  }
  func.func @transform_9(%arg0: i32) -> (i32, i32, i32) {
    %c0_i32 = arith.constant 0 : i32
    %c0_i32_0 = arith.constant 0 : i32
    %c0_i32_1 = arith.constant 0 : i32
    %c0_i32_2 = arith.constant 0 : i32
    return %c0_i32, %c0_i32_0, %c0_i32_1 : i32, i32, i32
  }
  func.func @transform_10(%arg0: i32) -> (i32, i32, i32) {
    %c0_i32 = arith.constant 0 : i32
    %c0_i32_0 = arith.constant 0 : i32
    %c0_i32_1 = arith.constant 0 : i32
    %c0_i32_2 = arith.constant 0 : i32
    return %c0_i32, %c0_i32_0, %c0_i32_1 : i32, i32, i32
  }
  func.func @transform_11(%arg0: i32) -> (i32, i32, i32) {
    %c0_i32 = arith.constant 0 : i32
    %c0_i32_0 = arith.constant 0 : i32
    %c0_i32_1 = arith.constant 0 : i32
    %c0_i32_2 = arith.constant 0 : i32
    return %c0_i32, %c0_i32_0, %c0_i32_1 : i32, i32, i32
  }
  func.func @transform_12(%arg0: i32) -> (i32, i32, i32) {
    %c0_i32 = arith.constant 0 : i32
    %c0_i32_0 = arith.constant 0 : i32
    %c0_i32_1 = arith.constant 0 : i32
    %c0_i32_2 = arith.constant 0 : i32
    return %c0_i32, %c0_i32_0, %c0_i32_1 : i32, i32, i32
  }
  func.func @transform_13(%arg0: i32) -> (i32, i32, i32) {
    %c0_i32 = arith.constant 0 : i32
    %c0_i32_0 = arith.constant 0 : i32
    %c0_i32_1 = arith.constant 0 : i32
    %c0_i32_2 = arith.constant 0 : i32
    return %c0_i32, %c0_i32_0, %c0_i32_1 : i32, i32, i32
  }
  func.func @transform_14(%arg0: i32) -> (i32, i32, i32) {
    %c0_i32 = arith.constant 0 : i32
    %c0_i32_0 = arith.constant 0 : i32
    %c0_i32_1 = arith.constant 0 : i32
    %c0_i32_2 = arith.constant 0 : i32
    return %c0_i32, %c0_i32_0, %c0_i32_1 : i32, i32, i32
  }
  func.func @transform_15(%arg0: i32) -> (i32, i32, i32) {
    %c0_i32 = arith.constant 0 : i32
    %c0_i32_0 = arith.constant 0 : i32
    %c0_i32_1 = arith.constant 0 : i32
    return %arg0, %c0_i32, %c0_i32_0 : i32, i32, i32
  }
}

</mosaic_0001>

<llo_original>
// kernel: tpu_custom_call.1
$region0: #{tpu_custom_call.1}
  #allocation0 [shape = 'u32[]', space=smem, size = 0x4, offset = 0x4, fixed_abs, tag = 'smem constant byte address 0x4 - core index']
  #allocation1 [shape = 'u32[72,128]{1,0:T(1,128)}', space=vmem, size = 0x9000, scoped, tag = 'internal scratch']
  %s0 = inlined_call_operand.vmem [shape: s32[2,16,1], index: 0, kind: input, shape index: {}]
  %s1 = inlined_call_operand.vmem [shape: f32[23,32], index: 1, kind: input, shape index: {}]
  %s2 = inlined_call_operand.vmem [shape: f32[8,32], index: 2, kind: input, shape index: {}]
  %s3 = inlined_call_operand.vmem [shape: f32[3,32,96], index: 3, kind: input, shape index: {}]
  %s4 = inlined_call_operand.vmem [shape: f32[3,1,96], index: 4, kind: input, shape index: {}]
  %s5 = inlined_call_operand.vmem [shape: f32[3,32,32], index: 5, kind: input, shape index: {}]
  %s6 = inlined_call_operand.hbm [shape: f32[3,1,32], index: 6, kind: input, shape index: {}]
  %s7 = inlined_call_operand.hbm [shape: f32[3,1,32], index: 7, kind: input, shape index: {}]
  %s8 = inlined_call_operand.vmem [shape: f32[3,1,32], index: 8, kind: input, shape index: {}]
  %s9 = inlined_call_operand.vmem [shape: f32[3,32,64], index: 9, kind: input, shape index: {}]
  %s10 = inlined_call_operand.vmem [shape: f32[3,1,64], index: 10, kind: input, shape index: {}]
  %s11 = inlined_call_operand.vmem [shape: f32[3,64,32], index: 11, kind: input, shape index: {}]
  %s12 = inlined_call_operand.vmem [shape: f32[3,1,32], index: 12, kind: input, shape index: {}]
  %s13 = inlined_call_operand.hbm [shape: f32[3,1,32], index: 13, kind: input, shape index: {}]
  %s14 = inlined_call_operand.hbm [shape: f32[3,1,32], index: 14, kind: input, shape index: {}]
  %s15 = inlined_call_operand.hbm [shape: f32[2,16,32], index: 15, kind: output, shape index: {}]
  %s16 = sld [smem:[#allocation0]]
  $region109: #{tpu_custom_call.1} parent=0
    _
  %s18 = ssub.s32 1, %s16
  %s19 = scalar_select 0, %s18, %s16
  $region1: #{tpu_custom_call.1} parent=0
    #allocation2 [shape = 'u8[1536]{0}', space=vmem, size = 0x800, scoped, tag = 'input window, operand 6, single buffered']
    #allocation3 [shape = 's32[2]{0}', space=sflag, size = 0x8, scoped, tag = 'scoped memory for tpu_custom_call.1']
    #allocation4 [shape = 's32[2]{0}', space=sflag, size = 0x8, scoped, tag = 'scoped memory for tpu_custom_call.1']
    #allocation5 [shape = 'u8[1536]{0}', space=vmem, size = 0x800, scoped, tag = 'input window, operand 7, single buffered']
    #allocation6 [shape = 's32[1]{0}', space=sflag, size = 0x4, scoped, tag = 'scoped memory for tpu_custom_call.1']
    #allocation7 [shape = 'u8[1536]{0}', space=vmem, size = 0x800, scoped, tag = 'input window, operand 13, single buffered']
    #allocation8 [shape = 'u8[1536]{0}', space=vmem, size = 0x800, scoped, tag = 'input window, operand 14, single buffered']
    #allocation9 [shape = 's32[1]{0}', space=sflag, size = 0x4, scoped, tag = 'scoped memory for tpu_custom_call.1']
    #allocation10 [shape = 'u8[16384]{0}', space=vmem, size = 0x4000, scoped, tag = 'output window, operand 0']
    %20 = vsyncpa [#allocation3], 0
    %21 = vsyncpa [#allocation6], 0
    %22 = vsyncpa [#allocation9], 0
    %23 = vsyncpa [#allocation4], 0
    %s24 = scalar_lea.sflag [#allocation4], 1
    %25 = vsyncpa %s24, 0
    loop: start=0, step=1, limit=4
    $region2: #{tpu_custom_call.1} parent=1 // loop_pre_header
      _
    $region3: #{tpu_custom_call.1} parent=1 // loop_header
      %s27 = sphi 0, %s31
      %p28 = scmp.ge.s32.totalorder %s27, 4
      %s37 = sphi 0, %s39
      %s40 = sphi 0, %s37
      %s41 = sphi 0, %s40
      %s57 = sphi 0, %s41
      %s61 = sphi 0, %s61
      %s63 = sphi 0, %s61
      %s64 = sphi 0, %s63
      %s78 = sphi 0, %s64
      %s82 = sphi 0, %s82
      %s84 = sphi 0, %s82
      %s85 = sphi 0, %s84
      %s99 = sphi 0, %s85
      %s103 = sphi 0, %s103
      %s105 = sphi 0, %s103
      %s106 = sphi 0, %s105
      %s120 = sphi 0, %s106
      %s124 = sphi 0, %s124
      %s126 = sphi 0, %s124
      %s127 = sphi 0, %s126
      %s141 = sphi 0, %s127
      %s145 = sphi 0, %s145
      %s147 = sphi 0, %s145
      %s148 = sphi 0, %s147
      %s162 = sphi 0, %s148
      %s166 = sphi 0, %s166
      %s168 = sphi 0, %s166
      %s169 = sphi 0, %s168
      %s183 = sphi 0, %s169
      %s187 = sphi 0, %s187
      %s189 = sphi 0, %s187
      %s190 = sphi 0, %s189
      %s204 = sphi 0, %s190
      %s208 = sphi 0, %s208
      %s210 = sphi 0, %s208
      %s211 = sphi 0, %s210
      %s225 = sphi 0, %s211
      %s229 = sphi 0, %s229
      %s231 = sphi 0, %s229
      %s232 = sphi 0, %s231
      %s246 = sphi 0, %s232
      %s250 = sphi 0, %s250
      %s252 = sphi 0, %s250
      %s253 = sphi 0, %s252
      %s267 = sphi 0, %s253
      %s271 = sphi 0, %s271
      %s273 = sphi 0, %s271
      %s274 = sphi 0, %s273
      %s288 = sphi 0, %s274
      %s292 = sphi 0, %s292
      %s294 = sphi 0, %s292
      %s295 = sphi 0, %s294
      %s309 = sphi 0, %s295
      %s313 = sphi 0, %s313
      %s315 = sphi 0, %s313
      %s316 = sphi 0, %s315
      %s330 = sphi 0, %s316
      %s334 = sphi 0, %s334
      %s336 = sphi 0, %s334
      %s337 = sphi 0, %s336
      %s351 = sphi 0, %s337
      %s357 = sphi 0, %s359
      %s360 = sphi 0, %s357
      %s361 = sphi 0, %s360
      %s377 = sphi 0, %s361
    $region4: #{tpu_custom_call.1} parent=1 // loop_header_branch
      %30 = sbr.rel (%p28) target = $region8
    $region5: #{tpu_custom_call.1} parent=1 // loop_body
      %s32 = ssub.s32 %s27, 1
      %s33 = ssub.s32 %s27, 2
      %s34 = sadd.s32 %s27, 1
      %s35 = ssub.s32 %s27, %s34
      %p36 = scmp.eq.s32.totalorder %s35, 0
      %s38 = sadd.s32 %s37, 1
      %s39 = scalar_select %p36, %s37, %s38
      %p42 = pneg %p36
      %p43 = scmp.eq.s32.totalorder %s27, 1
      %p44 = por %p42, %p43
      %p45 = scmp.ne.s32.totalorder %s37, %s40
      %p46 = scmp.eq.s32.totalorder %s27, 0
      %p47 = por %p45, %p46
      %p48 = scmp.ne.s32.totalorder %s37, %s40
      %p49 = scmp.eq.s32.totalorder %s32, 1
      %p50 = por %p48, %p49
      %p51 = scmp.ne.s32.totalorder %s40, %s41
      %p52 = scmp.eq.s32.totalorder %s32, 0
      %p53 = por %p51, %p52
      %p54 = scmp.ne.s32.totalorder %s40, %s41
      %p55 = scmp.eq.s32.totalorder %s33, 1
      %p56 = por %p54, %p55
      %p58 = scmp.ne.s32.totalorder %s41, %s57
      %p59 = scmp.eq.s32.totalorder %s33, 0
      %p60 = por %p58, %p59
      %s62 = sadd.s32 %s61, 1
      %p65 = scmp.eq.s32.totalorder %s27, 1
      %p66 = scmp.ne.s32.totalorder %s61, %s63
      %p67 = scmp.eq.s32.totalorder %s27, 0
      %p68 = por %p66, %p67
      %p69 = scmp.ne.s32.totalorder %s61, %s63
      %p70 = scmp.eq.s32.totalorder %s32, 1
      %p71 = por %p69, %p70
      %p72 = scmp.ne.s32.totalorder %s63, %s64
      %p73 = scmp.eq.s32.totalorder %s32, 0
      %p74 = por %p72, %p73
      %p75 = scmp.ne.s32.totalorder %s63, %s64
      %p76 = scmp.eq.s32.totalorder %s33, 1
      %p77 = por %p75, %p76
      %p79 = scmp.ne.s32.totalorder %s64, %s78
      %p80 = scmp.eq.s32.totalorder %s33, 0
      %p81 = por %p79, %p80
      %s83 = sadd.s32 %s82, 1
      %p86 = scmp.eq.s32.totalorder %s27, 1
      %p87 = scmp.ne.s32.totalorder %s82, %s84
      %p88 = scmp.eq.s32.totalorder %s27, 0
      %p89 = por %p87, %p88
      %p90 = scmp.ne.s32.totalorder %s82, %s84
      %p91 = scmp.eq.s32.totalorder %s32, 1
      %p92 = por %p90, %p91
      %p93 = scmp.ne.s32.totalorder %s84, %s85
      %p94 = scmp.eq.s32.totalorder %s32, 0
      %p95 = por %p93, %p94
      %p96 = scmp.ne.s32.totalorder %s84, %s85
      %p97 = scmp.eq.s32.totalorder %s33, 1
      %p98 = por %p96, %p97
      %p100 = scmp.ne.s32.totalorder %s85, %s99
      %p101 = scmp.eq.s32.totalorder %s33, 0
      %p102 = por %p100, %p101
      %s104 = sadd.s32 %s103, 1
      %p107 = scmp.eq.s32.totalorder %s27, 1
      %p108 = scmp.ne.s32.totalorder %s103, %s105
      %p109 = scmp.eq.s32.totalorder %s27, 0
      %p110 = por %p108, %p109
      %p111 = scmp.ne.s32.totalorder %s103, %s105
      %p112 = scmp.eq.s32.totalorder %s32, 1
      %p113 = por %p111, %p112
      %p114 = scmp.ne.s32.totalorder %s105, %s106
      %p115 = scmp.eq.s32.totalorder %s32, 0
      %p116 = por %p114, %p115
      %p117 = scmp.ne.s32.totalorder %s105, %s106
      %p118 = scmp.eq.s32.totalorder %s33, 1
      %p119 = por %p117, %p118
      %p121 = scmp.ne.s32.totalorder %s106, %s120
      %p122 = scmp.eq.s32.totalorder %s33, 0
      %p123 = por %p121, %p122
      %s125 = sadd.s32 %s124, 1
      %p128 = scmp.eq.s32.totalorder %s27, 1
      %p129 = scmp.ne.s32.totalorder %s124, %s126
      %p130 = scmp.eq.s32.totalorder %s27, 0
      %p131 = por %p129, %p130
      %p132 = scmp.ne.s32.totalorder %s124, %s126
      %p133 = scmp.eq.s32.totalorder %s32, 1
      %p134 = por %p132, %p133
      %p135 = scmp.ne.s32.totalorder %s126, %s127
      %p136 = scmp.eq.s32.totalorder %s32, 0
      %p137 = por %p135, %p136
      %p138 = scmp.ne.s32.totalorder %s126, %s127
      %p139 = scmp.eq.s32.totalorder %s33, 1
      %p140 = por %p138, %p139
      %p142 = scmp.ne.s32.totalorder %s127, %s141
      %p143 = scmp.eq.s32.totalorder %s33, 0
      %p144 = por %p142, %p143
      %s146 = sadd.s32 %s145, 1
      %p149 = scmp.eq.s32.totalorder %s27, 1
      %p150 = scmp.ne.s32.totalorder %s145, %s147
      %p151 = scmp.eq.s32.totalorder %s27, 0
      %p152 = por %p150, %p151
      %p153 = scmp.ne.s32.totalorder %s145, %s147
      %p154 = scmp.eq.s32.totalorder %s32, 1
      %p155 = por %p153, %p154
      %p156 = scmp.ne.s32.totalorder %s147, %s148
      %p157 = scmp.eq.s32.totalorder %s32, 0
      %p158 = por %p156, %p157
      %p159 = scmp.ne.s32.totalorder %s147, %s148
      %p160 = scmp.eq.s32.totalorder %s33, 1
      %p161 = por %p159, %p160
      %p163 = scmp.ne.s32.totalorder %s148, %s162
      %p164 = scmp.eq.s32.totalorder %s33, 0
      %p165 = por %p163, %p164
      %s167 = sadd.s32 %s166, 1
      %p170 = scmp.eq.s32.totalorder %s27, 1
      %p171 = scmp.ne.s32.totalorder %s166, %s168
      %p172 = scmp.eq.s32.totalorder %s27, 0
      %p173 = por %p171, %p172
      %p174 = scmp.ne.s32.totalorder %s166, %s168
      %p175 = scmp.eq.s32.totalorder %s32, 1
      %p176 = por %p174, %p175
      %p177 = scmp.ne.s32.totalorder %s168, %s169
      %p178 = scmp.eq.s32.totalorder %s32, 0
      %p179 = por %p177, %p178
      %p180 = scmp.ne.s32.totalorder %s168, %s169
      %p181 = scmp.eq.s32.totalorder %s33, 1
      %p182 = por %p180, %p181
      %p184 = scmp.ne.s32.totalorder %s169, %s183
      %p185 = scmp.eq.s32.totalorder %s33, 0
      %p186 = por %p184, %p185
      %s188 = sadd.s32 %s187, 1
      %p191 = scmp.eq.s32.totalorder %s27, 1
      %p192 = scmp.ne.s32.totalorder %s187, %s189
      %p193 = scmp.eq.s32.totalorder %s27, 0
      %p194 = por %p192, %p193
      %p195 = scmp.ne.s32.totalorder %s187, %s189
      %p196 = scmp.eq.s32.totalorder %s32, 1
      %p197 = por %p195, %p196
      %p198 = scmp.ne.s32.totalorder %s189, %s190
      %p199 = scmp.eq.s32.totalorder %s32, 0
      %p200 = por %p198, %p199
      %p201 = scmp.ne.s32.totalorder %s189, %s190
      %p202 = scmp.eq.s32.totalorder %s33, 1
      %p203 = por %p201, %p202
      %p205 = scmp.ne.s32.totalorder %s190, %s204
      %p206 = scmp.eq.s32.totalorder %s33, 0
      %p207 = por %p205, %p206
      %s209 = sadd.s32 %s208, 1
      %p212 = scmp.eq.s32.totalorder %s27, 1
      %p213 = scmp.ne.s32.totalorder %s208, %s210
      %p214 = scmp.eq.s32.totalorder %s27, 0
      %p215 = por %p213, %p214
      %p216 = scmp.ne.s32.totalorder %s208, %s210
      %p217 = scmp.eq.s32.totalorder %s32, 1
      %p218 = por %p216, %p217
      %p219 = scmp.ne.s32.totalorder %s210, %s211
      %p220 = scmp.eq.s32.totalorder %s32, 0
      %p221 = por %p219, %p220
      %p222 = scmp.ne.s32.totalorder %s210, %s211
      %p223 = scmp.eq.s32.totalorder %s33, 1
      %p224 = por %p222, %p223
      %p226 = scmp.ne.s32.totalorder %s211, %s225
      %p227 = scmp.eq.s32.totalorder %s33, 0
      %p228 = por %p226, %p227
      %s230 = sadd.s32 %s229, 1
      %p233 = scmp.eq.s32.totalorder %s27, 1
      %p234 = scmp.ne.s32.totalorder %s229, %s231
      %p235 = scmp.eq.s32.totalorder %s27, 0
      %p236 = por %p234, %p235
      %p237 = scmp.ne.s32.totalorder %s229, %s231
      %p238 = scmp.eq.s32.totalorder %s32, 1
      %p239 = por %p237, %p238
      %p240 = scmp.ne.s32.totalorder %s231, %s232
      %p241 = scmp.eq.s32.totalorder %s32, 0
      %p242 = por %p240, %p241
      %p243 = scmp.ne.s32.totalorder %s231, %s232
      %p244 = scmp.eq.s32.totalorder %s33, 1
      %p245 = por %p243, %p244
      %p247 = scmp.ne.s32.totalorder %s232, %s246
      %p248 = scmp.eq.s32.totalorder %s33, 0
      %p249 = por %p247, %p248
      %s251 = sadd.s32 %s250, 1
      %p254 = scmp.eq.s32.totalorder %s27, 1
      %p255 = scmp.ne.s32.totalorder %s250, %s252
      %p256 = scmp.eq.s32.totalorder %s27, 0
      %p257 = por %p255, %p256
      %p258 = scmp.ne.s32.totalorder %s250, %s252
      %p259 = scmp.eq.s32.totalorder %s32, 1
      %p260 = por %p258, %p259
      %p261 = scmp.ne.s32.totalorder %s252, %s253
      %p262 = scmp.eq.s32.totalorder %s32, 0
      %p263 = por %p261, %p262
      %p264 = scmp.ne.s32.totalorder %s252, %s253
      %p265 = scmp.eq.s32.totalorder %s33, 1
      %p266 = por %p264, %p265
      %p268 = scmp.ne.s32.totalorder %s253, %s267
      %p269 = scmp.eq.s32.totalorder %s33, 0
      %p270 = por %p268, %p269
      %s272 = sadd.s32 %s271, 1
      %p275 = scmp.eq.s32.totalorder %s27, 1
      %p276 = scmp.ne.s32.totalorder %s271, %s273
      %p277 = scmp.eq.s32.totalorder %s27, 0
      %p278 = por %p276, %p277
      %p279 = scmp.ne.s32.totalorder %s271, %s273
      %p280 = scmp.eq.s32.totalorder %s32, 1
      %p281 = por %p279, %p280
      %p282 = scmp.ne.s32.totalorder %s273, %s274
      %p283 = scmp.eq.s32.totalorder %s32, 0
      %p284 = por %p282, %p283
      %p285 = scmp.ne.s32.totalorder %s273, %s274
      %p286 = scmp.eq.s32.totalorder %s33, 1
      %p287 = por %p285, %p286
      %p289 = scmp.ne.s32.totalorder %s274, %s288
      %p290 = scmp.eq.s32.totalorder %s33, 0
      %p291 = por %p289, %p290
      %s293 = sadd.s32 %s292, 1
      %p296 = scmp.eq.s32.totalorder %s27, 1
      %p297 = scmp.ne.s32.totalorder %s292, %s294
      %p298 = scmp.eq.s32.totalorder %s27, 0
      %p299 = por %p297, %p298
      %p300 = scmp.ne.s32.totalorder %s292, %s294
      %p301 = scmp.eq.s32.totalorder %s32, 1
      %p302 = por %p300, %p301
      %p303 = scmp.ne.s32.totalorder %s294, %s295
      %p304 = scmp.eq.s32.totalorder %s32, 0
      %p305 = por %p303, %p304
      %p306 = scmp.ne.s32.totalorder %s294, %s295
      %p307 = scmp.eq.s32.totalorder %s33, 1
      %p308 = por %p306, %p307
      %p310 = scmp.ne.s32.totalorder %s295, %s309
      %p311 = scmp.eq.s32.totalorder %s33, 0
      %p312 = por %p310, %p311
      %s314 = sadd.s32 %s313, 1
      %p317 = scmp.eq.s32.totalorder %s27, 1
      %p318 = scmp.ne.s32.totalorder %s313, %s315
      %p319 = scmp.eq.s32.totalorder %s27, 0
      %p320 = por %p318, %p319
      %p321 = scmp.ne.s32.totalorder %s313, %s315
      %p322 = scmp.eq.s32.totalorder %s32, 1
      %p323 = por %p321, %p322
      %p324 = scmp.ne.s32.totalorder %s315, %s316
      %p325 = scmp.eq.s32.totalorder %s32, 0
      %p326 = por %p324, %p325
      %p327 = scmp.ne.s32.totalorder %s315, %s316
      %p328 = scmp.eq.s32.totalorder %s33, 1
      %p329 = por %p327, %p328
      %p331 = scmp.ne.s32.totalorder %s316, %s330
      %p332 = scmp.eq.s32.totalorder %s33, 0
      %p333 = por %p331, %p332
      %s335 = sadd.s32 %s334, 1
      %p338 = scmp.eq.s32.totalorder %s27, 1
      %p339 = scmp.ne.s32.totalorder %s334, %s336
      %p340 = scmp.eq.s32.totalorder %s27, 0
      %p341 = por %p339, %p340
      %p342 = scmp.ne.s32.totalorder %s334, %s336
      %p343 = scmp.eq.s32.totalorder %s32, 1
      %p344 = por %p342, %p343
      %p345 = scmp.ne.s32.totalorder %s336, %s337
      %p346 = scmp.eq.s32.totalorder %s32, 0
      %p347 = por %p345, %p346
      %p348 = scmp.ne.s32.totalorder %s336, %s337
      %p349 = scmp.eq.s32.totalorder %s33, 1
      %p350 = por %p348, %p349
      %p352 = scmp.ne.s32.totalorder %s337, %s351
      %p353 = scmp.eq.s32.totalorder %s33, 0
      %p354 = por %p352, %p353
      %s355 = ssub.s32 %s27, %s34
      %p356 = scmp.eq.s32.totalorder %s355, 0
      %s358 = sadd.s32 %s357, 1
      %s359 = scalar_select %p356, %s357, %s358
      %p362 = pneg %p356
      %p363 = scmp.eq.s32.totalorder %s27, 1
      %p364 = por %p362, %p363
      %p365 = scmp.ne.s32.totalorder %s357, %s360
      %p366 = scmp.eq.s32.totalorder %s27, 0
      %p367 = por %p365, %p366
      %p368 = scmp.ne.s32.totalorder %s357, %s360
      %p369 = scmp.eq.s32.totalorder %s32, 1
      %p370 = por %p368, %p369
      %p371 = scmp.ne.s32.totalorder %s360, %s361
      %p372 = scmp.eq.s32.totalorder %s32, 0
      %p373 = por %p371, %p372
      %p374 = scmp.ne.s32.totalorder %s360, %s361
      %p375 = scmp.eq.s32.totalorder %s33, 1
      %p376 = por %p374, %p375
      %p378 = scmp.ne.s32.totalorder %s361, %s377
      %p379 = scmp.eq.s32.totalorder %s33, 0
      %p380 = por %p378, %p379
      %p381 = scmp.le.s32.totalorder 1, %s27
      %p382 = scmp.lt.s32.totalorder %s27, 3
      %p383 = pnand %p381, %p382
      %p384 = pneg %p383
      // Predicated region
      $region9: #{tpu_custom_call.1} parent=5 // pred_check
        _
      $region10: #{tpu_custom_call.1} parent=5 // pred_check_branch
        %386 = sbr.rel (%p383) target = $region12
      $region11: #{tpu_custom_call.1} parent=5 // pred_region
        %s387 = ssub.s32 %s27, 1
        // Predicated region
        $region13: #{tpu_custom_call.1} parent=11 // pred_check
          %p388 = pneg %p74
        $region14: #{tpu_custom_call.1} parent=11 // pred_check_branch
          %390 = sbr.rel (%p388) target = $region16
        $region15: #{tpu_custom_call.1} parent=11 // pred_region
          _
        $region16: #{tpu_custom_call.1} parent=11 // pred_fallthru
          _
        // Predicated region
        $region17: #{tpu_custom_call.1} parent=11 // pred_check
          %p391 = pneg %p95
        $region18: #{tpu_custom_call.1} parent=11 // pred_check_branch
          %393 = sbr.rel (%p391) target = $region20
        $region19: #{tpu_custom_call.1} parent=11 // pred_region
          _
        $region20: #{tpu_custom_call.1} parent=11 // pred_fallthru
          _
        // Predicated region
        $region21: #{tpu_custom_call.1} parent=11 // pred_check
          %p394 = pneg %p116
        $region22: #{tpu_custom_call.1} parent=11 // pred_check_branch
          %396 = sbr.rel (%p394) target = $region24
        $region23: #{tpu_custom_call.1} parent=11 // pred_region
          _
        $region24: #{tpu_custom_call.1} parent=11 // pred_fallthru
          _
        // Predicated region
        $region25: #{tpu_custom_call.1} parent=11 // pred_check
          %p397 = pneg %p137
        $region26: #{tpu_custom_call.1} parent=11 // pred_check_branch
          %399 = sbr.rel (%p397) target = $region28
        $region27: #{tpu_custom_call.1} parent=11 // pred_region
          _
        $region28: #{tpu_custom_call.1} parent=11 // pred_fallthru
          _
        // Predicated region
        $region29: #{tpu_custom_call.1} parent=11 // pred_check
          %p400 = pneg %p158
        $region30: #{tpu_custom_call.1} parent=11 // pred_check_branch
          %402 = sbr.rel (%p400) target = $region32
        $region31: #{tpu_custom_call.1} parent=11 // pred_region
          _
        $region32: #{tpu_custom_call.1} parent=11 // pred_fallthru
          _
        // Predicated region
        $region33: #{tpu_custom_call.1} parent=11 // pred_check
          %p403 = pneg %p179
        $region34: #{tpu_custom_call.1} parent=11 // pred_check_branch
          %405 = sbr.rel (%p403) target = $region36
        $region35: #{tpu_custom_call.1} parent=11 // pred_region
          %407 = vsyncadd [#allocation3], 0
          %s408 = sshll.u32 %s6, 4
          %s409 = int_to_ptr.hbm [resolvable:$true] %s408
          %s410 = sshll.u32 [#allocation2], 4
          %s411 = int_to_ptr.vmem [resolvable:$true] %s410
          %416 = dma.hbm_to_vmem [thread:$0]  %s409, 48, %s411, [#allocation3], 16, 16, 1
        $region36: #{tpu_custom_call.1} parent=11 // pred_fallthru
          _
        // Predicated region
        $region37: #{tpu_custom_call.1} parent=11 // pred_check
          %p417 = pneg %p200
        $region38: #{tpu_custom_call.1} parent=11 // pred_check_branch
          %419 = sbr.rel (%p417) target = $region40
        $region39: #{tpu_custom_call.1} parent=11 // pred_region
          %421 = vsyncadd [#allocation6], 0
          %s422 = sshll.u32 %s7, 4
          %s423 = int_to_ptr.hbm [resolvable:$true] %s422
          %s424 = sshll.u32 [#allocation5], 4
          %s425 = int_to_ptr.vmem [resolvable:$true] %s424
          %430 = dma.hbm_to_vmem [thread:$0]  %s423, 48, %s425, [#allocation6], 16, 16, 1
        $region40: #{tpu_custom_call.1} parent=11 // pred_fallthru
          _
        // Predicated region
        $region41: #{tpu_custom_call.1} parent=11 // pred_check
          %p431 = pneg %p221
        $region42: #{tpu_custom_call.1} parent=11 // pred_check_branch
          %433 = sbr.rel (%p431) target = $region44
        $region43: #{tpu_custom_call.1} parent=11 // pred_region
          _
        $region44: #{tpu_custom_call.1} parent=11 // pred_fallthru
          _
        // Predicated region
        $region45: #{tpu_custom_call.1} parent=11 // pred_check
          %p434 = pneg %p242
        $region46: #{tpu_custom_call.1} parent=11 // pred_check_branch
          %436 = sbr.rel (%p434) target = $region48
        $region47: #{tpu_custom_call.1} parent=11 // pred_region
          _
        $region48: #{tpu_custom_call.1} parent=11 // pred_fallthru
          _
        // Predicated region
        $region49: #{tpu_custom_call.1} parent=11 // pred_check
          %p437 = pneg %p263
        $region50: #{tpu_custom_call.1} parent=11 // pred_check_branch
          %439 = sbr.rel (%p437) target = $region52
        $region51: #{tpu_custom_call.1} parent=11 // pred_region
          _
        $region52: #{tpu_custom_call.1} parent=11 // pred_fallthru
          _
        // Predicated region
        $region53: #{tpu_custom_call.1} parent=11 // pred_check
          %p440 = pneg %p284
        $region54: #{tpu_custom_call.1} parent=11 // pred_check_branch
          %442 = sbr.rel (%p440) target = $region56
        $region55: #{tpu_custom_call.1} parent=11 // pred_region
          _
        $region56: #{tpu_custom_call.1} parent=11 // pred_fallthru
          _
        // Predicated region
        $region57: #{tpu_custom_call.1} parent=11 // pred_check
          %p443 = pneg %p305
        $region58: #{tpu_custom_call.1} parent=11 // pred_check_branch
          %445 = sbr.rel (%p443) target = $region60
        $region59: #{tpu_custom_call.1} parent=11 // pred_region
          _
        $region60: #{tpu_custom_call.1} parent=11 // pred_fallthru
          _
        // Predicated region
        $region61: #{tpu_custom_call.1} parent=11 // pred_check
          %p446 = pneg %p326
        $region62: #{tpu_custom_call.1} parent=11 // pred_check_branch
          %448 = sbr.rel (%p446) target = $region64
        $region63: #{tpu_custom_call.1} parent=11 // pred_region
          %450 = vsyncadd [#allocation6], 0
          %s451 = sshll.u32 %s13, 4
          %s452 = int_to_ptr.hbm [resolvable:$true] %s451
          %s453 = sshll.u32 [#allocation7], 4
          %s454 = int_to_ptr.vmem [resolvable:$true] %s453
          %459 = dma.hbm_to_vmem [thread:$0]  %s452, 48, %s454, [#allocation6], 16, 16, 1
        $region64: #{tpu_custom_call.1} parent=11 // pred_fallthru
          _
        // Predicated region
        $region65: #{tpu_custom_call.1} parent=11 // pred_check
          %p460 = pneg %p347
        $region66: #{tpu_custom_call.1} parent=11 // pred_check_branch
          %462 = sbr.rel (%p460) target = $region68
        $region67: #{tpu_custom_call.1} parent=11 // pred_region
          %464 = vsyncadd [#allocation9], 0
          %s465 = sshll.u32 %s14, 4
          %s466 = int_to_ptr.hbm [resolvable:$true] %s465
          %s467 = sshll.u32 [#allocation8], 4
          %s468 = int_to_ptr.vmem [resolvable:$true] %s467
          %473 = dma.hbm_to_vmem [thread:$0]  %s466, 48, %s468, [#allocation9], 16, 16, 1
        $region68: #{tpu_custom_call.1} parent=11 // pred_fallthru
          _
      $region12: #{tpu_custom_call.1} parent=5 // pred_fallthru
        _
      %p474 = scmp.lt.s32.totalorder %s27, 2
      // Predicated region
      $region69: #{tpu_custom_call.1} parent=5 // pred_check
        %p475 = pneg %p474
      $region70: #{tpu_custom_call.1} parent=5 // pred_check_branch
        %477 = sbr.rel (%p475) target = $region72
      $region71: #{tpu_custom_call.1} parent=5 // pred_region
        // Predicated region
        $region73: #{tpu_custom_call.1} parent=71 // pred_check
          %p478 = pneg %p47
        $region74: #{tpu_custom_call.1} parent=71 // pred_check_branch
          %480 = sbr.rel (%p478) target = $region76
        $region75: #{tpu_custom_call.1} parent=71 // pred_region
          %p481 = scmp.lt.s32.totalorder %s27, 1
          %s482 = scalar_select %p481, %s27, 1
          %s483 = smul.addr %s482, 2
          %s484 = smul.addr %s483, 8
          %s485 = scalar_lea.vmem %s0, %s484
        $region76: #{tpu_custom_call.1} parent=71 // pred_fallthru
          _
      $region72: #{tpu_custom_call.1} parent=5 // pred_fallthru
        _
      %p486 = scmp.le.s32.totalorder 1, %s27
      %p487 = scmp.lt.s32.totalorder %s27, 3
      %p488 = pnand %p486, %p487
      %p489 = pneg %p488
      // Predicated region
      $region77: #{tpu_custom_call.1} parent=5 // pred_check
        _
      $region78: #{tpu_custom_call.1} parent=5 // pred_check_branch
        %491 = sbr.rel (%p488) target = $region80
      $region79: #{tpu_custom_call.1} parent=5 // pred_region
        %s492 = ssub.s32 %s27, 1
        // Predicated region
        $region81: #{tpu_custom_call.1} parent=79 // pred_check
          %p493 = pneg %p179
        $region82: #{tpu_custom_call.1} parent=79 // pred_check_branch
          %495 = sbr.rel (%p493) target = $region84
        $region83: #{tpu_custom_call.1} parent=79 // pred_region
          %497 = dma.done [#allocation3], 48
        $region84: #{tpu_custom_call.1} parent=79 // pred_fallthru
          _
        // Predicated region
        $region85: #{tpu_custom_call.1} parent=79 // pred_check
          %p498 = pneg %p200
        $region86: #{tpu_custom_call.1} parent=79 // pred_check_branch
          %500 = sbr.rel (%p498) target = $region88
        $region87: #{tpu_custom_call.1} parent=79 // pred_region
          %502 = dma.done [#allocation6], 48
        $region88: #{tpu_custom_call.1} parent=79 // pred_fallthru
          _
        // Predicated region
        $region89: #{tpu_custom_call.1} parent=79 // pred_check
          %p503 = pneg %p326
        $region90: #{tpu_custom_call.1} parent=79 // pred_check_branch
          %505 = sbr.rel (%p503) target = $region92
        $region91: #{tpu_custom_call.1} parent=79 // pred_region
          %507 = dma.done [#allocation6], 48
        $region92: #{tpu_custom_call.1} parent=79 // pred_fallthru
          _
        // Predicated region
        $region93: #{tpu_custom_call.1} parent=79 // pred_check
          %p508 = pneg %p347
        $region94: #{tpu_custom_call.1} parent=79 // pred_check_branch
          %510 = sbr.rel (%p508) target = $region96
        $region95: #{tpu_custom_call.1} parent=79 // pred_region
          %512 = dma.done [#allocation9], 48
        $region96: #{tpu_custom_call.1} parent=79 // pred_fallthru
          _
        %p513 = scmp.lt.s32.totalorder %s32, 1
        %s514 = scalar_select %p513, %s32, 1
        %s515 = smul.addr %s514, 2
        %s516 = smul.addr %s515, 8
        %s517 = scalar_lea.vmem %s0, %s516
        %p518 = pneg %p53
        %p519 = pneg %p50
        %p520 = pneg %p74
        %p521 = pneg %p71
        %p522 = pneg %p95
        %p523 = pneg %p92
        %p524 = pneg %p116
        %p525 = pneg %p113
        %p526 = pneg %p137
        %p527 = pneg %p134
        %p528 = pneg %p158
        %p529 = pneg %p155
        %p530 = pneg %p179
        %p531 = pneg %p176
        %p532 = pneg %p200
        %p533 = pneg %p197
        %p534 = pneg %p221
        %p535 = pneg %p218
        %p536 = pneg %p242
        %p537 = pneg %p239
        %p538 = pneg %p263
        %p539 = pneg %p260
        %p540 = pneg %p284
        %p541 = pneg %p281
        %p542 = pneg %p305
        %p543 = pneg %p302
        %p544 = pneg %p326
        %p545 = pneg %p323
        %p546 = pneg %p347
        %p547 = pneg %p344
        %p548 = pneg %p373
        %p549 = pneg %p370
        %s550 = sand.u32 %s360, 1
        %s551 = scalar_lea.sflag [#allocation4], %s550
        %s552 = sand.u32 %s360, 1
        %s553 = smul.addr %s552, 16
        %s554 = scalar_lea.vmem [#allocation10], %s553
        %p555 = scmp.lt.s32.totalorder %s32, 1
        %s556 = scalar_select %p555, %s32, 1
        %s557 = smul.addr %s556, 2
        %s558 = smul.addr %s557, 8
        %s559 = scalar_lea.vmem %s0, %s558
        %v560 = vld [vmem:[%s559] sm:$0xff]
        %v561 = vld [vmem:[%s559 + $0x8] sm:$0xff]
        %v562 = vlaneseq
        %v563 = vand.u32 %v562, 127
        %564 = vset.pattern.permute.xlu0 0
        %565 = vperm.xlu0 %564, %v560
        %v566 = vpop.permute.xlu0 %565
        %567 = vset.pattern.permute.xlu0 0
        %568 = vperm.xlu0 %567, %v561
        %v569 = vpop.permute.xlu0 %568
        %vm570 = vcmp.eq.s32.totalorder %v563, %v566
        %vm571 = vcmp.eq.s32.totalorder %v563, %v569
        %v572 = vsel %vm570, 1, 0
        %v573 = vsel %vm571, 1, 0
        %v574 = vcvt.s32.f32 %v572
        %v575 = vcvt.s32.f32 %v573
        %v576 = vld [vmem:[%s1] sm:$0xff]
        %v577 = vld [vmem:[%s1 + $0x8] sm:$0xff]
        %v578 = vld [vmem:[%s1 + $0x10] sm:$0x7f]
        %vm579 = vcmask 187392
        %v581 = vsel %vm579, %v574, 0
        %v584 = vsel %vm579, %v575, 0
        %vm586 = vcmask 1046528
        %v588 = vsel %vm586, %v578, 0
        %590 = vmatpush.msra.mxu0 0.0
        %591 = vmatpush.msra.mxu0 0.0
        %592 = vmatpush.msra.mxu0 0.0
        %593 = vmatpush.msra.mxu0 0.0
        %594 = vmatpush.msra.mxu0 0.0
        %595 = vmatpush.msra.mxu0 0.0
        %596 = vmatpush.msra.mxu0 0.0
        %597 = vmatpush.msra.mxu0 0.0
        %598 = vmatpush.msra.mxu0 0.0
        %599 = vmatpush.msra.mxu0 0.0
        %600 = vmatpush.msra.mxu0 0.0
        %601 = vmatpush.msra.mxu0 0.0
        %602 = vmatpush.msra.mxu0 0.0
        %603 = vmatpush.msra.mxu0 %v588
        %604 = vmatpush.msra.mxu0 %v577
        %605 = vmatpush.msra.mxu0 %v576
        %606 = vmatmul.f32.gmra.mxu0 %v581
        %v607 = vpop.f32.mrf.mxu0
        %v608 = vadd.f32 0.0, %v607
        %609 = vmatmul.f32.gmra.mxu0 %v584
        %v610 = vpop.f32.mrf.mxu0
        %v611 = vadd.f32 0.0, %v610
        %612 = vdwg.mxu0
        %v613 = vlaneseq
        %v614 = vshrl.u32 %v613, 7
        %v615 = vadd.s32 %v614, 8
        %v616 = vsub.s32 %v563, %v614
        %v617 = vsub.s32 %v563, %v615
        %v618 = vadd.s32 %v616, 7
        %v619 = vadd.s32 %v617, 7
        %vm620 = vcmp.ge.s32.totalorder %v618, 0
        %vm621 = vcmp.ge.s32.totalorder %v619, 0
        %vm622 = vcmp.lt.s32.totalorder %v618, 8
        %vm623 = vcmp.lt.s32.totalorder %v619, 8
        %vm624 = vmand %vm620, %vm622
        %vm625 = vmand %vm621, %vm623
        %v626 = vld [vmem:[%s2] sm:$0xff]
        %v627 = vld [vmem:[%s3] sm:$0xff]
        %v628 = vld [vmem:[%s3 + $0x8] sm:$0xff]
        %v629 = vld [vmem:[%s3 + $0x10] sm:$0xff]
        %v630 = vld [vmem:[%s3 + $0x18] sm:$0xff]
        %v631 = vld [vmem:[%s4] sm:$0x1]
        %v633 = vperm.slane %v631, 0
        %vm635 = vcmask 261120
        %v637 = vsel %vm635, %v608, 0
        %v640 = vsel %vm635, %v611, 0
        %642 = vmatpush.msra.mxu0 0.0
        %643 = vmatpush.msra.mxu0 0.0
        %644 = vmatpush.msra.mxu0 0.0
        %645 = vmatpush.msra.mxu0 0.0
        %646 = vmatpush.msra.mxu0 0.0
        %647 = vmatpush.msra.mxu0 0.0
        %648 = vmatpush.msra.mxu0 0.0
        %649 = vmatpush.msra.mxu0 0.0
        %650 = vmatpush.msra.mxu0 0.0
        %651 = vmatpush.msra.mxu0 0.0
        %652 = vmatpush.msra.mxu0 0.0
        %653 = vmatpush.msra.mxu0 0.0
        %654 = vmatpush.msra.mxu0 %v630
        %655 = vmatpush.msra.mxu0 %v629
        %656 = vmatpush.msra.mxu0 %v628
        %657 = vmatpush.msra.mxu0 %v627
        %658 = vmatmul.f32.gmra.mxu0 %v637
        %v659 = vpop.f32.mrf.mxu0
        %v660 = vadd.f32 %v633, %v659
        %661 = vmatmul.f32.gmra.mxu0 %v640
        %v662 = vpop.f32.mrf.mxu0
        %v663 = vadd.f32 %v633, %v662
        %664 = vdwg.mxu0
        %667 = vrot.lane.b32.xlu0 %v660, 96
        %v668 = vpop.permute.xlu0 %667
        %669 = vrot.lane.b32.xlu0 %v663, 96
        %v670 = vpop.permute.xlu0 %669
        %v671 = vsel %vm635, %v660, 0
        %v673 = vsel %vm635, %v663, 0
        %v675 = vsel %vm635, %v668, 0
        %v677 = vsel %vm635, %v670, 0
        %679 = vmatpush.xpose.msra.mxu0 0.0
        %680 = vmatpush.xpose.msra.mxu0 0.0
        %681 = vmatpush.xpose.msra.mxu0 0.0
        %682 = vmatpush.xpose.msra.mxu0 0.0
        %683 = vmatpush.xpose.msra.mxu0 0.0
        %684 = vmatpush.xpose.msra.mxu0 0.0
        %685 = vmatpush.xpose.msra.mxu0 0.0
        %686 = vmatpush.xpose.msra.mxu0 0.0
        %687 = vmatpush.xpose.msra.mxu0 0.0
        %688 = vmatpush.xpose.msra.mxu0 0.0
        %689 = vmatpush.xpose.msra.mxu0 0.0
        %690 = vmatpush.xpose.msra.mxu0 0.0
        %691 = vmatpush.xpose.msra.mxu0 0.0
        %692 = vmatpush.xpose.msra.mxu0 0.0
        %693 = vmatpush.xpose.msra.mxu0 %v677
        %694 = vmatpush.xpose.msra.mxu0 %v675
        %695 = vmatmul.f32.gmra.mxu0 %v671
        %v696 = vpop.f32.mrf.mxu0
        %v697 = vadd.f32 0.0, %v696
        %698 = vmatmul.f32.gmra.mxu0 %v673
        %v699 = vpop.f32.mrf.mxu0
        %v700 = vadd.f32 0.0, %v699
        %701 = vdwg.mxu0
        %v703 = vsel %vm635, %v626, 0
        %705 = vmatpush.xpose.msra.mxu0 0.0
        %706 = vmatpush.xpose.msra.mxu0 0.0
        %707 = vmatpush.xpose.msra.mxu0 0.0
        %708 = vmatpush.xpose.msra.mxu0 0.0
        %709 = vmatpush.xpose.msra.mxu0 0.0
        %710 = vmatpush.xpose.msra.mxu0 0.0
        %711 = vmatpush.xpose.msra.mxu0 0.0
        %712 = vmatpush.xpose.msra.mxu0 0.0
        %713 = vmatpush.xpose.msra.mxu0 0.0
        %714 = vmatpush.xpose.msra.mxu0 0.0
        %715 = vmatpush.xpose.msra.mxu0 0.0
        %716 = vmatpush.xpose.msra.mxu0 0.0
        %717 = vmatpush.xpose.msra.mxu0 0.0
        %718 = vmatpush.xpose.msra.mxu0 0.0
        %719 = vmatpush.xpose.msra.mxu0 0.0
        %720 = vmatpush.xpose.msra.mxu0 %v703
        %721 = vmatmul.f32.gmra.mxu0 %v671
        %v722 = vpop.f32.mrf.mxu0
        %v723 = vadd.f32 0.0, %v722
        %724 = vmatmul.f32.gmra.mxu0 %v673
        %v725 = vpop.f32.mrf.mxu0
        %v726 = vadd.f32 0.0, %v725
        %727 = vdwg.mxu0
        %vm728 = vcmp.eq.s32.totalorder %v618, 0
        %vm729 = vcmp.eq.s32.totalorder %v619, 0
        %v730 = vsel %vm728, 1, 0
        %v731 = vsel %vm729, 1, 0
        %v732 = vcvt.s32.f32 %v730
        %v733 = vcvt.s32.f32 %v731
        %735 = vset.pattern.permute.xlu0 0
        %736 = vperm.xlu0 %735, %v723
        %v737 = vpop.permute.xlu0 %736
        %740 = vset.pattern.permute.xlu0 0
        %741 = vperm.xlu0 %740, %v726
        %v742 = vpop.permute.xlu0 %741
        %v744 = vmul.f32 %v732, %v737
        %v745 = vmul.f32 %v733, %v742
        %v746 = vadd.f32 %v744, 0.0
        %v747 = vadd.f32 %v745, 0.0
        %vm748 = vcmp.eq.s32.totalorder %v618, 1
        %vm749 = vcmp.eq.s32.totalorder %v619, 1
        %v750 = vsel %vm748, 1, 0
        %v751 = vsel %vm749, 1, 0
        %v752 = vcvt.s32.f32 %v750
        %v753 = vcvt.s32.f32 %v751
        %754 = vset.pattern.permute.xlu0 1
        %755 = vperm.xlu0 %754, %v723
        %v756 = vpop.permute.xlu0 %755
        %758 = vset.pattern.permute.xlu0 1
        %759 = vperm.xlu0 %758, %v726
        %v760 = vpop.permute.xlu0 %759
        %v762 = vmul.f32 %v752, %v756
        %v763 = vmul.f32 %v753, %v760
        %v764 = vadd.f32 %v746, %v762
        %v765 = vadd.f32 %v747, %v763
        %vm766 = vcmp.eq.s32.totalorder %v618, 2
        %vm767 = vcmp.eq.s32.totalorder %v619, 2
        %v768 = vsel %vm766, 1, 0
        %v769 = vsel %vm767, 1, 0
        %v770 = vcvt.s32.f32 %v768
        %v771 = vcvt.s32.f32 %v769
        %772 = vset.pattern.permute.xlu0 2
        %773 = vperm.xlu0 %772, %v723
        %v774 = vpop.permute.xlu0 %773
        %776 = vset.pattern.permute.xlu0 2
        %777 = vperm.xlu0 %776, %v726
        %v778 = vpop.permute.xlu0 %777
        %v780 = vmul.f32 %v770, %v774
        %v781 = vmul.f32 %v771, %v778
        %v782 = vadd.f32 %v764, %v780
        %v783 = vadd.f32 %v765, %v781
        %vm784 = vcmp.eq.s32.totalorder %v618, 3
        %vm785 = vcmp.eq.s32.totalorder %v619, 3
        %v786 = vsel %vm784, 1, 0
        %v787 = vsel %vm785, 1, 0
        %v788 = vcvt.s32.f32 %v786
        %v789 = vcvt.s32.f32 %v787
        %790 = vset.pattern.permute.xlu0 3
        %791 = vperm.xlu0 %790, %v723
        %v792 = vpop.permute.xlu0 %791
        %794 = vset.pattern.permute.xlu0 3
        %795 = vperm.xlu0 %794, %v726
        %v796 = vpop.permute.xlu0 %795
        %v798 = vmul.f32 %v788, %v792
        %v799 = vmul.f32 %v789, %v796
        %v800 = vadd.f32 %v782, %v798
        %v801 = vadd.f32 %v783, %v799
        %vm802 = vcmp.eq.s32.totalorder %v618, 4
        %vm803 = vcmp.eq.s32.totalorder %v619, 4
        %v804 = vsel %vm802, 1, 0
        %v805 = vsel %vm803, 1, 0
        %v806 = vcvt.s32.f32 %v804
        %v807 = vcvt.s32.f32 %v805
        %808 = vset.pattern.permute.xlu0 4
        %809 = vperm.xlu0 %808, %v723
        %v810 = vpop.permute.xlu0 %809
        %812 = vset.pattern.permute.xlu0 4
        %813 = vperm.xlu0 %812, %v726
        %v814 = vpop.permute.xlu0 %813
        %v816 = vmul.f32 %v806, %v810
        %v817 = vmul.f32 %v807, %v814
        %v818 = vadd.f32 %v800, %v816
        %v819 = vadd.f32 %v801, %v817
        %vm820 = vcmp.eq.s32.totalorder %v618, 5
        %vm821 = vcmp.eq.s32.totalorder %v619, 5
        %v822 = vsel %vm820, 1, 0
        %v823 = vsel %vm821, 1, 0
        %v824 = vcvt.s32.f32 %v822
        %v825 = vcvt.s32.f32 %v823
        %826 = vset.pattern.permute.xlu0 5
        %827 = vperm.xlu0 %826, %v723
        %v828 = vpop.permute.xlu0 %827
        %830 = vset.pattern.permute.xlu0 5
        %831 = vperm.xlu0 %830, %v726
        %v832 = vpop.permute.xlu0 %831
        %v834 = vmul.f32 %v824, %v828
        %v835 = vmul.f32 %v825, %v832
        %v836 = vadd.f32 %v818, %v834
        %v837 = vadd.f32 %v819, %v835
        %vm838 = vcmp.eq.s32.totalorder %v618, 6
        %vm839 = vcmp.eq.s32.totalorder %v619, 6
        %v840 = vsel %vm838, 1, 0
        %v841 = vsel %vm839, 1, 0
        %v842 = vcvt.s32.f32 %v840
        %v843 = vcvt.s32.f32 %v841
        %844 = vset.pattern.permute.xlu0 6
        %845 = vperm.xlu0 %844, %v723
        %v846 = vpop.permute.xlu0 %845
        %848 = vset.pattern.permute.xlu0 6
        %849 = vperm.xlu0 %848, %v726
        %v850 = vpop.permute.xlu0 %849
        %v852 = vmul.f32 %v842, %v846
        %v853 = vmul.f32 %v843, %v850
        %v854 = vadd.f32 %v836, %v852
        %v855 = vadd.f32 %v837, %v853
        %vm856 = vcmp.eq.s32.totalorder %v618, 7
        %vm857 = vcmp.eq.s32.totalorder %v619, 7
        %v858 = vsel %vm856, 1, 0
        %v859 = vsel %vm857, 1, 0
        %v860 = vcvt.s32.f32 %v858
        %v861 = vcvt.s32.f32 %v859
        %862 = vset.pattern.permute.xlu0 7
        %863 = vperm.xlu0 %862, %v723
        %v864 = vpop.permute.xlu0 %863
        %866 = vset.pattern.permute.xlu0 7
        %867 = vperm.xlu0 %866, %v726
        %v868 = vpop.permute.xlu0 %867
        %v870 = vmul.f32 %v860, %v864
        %v871 = vmul.f32 %v861, %v868
        %v872 = vadd.f32 %v854, %v870
        %v873 = vadd.f32 %v855, %v871
        %vm874 = vcmp.ne.f32.partialorder %v697, 0.0
        %vm875 = vcmp.ne.f32.partialorder %v700, 0.0
        %vm876 = vmand %vm624, %vm874
        %vm877 = vmand %vm625, %vm875
        %v878 = vadd.f32 %v697, %v872
        %v879 = vadd.f32 %v700, %v873
        %v880 = vsel %vm876, %v878, -1e+09
        %v881 = vsel %vm877, %v879, -1e+09
        %vm882 = vcmask 130048
        %v883 = vsel %vm882, %v880, -inf
        %884 = vmax.xlane.f32.xlu0 %v883
        %v885 = vpop.xlane.xlu0 %884
        %v886 = vsel %vm882, %v881, -inf
        %887 = vmax.xlane.f32.xlu0 %v886
        %v888 = vpop.xlane.xlu0 %887
        %v889 = vsub.f32 %v880, %v885
        %v890 = vsub.f32 %v881, %v888
        %v891 = vmul.f32 %v889, 1.442695
        %v892 = vpow.pop %v891
        %v893 = vmul.f32 %v890, 1.442695
        %v894 = vpow.pop %v893
        %v895 = vsel %vm882, %v892, 0.0
        %896 = vadd.xlane.f32.xlu0 %v895
        %v897 = vpop.xlane.xlu0 %896
        %v898 = vsel %vm882, %v894, 0.0
        %899 = vadd.xlane.f32.xlu0 %v898
        %v900 = vpop.xlane.xlu0 %899
        %v901 = vrcp.pop %v897
        %v902 = vrcp.pop %v900
        %v903 = vmul.f32 %v892, %v901
        %v904 = vmul.f32 %v894, %v902
        %905 = vrot.lane.b32.xlu0 %v660, 64
        %v906 = vpop.permute.xlu0 %905
        %907 = vrot.lane.b32.xlu0 %v663, 64
        %v908 = vpop.permute.xlu0 %907
        %v912 = vsel %vm882, %v903, 0
        %v915 = vsel %vm882, %v904, 0
        %917 = vmatpush.msra.mxu0 0.0
        %918 = vmatpush.msra.mxu0 0.0
        %919 = vmatpush.msra.mxu0 0.0
        %920 = vmatpush.msra.mxu0 0.0
        %921 = vmatpush.msra.mxu0 0.0
        %922 = vmatpush.msra.mxu0 0.0
        %923 = vmatpush.msra.mxu0 0.0
        %924 = vmatpush.msra.mxu0 0.0
        %925 = vmatpush.msra.mxu0 0.0
        %926 = vmatpush.msra.mxu0 0.0
        %927 = vmatpush.msra.mxu0 0.0
        %928 = vmatpush.msra.mxu0 0.0
        %929 = vmatpush.msra.mxu0 0.0
        %930 = vmatpush.msra.mxu0 0.0
        %931 = vmatpush.msra.mxu0 %v908
        %932 = vmatpush.msra.mxu0 %v906
        %933 = vmatmul.f32.gmra.mxu0 %v912
        %v934 = vpop.f32.mrf.mxu0
        %v935 = vadd.f32 0.0, %v934
        %936 = vmatmul.f32.gmra.mxu0 %v915
        %v937 = vpop.f32.mrf.mxu0
        %v938 = vadd.f32 0.0, %v937
        %939 = vdwg.mxu0
        %v940 = vld [vmem:[%s5] sm:$0xff]
        %v941 = vld [vmem:[%s5 + $0x8] sm:$0xff]
        %v942 = vld [vmem:[%s5 + $0x10] sm:$0xff]
        %v943 = vld [vmem:[%s5 + $0x18] sm:$0xff]
        %v944 = vld [vmem:[#allocation2] sm:$0x1]
        %v946 = vperm.slane %v944, 0
        %v949 = vsel %vm635, %v935, 0
        %v952 = vsel %vm635, %v938, 0
        %954 = vmatpush.msra.mxu0 0.0
        %955 = vmatpush.msra.mxu0 0.0
        %956 = vmatpush.msra.mxu0 0.0
        %957 = vmatpush.msra.mxu0 0.0
        %958 = vmatpush.msra.mxu0 0.0
        %959 = vmatpush.msra.mxu0 0.0
        %960 = vmatpush.msra.mxu0 0.0
        %961 = vmatpush.msra.mxu0 0.0
        %962 = vmatpush.msra.mxu0 0.0
        %963 = vmatpush.msra.mxu0 0.0
        %964 = vmatpush.msra.mxu0 0.0
        %965 = vmatpush.msra.mxu0 0.0
        %966 = vmatpush.msra.mxu0 %v943
        %967 = vmatpush.msra.mxu0 %v942
        %968 = vmatpush.msra.mxu0 %v941
        %969 = vmatpush.msra.mxu0 %v940
        %970 = vmatmul.f32.gmra.mxu0 %v949
        %v971 = vpop.f32.mrf.mxu0
        %v972 = vadd.f32 %v946, %v971
        %973 = vmatmul.f32.gmra.mxu0 %v952
        %v974 = vpop.f32.mrf.mxu0
        %v975 = vadd.f32 %v946, %v974
        %976 = vdwg.mxu0
        %v977 = vadd.f32 %v608, %v972
        %v978 = vadd.f32 %v611, %v975
        %v979 = vsel %vm635, %v977, 0.0
        %980 = vadd.xlane.f32.xlu0 %v979
        %v981 = vpop.xlane.xlu0 %980
        %v982 = vsel %vm635, %v978, 0.0
        %983 = vadd.xlane.f32.xlu0 %v982
        %v984 = vpop.xlane.xlu0 %983
        %v985 = vrcp.pop 32.0
        %v986 = vmul.f32 32.0, %v985
        %v987 = vsub.f32 1.0, %v986
        %v988 = vmul.f32 %v985, %v987
        %v989 = vadd.f32 %v985, %v988
        %vm990 = vweird.f32 %v985
        %v991 = vsel %vm990, %v985, %v989
        %v992 = vmul.f32 %v981, %v991
        %v993 = vmul.f32 %v984, %v991
        %v994 = vsub.f32 %v977, %v992
        %v995 = vsub.f32 %v978, %v993
        %v996 = vmul.f32 %v994, %v994
        %v997 = vmul.f32 %v995, %v995
        %v998 = vsel %vm635, %v996, 0.0
        %999 = vadd.xlane.f32.xlu0 %v998
        %v1000 = vpop.xlane.xlu0 %999
        %v1001 = vsel %vm635, %v997, 0.0
        %1002 = vadd.xlane.f32.xlu0 %v1001
        %v1003 = vpop.xlane.xlu0 %1002
        %v1004 = vmul.f32 %v1000, %v991
        %v1005 = vmul.f32 %v1003, %v991
        %v1006 = vadd.f32 %v1004, 1e-05
        %v1007 = vadd.f32 %v1005, 1e-05
        %v1008 = vrsqrt.pop %v1006
        %v1009 = vmul.f32 %v1008, %v1006
        %v1010 = vmul.f32 %v1009, %v1008
        %v1011 = vmul.f32 0.5, %v1010
        %v1012 = vsub.f32 1.5, %v1011
        %v1013 = vmul.f32 %v1008, %v1012
        %vm1014 = vweird.f32 %v1006
        %vm1015 = vweird.f32 %v1008
        %vm1016 = vmor %vm1014, %vm1015
        %v1017 = vsel %vm1016, %v1008, %v1013
        %v1018 = vrsqrt.pop %v1007
        %v1019 = vmul.f32 %v1018, %v1007
        %v1020 = vmul.f32 %v1019, %v1018
        %v1021 = vmul.f32 0.5, %v1020
        %v1022 = vsub.f32 1.5, %v1021
        %v1023 = vmul.f32 %v1018, %v1022
        %vm1024 = vweird.f32 %v1007
        %vm1025 = vweird.f32 %v1018
        %vm1026 = vmor %vm1024, %vm1025
        %v1027 = vsel %vm1026, %v1018, %v1023
        %v1028 = vmul.f32 %v994, %v1017
        %v1029 = vmul.f32 %v995, %v1027
        %v1030 = vld [vmem:[#allocation5] sm:$0x1]
        %v1032 = vperm.slane %v1030, 0
        %v1034 = vmul.f32 %v1028, %v1032
        %v1035 = vmul.f32 %v1029, %v1032
        %v1036 = vld [vmem:[%s8] sm:$0x1]
        %v1038 = vperm.slane %v1036, 0
        %v1040 = vadd.f32 %v1034, %v1038
        %v1041 = vadd.f32 %v1035, %v1038
        %v1042 = vld [vmem:[%s9] sm:$0xff]
        %v1043 = vld [vmem:[%s9 + $0x8] sm:$0xff]
        %v1044 = vld [vmem:[%s9 + $0x10] sm:$0xff]
        %v1045 = vld [vmem:[%s9 + $0x18] sm:$0xff]
        %v1046 = vld [vmem:[%s10] sm:$0x1]
        %v1048 = vperm.slane %v1046, 0
        %v1051 = vsel %vm635, %v1040, 0
        %v1054 = vsel %vm635, %v1041, 0
        %1056 = vmatpush.msra.mxu0 0.0
        %1057 = vmatpush.msra.mxu0 0.0
        %1058 = vmatpush.msra.mxu0 0.0
        %1059 = vmatpush.msra.mxu0 0.0
        %1060 = vmatpush.msra.mxu0 0.0
        %1061 = vmatpush.msra.mxu0 0.0
        %1062 = vmatpush.msra.mxu0 0.0
        %1063 = vmatpush.msra.mxu0 0.0
        %1064 = vmatpush.msra.mxu0 0.0
        %1065 = vmatpush.msra.mxu0 0.0
        %1066 = vmatpush.msra.mxu0 0.0
        %1067 = vmatpush.msra.mxu0 0.0
        %1068 = vmatpush.msra.mxu0 %v1045
        %1069 = vmatpush.msra.mxu0 %v1044
        %1070 = vmatpush.msra.mxu0 %v1043
        %1071 = vmatpush.msra.mxu0 %v1042
        %1072 = vmatmul.f32.gmra.mxu0 %v1051
        %v1073 = vpop.f32.mrf.mxu0
        %v1074 = vadd.f32 %v1048, %v1073
        %1075 = vmatmul.f32.gmra.mxu0 %v1054
        %v1076 = vpop.f32.mrf.mxu0
        %v1077 = vadd.f32 %v1048, %v1076
        %1078 = vdwg.mxu0
        %v1079 = vmax.f32 %v1074, 0.0
        %v1080 = vmax.f32 %v1077, 0.0
        %v1081 = vld [vmem:[%s11] sm:$0xff]
        %v1082 = vld [vmem:[%s11 + $0x8] sm:$0xff]
        %v1083 = vld [vmem:[%s11 + $0x10] sm:$0xff]
        %v1084 = vld [vmem:[%s11 + $0x18] sm:$0xff]
        %v1085 = vld [vmem:[%s11 + $0x20] sm:$0xff]
        %v1086 = vld [vmem:[%s11 + $0x28] sm:$0xff]
        %v1087 = vld [vmem:[%s11 + $0x30] sm:$0xff]
        %v1088 = vld [vmem:[%s11 + $0x38] sm:$0xff]
        %v1089 = vld [vmem:[%s12] sm:$0x1]
        %v1091 = vperm.slane %v1089, 0
        %vm1093 = vcmask 523264
        %v1095 = vsel %vm1093, %v1079, 0
        %v1098 = vsel %vm1093, %v1080, 0
        %1100 = vmatpush.msra.mxu0 0.0
        %1101 = vmatpush.msra.mxu0 0.0
        %1102 = vmatpush.msra.mxu0 0.0
        %1103 = vmatpush.msra.mxu0 0.0
        %1104 = vmatpush.msra.mxu0 0.0
        %1105 = vmatpush.msra.mxu0 0.0
        %1106 = vmatpush.msra.mxu0 0.0
        %1107 = vmatpush.msra.mxu0 0.0
        %1108 = vmatpush.msra.mxu0 %v1088
        %1109 = vmatpush.msra.mxu0 %v1087
        %1110 = vmatpush.msra.mxu0 %v1086
        %1111 = vmatpush.msra.mxu0 %v1085
        %1112 = vmatpush.msra.mxu0 %v1084
        %1113 = vmatpush.msra.mxu0 %v1083
        %1114 = vmatpush.msra.mxu0 %v1082
        %1115 = vmatpush.msra.mxu0 %v1081
        %1116 = vmatmul.f32.gmra.mxu0 %v1095
        %v1117 = vpop.f32.mrf.mxu0
        %v1118 = vadd.f32 %v1091, %v1117
        %1119 = vmatmul.f32.gmra.mxu0 %v1098
        %v1120 = vpop.f32.mrf.mxu0
        %v1121 = vadd.f32 %v1091, %v1120
        %1122 = vdwg.mxu0
        %v1123 = vadd.f32 %v1040, %v1118
        %v1124 = vadd.f32 %v1041, %v1121
        %v1125 = vsel %vm635, %v1123, 0.0
        %1126 = vadd.xlane.f32.xlu0 %v1125
        %v1127 = vpop.xlane.xlu0 %1126
        %v1128 = vsel %vm635, %v1124, 0.0
        %1129 = vadd.xlane.f32.xlu0 %v1128
        %v1130 = vpop.xlane.xlu0 %1129
        %v1131 = vmul.f32 %v1127, %v991
        %v1132 = vmul.f32 %v1130, %v991
        %v1133 = vsub.f32 %v1123, %v1131
        %v1134 = vsub.f32 %v1124, %v1132
        %v1135 = vmul.f32 %v1133, %v1133
        %v1136 = vmul.f32 %v1134, %v1134
        %v1137 = vsel %vm635, %v1135, 0.0
        %1138 = vadd.xlane.f32.xlu0 %v1137
        %v1139 = vpop.xlane.xlu0 %1138
        %v1140 = vsel %vm635, %v1136, 0.0
        %1141 = vadd.xlane.f32.xlu0 %v1140
        %v1142 = vpop.xlane.xlu0 %1141
        %v1143 = vmul.f32 %v1139, %v991
        %v1144 = vmul.f32 %v1142, %v991
        %v1145 = vadd.f32 %v1143, 1e-05
        %v1146 = vadd.f32 %v1144, 1e-05
        %v1147 = vrsqrt.pop %v1145
        %v1148 = vmul.f32 %v1147, %v1145
        %v1149 = vmul.f32 %v1148, %v1147
        %v1150 = vmul.f32 0.5, %v1149
        %v1151 = vsub.f32 1.5, %v1150
        %v1152 = vmul.f32 %v1147, %v1151
        %vm1153 = vweird.f32 %v1145
        %vm1154 = vweird.f32 %v1147
        %vm1155 = vmor %vm1153, %vm1154
        %v1156 = vsel %vm1155, %v1147, %v1152
        %v1157 = vrsqrt.pop %v1146
        %v1158 = vmul.f32 %v1157, %v1146
        %v1159 = vmul.f32 %v1158, %v1157
        %v1160 = vmul.f32 0.5, %v1159
        %v1161 = vsub.f32 1.5, %v1160
        %v1162 = vmul.f32 %v1157, %v1161
        %vm1163 = vweird.f32 %v1146
        %vm1164 = vweird.f32 %v1157
        %vm1165 = vmor %vm1163, %vm1164
        %v1166 = vsel %vm1165, %v1157, %v1162
        %v1167 = vmul.f32 %v1133, %v1156
        %v1168 = vmul.f32 %v1134, %v1166
        %v1169 = vld [vmem:[#allocation7] sm:$0x1]
        %v1171 = vperm.slane %v1169, 0
        %v1173 = vmul.f32 %v1167, %v1171
        %v1174 = vmul.f32 %v1168, %v1171
        %v1175 = vld [vmem:[#allocation8] sm:$0x1]
        %v1177 = vperm.slane %v1175, 0
        %v1179 = vadd.f32 %v1173, %v1177
        %v1180 = vadd.f32 %v1174, %v1177
        %s1181 = scalar_lea.vmem %s3, 32
        %v1182 = vld [vmem:[%s1181] sm:$0xff]
        %v1183 = vld [vmem:[%s1181 + $0x8] sm:$0xff]
        %v1184 = vld [vmem:[%s1181 + $0x10] sm:$0xff]
        %v1185 = vld [vmem:[%s1181 + $0x18] sm:$0xff]
        %s1186 = scalar_lea.vmem %s4, 1
        %v1187 = vld [vmem:[%s1186] sm:$0x1]
        %v1189 = vperm.slane %v1187, 0
        %v1192 = vsel %vm635, %v1179, 0
        %v1195 = vsel %vm635, %v1180, 0
        %1197 = vmatpush.msra.mxu0 0.0
        %1198 = vmatpush.msra.mxu0 0.0
        %1199 = vmatpush.msra.mxu0 0.0
        %1200 = vmatpush.msra.mxu0 0.0
        %1201 = vmatpush.msra.mxu0 0.0
        %1202 = vmatpush.msra.mxu0 0.0
        %1203 = vmatpush.msra.mxu0 0.0
        %1204 = vmatpush.msra.mxu0 0.0
        %1205 = vmatpush.msra.mxu0 0.0
        %1206 = vmatpush.msra.mxu0 0.0
        %1207 = vmatpush.msra.mxu0 0.0
        %1208 = vmatpush.msra.mxu0 0.0
        %1209 = vmatpush.msra.mxu0 %v1185
        %1210 = vmatpush.msra.mxu0 %v1184
        %1211 = vmatpush.msra.mxu0 %v1183
        %1212 = vmatpush.msra.mxu0 %v1182
        %1213 = vmatmul.f32.gmra.mxu0 %v1192
        %v1214 = vpop.f32.mrf.mxu0
        %v1215 = vadd.f32 %v1189, %v1214
        %1216 = vmatmul.f32.gmra.mxu0 %v1195
        %v1217 = vpop.f32.mrf.mxu0
        %v1218 = vadd.f32 %v1189, %v1217
        %1219 = vdwg.mxu0
        %1222 = vrot.lane.b32.xlu0 %v1215, 96
        %v1223 = vpop.permute.xlu0 %1222
        %1224 = vrot.lane.b32.xlu0 %v1218, 96
        %v1225 = vpop.permute.xlu0 %1224
        %v1226 = vsel %vm635, %v1215, 0
        %v1228 = vsel %vm635, %v1218, 0
        %v1230 = vsel %vm635, %v1223, 0
        %v1232 = vsel %vm635, %v1225, 0
        %1234 = vmatpush.xpose.msra.mxu0 0.0
        %1235 = vmatpush.xpose.msra.mxu0 0.0
        %1236 = vmatpush.xpose.msra.mxu0 0.0
        %1237 = vmatpush.xpose.msra.mxu0 0.0
        %1238 = vmatpush.xpose.msra.mxu0 0.0
        %1239 = vmatpush.xpose.msra.mxu0 0.0
        %1240 = vmatpush.xpose.msra.mxu0 0.0
        %1241 = vmatpush.xpose.msra.mxu0 0.0
        %1242 = vmatpush.xpose.msra.mxu0 0.0
        %1243 = vmatpush.xpose.msra.mxu0 0.0
        %1244 = vmatpush.xpose.msra.mxu0 0.0
        %1245 = vmatpush.xpose.msra.mxu0 0.0
        %1246 = vmatpush.xpose.msra.mxu0 0.0
        %1247 = vmatpush.xpose.msra.mxu0 0.0
        %1248 = vmatpush.xpose.msra.mxu0 %v1232
        %1249 = vmatpush.xpose.msra.mxu0 %v1230
        %1250 = vmatmul.f32.gmra.mxu0 %v1226
        %v1251 = vpop.f32.mrf.mxu0
        %v1252 = vadd.f32 0.0, %v1251
        %1253 = vmatmul.f32.gmra.mxu0 %v1228
        %v1254 = vpop.f32.mrf.mxu0
        %v1255 = vadd.f32 0.0, %v1254
        %1256 = vdwg.mxu0
        %1257 = vmatpush.xpose.msra.mxu0 0.0
        %1258 = vmatpush.xpose.msra.mxu0 0.0
        %1259 = vmatpush.xpose.msra.mxu0 0.0
        %1260 = vmatpush.xpose.msra.mxu0 0.0
        %1261 = vmatpush.xpose.msra.mxu0 0.0
        %1262 = vmatpush.xpose.msra.mxu0 0.0
        %1263 = vmatpush.xpose.msra.mxu0 0.0
        %1264 = vmatpush.xpose.msra.mxu0 0.0
        %1265 = vmatpush.xpose.msra.mxu0 0.0
        %1266 = vmatpush.xpose.msra.mxu0 0.0
        %1267 = vmatpush.xpose.msra.mxu0 0.0
        %1268 = vmatpush.xpose.msra.mxu0 0.0
        %1269 = vmatpush.xpose.msra.mxu0 0.0
        %1270 = vmatpush.xpose.msra.mxu0 0.0
        %1271 = vmatpush.xpose.msra.mxu0 0.0
        %1272 = vmatpush.xpose.msra.mxu0 %v703
        %1273 = vmatmul.f32.gmra.mxu0 %v1226
        %v1274 = vpop.f32.mrf.mxu0
        %v1275 = vadd.f32 0.0, %v1274
        %1276 = vmatmul.f32.gmra.mxu0 %v1228
        %v1277 = vpop.f32.mrf.mxu0
        %v1278 = vadd.f32 0.0, %v1277
        %1279 = vdwg.mxu0
        %1281 = vset.pattern.permute.xlu0 0
        %1282 = vperm.xlu0 %1281, %v1275
        %v1283 = vpop.permute.xlu0 %1282
        %1286 = vset.pattern.permute.xlu0 0
        %1287 = vperm.xlu0 %1286, %v1278
        %v1288 = vpop.permute.xlu0 %1287
        %v1290 = vmul.f32 %v732, %v1283
        %v1291 = vmul.f32 %v733, %v1288
        %v1292 = vadd.f32 %v1290, 0.0
        %v1293 = vadd.f32 %v1291, 0.0
        %1294 = vset.pattern.permute.xlu0 1
        %1295 = vperm.xlu0 %1294, %v1275
        %v1296 = vpop.permute.xlu0 %1295
        %1298 = vset.pattern.permute.xlu0 1
        %1299 = vperm.xlu0 %1298, %v1278
        %v1300 = vpop.permute.xlu0 %1299
        %v1302 = vmul.f32 %v752, %v1296
        %v1303 = vmul.f32 %v753, %v1300
        %v1304 = vadd.f32 %v1292, %v1302
        %v1305 = vadd.f32 %v1293, %v1303
        %1306 = vset.pattern.permute.xlu0 2
        %1307 = vperm.xlu0 %1306, %v1275
        %v1308 = vpop.permute.xlu0 %1307
        %1310 = vset.pattern.permute.xlu0 2
        %1311 = vperm.xlu0 %1310, %v1278
        %v1312 = vpop.permute.xlu0 %1311
        %v1314 = vmul.f32 %v770, %v1308
        %v1315 = vmul.f32 %v771, %v1312
        %v1316 = vadd.f32 %v1304, %v1314
        %v1317 = vadd.f32 %v1305, %v1315
        %1318 = vset.pattern.permute.xlu0 3
        %1319 = vperm.xlu0 %1318, %v1275
        %v1320 = vpop.permute.xlu0 %1319
        %1322 = vset.pattern.permute.xlu0 3
        %1323 = vperm.xlu0 %1322, %v1278
        %v1324 = vpop.permute.xlu0 %1323
        %v1326 = vmul.f32 %v788, %v1320
        %v1327 = vmul.f32 %v789, %v1324
        %v1328 = vadd.f32 %v1316, %v1326
        %v1329 = vadd.f32 %v1317, %v1327
        %1330 = vset.pattern.permute.xlu0 4
        %1331 = vperm.xlu0 %1330, %v1275
        %v1332 = vpop.permute.xlu0 %1331
        %1334 = vset.pattern.permute.xlu0 4
        %1335 = vperm.xlu0 %1334, %v1278
        %v1336 = vpop.permute.xlu0 %1335
        %v1338 = vmul.f32 %v806, %v1332
        %v1339 = vmul.f32 %v807, %v1336
        %v1340 = vadd.f32 %v1328, %v1338
        %v1341 = vadd.f32 %v1329, %v1339
        %1342 = vset.pattern.permute.xlu0 5
        %1343 = vperm.xlu0 %1342, %v1275
        %v1344 = vpop.permute.xlu0 %1343
        %1346 = vset.pattern.permute.xlu0 5
        %1347 = vperm.xlu0 %1346, %v1278
        %v1348 = vpop.permute.xlu0 %1347
        %v1350 = vmul.f32 %v824, %v1344
        %v1351 = vmul.f32 %v825, %v1348
        %v1352 = vadd.f32 %v1340, %v1350
        %v1353 = vadd.f32 %v1341, %v1351
        %1354 = vset.pattern.permute.xlu0 6
        %1355 = vperm.xlu0 %1354, %v1275
        %v1356 = vpop.permute.xlu0 %1355
        %1358 = vset.pattern.permute.xlu0 6
        %1359 = vperm.xlu0 %1358, %v1278
        %v1360 = vpop.permute.xlu0 %1359
        %v1362 = vmul.f32 %v842, %v1356
        %v1363 = vmul.f32 %v843, %v1360
        %v1364 = vadd.f32 %v1352, %v1362
        %v1365 = vadd.f32 %v1353, %v1363
        %1366 = vset.pattern.permute.xlu0 7
        %1367 = vperm.xlu0 %1366, %v1275
        %v1368 = vpop.permute.xlu0 %1367
        %1370 = vset.pattern.permute.xlu0 7
        %1371 = vperm.xlu0 %1370, %v1278
        %v1372 = vpop.permute.xlu0 %1371
        %v1374 = vmul.f32 %v860, %v1368
        %v1375 = vmul.f32 %v861, %v1372
        %v1376 = vadd.f32 %v1364, %v1374
        %v1377 = vadd.f32 %v1365, %v1375
        %vm1378 = vcmp.ne.f32.partialorder %v1252, 0.0
        %vm1379 = vcmp.ne.f32.partialorder %v1255, 0.0
        %vm1380 = vmand %vm624, %vm1378
        %vm1381 = vmand %vm625, %vm1379
        %v1382 = vadd.f32 %v1252, %v1376
        %v1383 = vadd.f32 %v1255, %v1377
        %v1384 = vsel %vm1380, %v1382, -1e+09
        %v1385 = vsel %vm1381, %v1383, -1e+09
        %v1386 = vsel %vm882, %v1384, -inf
        %1387 = vmax.xlane.f32.xlu0 %v1386
        %v1388 = vpop.xlane.xlu0 %1387
        %v1389 = vsel %vm882, %v1385, -inf
        %1390 = vmax.xlane.f32.xlu0 %v1389
        %v1391 = vpop.xlane.xlu0 %1390
        %v1392 = vsub.f32 %v1384, %v1388
        %v1393 = vsub.f32 %v1385, %v1391
        %v1394 = vmul.f32 %v1392, 1.442695
        %v1395 = vpow.pop %v1394
        %v1396 = vmul.f32 %v1393, 1.442695
        %v1397 = vpow.pop %v1396
        %v1398 = vsel %vm882, %v1395, 0.0
        %1399 = vadd.xlane.f32.xlu0 %v1398
        %v1400 = vpop.xlane.xlu0 %1399
        %v1401 = vsel %vm882, %v1397, 0.0
        %1402 = vadd.xlane.f32.xlu0 %v1401
        %v1403 = vpop.xlane.xlu0 %1402
        %v1404 = vrcp.pop %v1400
        %v1405 = vrcp.pop %v1403
        %v1406 = vmul.f32 %v1395, %v1404
        %v1407 = vmul.f32 %v1397, %v1405
        %1408 = vrot.lane.b32.xlu0 %v1215, 64
        %v1409 = vpop.permute.xlu0 %1408
        %1410 = vrot.lane.b32.xlu0 %v1218, 64
        %v1411 = vpop.permute.xlu0 %1410
        %v1415 = vsel %vm882, %v1406, 0
        %v1418 = vsel %vm882, %v1407, 0
        %1420 = vmatpush.msra.mxu0 0.0
        %1421 = vmatpush.msra.mxu0 0.0
        %1422 = vmatpush.msra.mxu0 0.0
        %1423 = vmatpush.msra.mxu0 0.0
        %1424 = vmatpush.msra.mxu0 0.0
        %1425 = vmatpush.msra.mxu0 0.0
        %1426 = vmatpush.msra.mxu0 0.0
        %1427 = vmatpush.msra.mxu0 0.0
        %1428 = vmatpush.msra.mxu0 0.0
        %1429 = vmatpush.msra.mxu0 0.0
        %1430 = vmatpush.msra.mxu0 0.0
        %1431 = vmatpush.msra.mxu0 0.0
        %1432 = vmatpush.msra.mxu0 0.0
        %1433 = vmatpush.msra.mxu0 0.0
        %1434 = vmatpush.msra.mxu0 %v1411
        %1435 = vmatpush.msra.mxu0 %v1409
        %1436 = vmatmul.f32.gmra.mxu0 %v1415
        %v1437 = vpop.f32.mrf.mxu0
        %v1438 = vadd.f32 0.0, %v1437
        %1439 = vmatmul.f32.gmra.mxu0 %v1418
        %v1440 = vpop.f32.mrf.mxu0
        %v1441 = vadd.f32 0.0, %v1440
        %1442 = vdwg.mxu0
        %s1443 = scalar_lea.vmem %s5, 32
        %v1444 = vld [vmem:[%s1443] sm:$0xff]
        %v1445 = vld [vmem:[%s1443 + $0x8] sm:$0xff]
        %v1446 = vld [vmem:[%s1443 + $0x10] sm:$0xff]
        %v1447 = vld [vmem:[%s1443 + $0x18] sm:$0xff]
        %s1448 = scalar_lea.vmem [#allocation2], 1
        %v1449 = vld [vmem:[%s1448] sm:$0x1]
        %v1451 = vperm.slane %v1449, 0
        %v1454 = vsel %vm635, %v1438, 0
        %v1457 = vsel %vm635, %v1441, 0
        %1459 = vmatpush.msra.mxu0 0.0
        %1460 = vmatpush.msra.mxu0 0.0
        %1461 = vmatpush.msra.mxu0 0.0
        %1462 = vmatpush.msra.mxu0 0.0
        %1463 = vmatpush.msra.mxu0 0.0
        %1464 = vmatpush.msra.mxu0 0.0
        %1465 = vmatpush.msra.mxu0 0.0
        %1466 = vmatpush.msra.mxu0 0.0
        %1467 = vmatpush.msra.mxu0 0.0
        %1468 = vmatpush.msra.mxu0 0.0
        %1469 = vmatpush.msra.mxu0 0.0
        %1470 = vmatpush.msra.mxu0 0.0
        %1471 = vmatpush.msra.mxu0 %v1447
        %1472 = vmatpush.msra.mxu0 %v1446
        %1473 = vmatpush.msra.mxu0 %v1445
        %1474 = vmatpush.msra.mxu0 %v1444
        %1475 = vmatmul.f32.gmra.mxu0 %v1454
        %v1476 = vpop.f32.mrf.mxu0
        %v1477 = vadd.f32 %v1451, %v1476
        %1478 = vmatmul.f32.gmra.mxu0 %v1457
        %v1479 = vpop.f32.mrf.mxu0
        %v1480 = vadd.f32 %v1451, %v1479
        %1481 = vdwg.mxu0
        %v1482 = vadd.f32 %v1179, %v1477
        %v1483 = vadd.f32 %v1180, %v1480
        %v1484 = vsel %vm635, %v1482, 0.0
        %1485 = vadd.xlane.f32.xlu0 %v1484
        %v1486 = vpop.xlane.xlu0 %1485
        %v1487 = vsel %vm635, %v1483, 0.0
        %1488 = vadd.xlane.f32.xlu0 %v1487
        %v1489 = vpop.xlane.xlu0 %1488
        %v1490 = vmul.f32 %v1486, %v991
        %v1491 = vmul.f32 %v1489, %v991
        %v1492 = vsub.f32 %v1482, %v1490
        %v1493 = vsub.f32 %v1483, %v1491
        %v1494 = vmul.f32 %v1492, %v1492
        %v1495 = vmul.f32 %v1493, %v1493
        %v1496 = vsel %vm635, %v1494, 0.0
        %1497 = vadd.xlane.f32.xlu0 %v1496
        %v1498 = vpop.xlane.xlu0 %1497
        %v1499 = vsel %vm635, %v1495, 0.0
        %1500 = vadd.xlane.f32.xlu0 %v1499
        %v1501 = vpop.xlane.xlu0 %1500
        %v1502 = vmul.f32 %v1498, %v991
        %v1503 = vmul.f32 %v1501, %v991
        %v1504 = vadd.f32 %v1502, 1e-05
        %v1505 = vadd.f32 %v1503, 1e-05
        %v1506 = vrsqrt.pop %v1504
        %v1507 = vmul.f32 %v1506, %v1504
        %v1508 = vmul.f32 %v1507, %v1506
        %v1509 = vmul.f32 0.5, %v1508
        %v1510 = vsub.f32 1.5, %v1509
        %v1511 = vmul.f32 %v1506, %v1510
        %vm1512 = vweird.f32 %v1504
        %vm1513 = vweird.f32 %v1506
        %vm1514 = vmor %vm1512, %vm1513
        %v1515 = vsel %vm1514, %v1506, %v1511
        %v1516 = vrsqrt.pop %v1505
        %v1517 = vmul.f32 %v1516, %v1505
        %v1518 = vmul.f32 %v1517, %v1516
        %v1519 = vmul.f32 0.5, %v1518
        %v1520 = vsub.f32 1.5, %v1519
        %v1521 = vmul.f32 %v1516, %v1520
        %vm1522 = vweird.f32 %v1505
        %vm1523 = vweird.f32 %v1516
        %vm1524 = vmor %vm1522, %vm1523
        %v1525 = vsel %vm1524, %v1516, %v1521
        %v1526 = vmul.f32 %v1492, %v1515
        %v1527 = vmul.f32 %v1493, %v1525
        %s1528 = scalar_lea.vmem [#allocation5], 1
        %v1529 = vld [vmem:[%s1528] sm:$0x1]
        %v1531 = vperm.slane %v1529, 0
        %v1533 = vmul.f32 %v1526, %v1531
        %v1534 = vmul.f32 %v1527, %v1531
        %s1535 = scalar_lea.vmem %s8, 1
        %v1536 = vld [vmem:[%s1535] sm:$0x1]
        %v1538 = vperm.slane %v1536, 0
        %v1540 = vadd.f32 %v1533, %v1538
        %v1541 = vadd.f32 %v1534, %v1538
        %s1542 = scalar_lea.vmem %s9, 32
        %v1543 = vld [vmem:[%s1542] sm:$0xff]
        %v1544 = vld [vmem:[%s1542 + $0x8] sm:$0xff]
        %v1545 = vld [vmem:[%s1542 + $0x10] sm:$0xff]
        %v1546 = vld [vmem:[%s1542 + $0x18] sm:$0xff]
        %s1547 = scalar_lea.vmem %s10, 1
        %v1548 = vld [vmem:[%s1547] sm:$0x1]
        %v1550 = vperm.slane %v1548, 0
        %v1553 = vsel %vm635, %v1540, 0
        %v1556 = vsel %vm635, %v1541, 0
        %1558 = vmatpush.msra.mxu0 0.0
        %1559 = vmatpush.msra.mxu0 0.0
        %1560 = vmatpush.msra.mxu0 0.0
        %1561 = vmatpush.msra.mxu0 0.0
        %1562 = vmatpush.msra.mxu0 0.0
        %1563 = vmatpush.msra.mxu0 0.0
        %1564 = vmatpush.msra.mxu0 0.0
        %1565 = vmatpush.msra.mxu0 0.0
        %1566 = vmatpush.msra.mxu0 0.0
        %1567 = vmatpush.msra.mxu0 0.0
        %1568 = vmatpush.msra.mxu0 0.0
        %1569 = vmatpush.msra.mxu0 0.0
        %1570 = vmatpush.msra.mxu0 %v1546
        %1571 = vmatpush.msra.mxu0 %v1545
        %1572 = vmatpush.msra.mxu0 %v1544
        %1573 = vmatpush.msra.mxu0 %v1543
        %1574 = vmatmul.f32.gmra.mxu0 %v1553
        %v1575 = vpop.f32.mrf.mxu0
        %v1576 = vadd.f32 %v1550, %v1575
        %1577 = vmatmul.f32.gmra.mxu0 %v1556
        %v1578 = vpop.f32.mrf.mxu0
        %v1579 = vadd.f32 %v1550, %v1578
        %1580 = vdwg.mxu0
        %v1581 = vmax.f32 %v1576, 0.0
        %v1582 = vmax.f32 %v1579, 0.0
        %s1583 = scalar_lea.vmem %s11, 64
        %v1584 = vld [vmem:[%s1583] sm:$0xff]
        %v1585 = vld [vmem:[%s1583 + $0x8] sm:$0xff]
        %v1586 = vld [vmem:[%s1583 + $0x10] sm:$0xff]
        %v1587 = vld [vmem:[%s1583 + $0x18] sm:$0xff]
        %v1588 = vld [vmem:[%s1583 + $0x20] sm:$0xff]
        %v1589 = vld [vmem:[%s1583 + $0x28] sm:$0xff]
        %v1590 = vld [vmem:[%s1583 + $0x30] sm:$0xff]
        %v1591 = vld [vmem:[%s1583 + $0x38] sm:$0xff]
        %s1592 = scalar_lea.vmem %s12, 1
        %v1593 = vld [vmem:[%s1592] sm:$0x1]
        %v1595 = vperm.slane %v1593, 0
        %v1598 = vsel %vm1093, %v1581, 0
        %v1601 = vsel %vm1093, %v1582, 0
        %1603 = vmatpush.msra.mxu0 0.0
        %1604 = vmatpush.msra.mxu0 0.0
        %1605 = vmatpush.msra.mxu0 0.0
        %1606 = vmatpush.msra.mxu0 0.0
        %1607 = vmatpush.msra.mxu0 0.0
        %1608 = vmatpush.msra.mxu0 0.0
        %1609 = vmatpush.msra.mxu0 0.0
        %1610 = vmatpush.msra.mxu0 0.0
        %1611 = vmatpush.msra.mxu0 %v1591
        %1612 = vmatpush.msra.mxu0 %v1590
        %1613 = vmatpush.msra.mxu0 %v1589
        %1614 = vmatpush.msra.mxu0 %v1588
        %1615 = vmatpush.msra.mxu0 %v1587
        %1616 = vmatpush.msra.mxu0 %v1586
        %1617 = vmatpush.msra.mxu0 %v1585
        %1618 = vmatpush.msra.mxu0 %v1584
        %1619 = vmatmul.f32.gmra.mxu0 %v1598
        %v1620 = vpop.f32.mrf.mxu0
        %v1621 = vadd.f32 %v1595, %v1620
        %1622 = vmatmul.f32.gmra.mxu0 %v1601
        %v1623 = vpop.f32.mrf.mxu0
        %v1624 = vadd.f32 %v1595, %v1623
        %1625 = vdwg.mxu0
        %v1626 = vadd.f32 %v1540, %v1621
        %v1627 = vadd.f32 %v1541, %v1624
        %v1628 = vsel %vm635, %v1626, 0.0
        %1629 = vadd.xlane.f32.xlu0 %v1628
        %v1630 = vpop.xlane.xlu0 %1629
        %v1631 = vsel %vm635, %v1627, 0.0
        %1632 = vadd.xlane.f32.xlu0 %v1631
        %v1633 = vpop.xlane.xlu0 %1632
        %v1634 = vmul.f32 %v1630, %v991
        %v1635 = vmul.f32 %v1633, %v991
        %v1636 = vsub.f32 %v1626, %v1634
        %v1637 = vsub.f32 %v1627, %v1635
        %v1638 = vmul.f32 %v1636, %v1636
        %v1639 = vmul.f32 %v1637, %v1637
        %v1640 = vsel %vm635, %v1638, 0.0
        %1641 = vadd.xlane.f32.xlu0 %v1640
        %v1642 = vpop.xlane.xlu0 %1641
        %v1643 = vsel %vm635, %v1639, 0.0
        %1644 = vadd.xlane.f32.xlu0 %v1643
        %v1645 = vpop.xlane.xlu0 %1644
        %v1646 = vmul.f32 %v1642, %v991
        %v1647 = vmul.f32 %v1645, %v991
        %v1648 = vadd.f32 %v1646, 1e-05
        %v1649 = vadd.f32 %v1647, 1e-05
        %v1650 = vrsqrt.pop %v1648
        %v1651 = vmul.f32 %v1650, %v1648
        %v1652 = vmul.f32 %v1651, %v1650
        %v1653 = vmul.f32 0.5, %v1652
        %v1654 = vsub.f32 1.5, %v1653
        %v1655 = vmul.f32 %v1650, %v1654
        %vm1656 = vweird.f32 %v1648
        %vm1657 = vweird.f32 %v1650
        %vm1658 = vmor %vm1656, %vm1657
        %v1659 = vsel %vm1658, %v1650, %v1655
        %v1660 = vrsqrt.pop %v1649
        %v1661 = vmul.f32 %v1660, %v1649
        %v1662 = vmul.f32 %v1661, %v1660
        %v1663 = vmul.f32 0.5, %v1662
        %v1664 = vsub.f32 1.5, %v1663
        %v1665 = vmul.f32 %v1660, %v1664
        %vm1666 = vweird.f32 %v1649
        %vm1667 = vweird.f32 %v1660
        %vm1668 = vmor %vm1666, %vm1667
        %v1669 = vsel %vm1668, %v1660, %v1665
        %v1670 = vmul.f32 %v1636, %v1659
        %v1671 = vmul.f32 %v1637, %v1669
        %s1672 = scalar_lea.vmem [#allocation7], 1
        %v1673 = vld [vmem:[%s1672] sm:$0x1]
        %v1675 = vperm.slane %v1673, 0
        %v1677 = vmul.f32 %v1670, %v1675
        %v1678 = vmul.f32 %v1671, %v1675
        %s1679 = scalar_lea.vmem [#allocation8], 1
        %v1680 = vld [vmem:[%s1679] sm:$0x1]
        %v1682 = vperm.slane %v1680, 0
        %v1684 = vadd.f32 %v1677, %v1682
        %v1685 = vadd.f32 %v1678, %v1682
        %s1686 = scalar_lea.vmem %s3, 64
        %v1687 = vld [vmem:[%s1686] sm:$0xff]
        %v1688 = vld [vmem:[%s1686 + $0x8] sm:$0xff]
        %v1689 = vld [vmem:[%s1686 + $0x10] sm:$0xff]
        %v1690 = vld [vmem:[%s1686 + $0x18] sm:$0xff]
        %s1691 = scalar_lea.vmem %s4, 2
        %v1692 = vld [vmem:[%s1691] sm:$0x1]
        %v1694 = vperm.slane %v1692, 0
        %v1697 = vsel %vm635, %v1684, 0
        %v1700 = vsel %vm635, %v1685, 0
        %1702 = vmatpush.msra.mxu0 0.0
        %1703 = vmatpush.msra.mxu0 0.0
        %1704 = vmatpush.msra.mxu0 0.0
        %1705 = vmatpush.msra.mxu0 0.0
        %1706 = vmatpush.msra.mxu0 0.0
        %1707 = vmatpush.msra.mxu0 0.0
        %1708 = vmatpush.msra.mxu0 0.0
        %1709 = vmatpush.msra.mxu0 0.0
        %1710 = vmatpush.msra.mxu0 0.0
        %1711 = vmatpush.msra.mxu0 0.0
        %1712 = vmatpush.msra.mxu0 0.0
        %1713 = vmatpush.msra.mxu0 0.0
        %1714 = vmatpush.msra.mxu0 %v1690
        %1715 = vmatpush.msra.mxu0 %v1689
        %1716 = vmatpush.msra.mxu0 %v1688
        %1717 = vmatpush.msra.mxu0 %v1687
        %1718 = vmatmul.f32.gmra.mxu0 %v1697
        %v1719 = vpop.f32.mrf.mxu0
        %v1720 = vadd.f32 %v1694, %v1719
        %1721 = vmatmul.f32.gmra.mxu0 %v1700
        %v1722 = vpop.f32.mrf.mxu0
        %v1723 = vadd.f32 %v1694, %v1722
        %1724 = vdwg.mxu0
        %1727 = vrot.lane.b32.xlu0 %v1720, 96
        %v1728 = vpop.permute.xlu0 %1727
        %1729 = vrot.lane.b32.xlu0 %v1723, 96
        %v1730 = vpop.permute.xlu0 %1729
        %v1731 = vsel %vm635, %v1720, 0
        %v1733 = vsel %vm635, %v1723, 0
        %v1735 = vsel %vm635, %v1728, 0
        %v1737 = vsel %vm635, %v1730, 0
        %1739 = vmatpush.xpose.msra.mxu0 0.0
        %1740 = vmatpush.xpose.msra.mxu0 0.0
        %1741 = vmatpush.xpose.msra.mxu0 0.0
        %1742 = vmatpush.xpose.msra.mxu0 0.0
        %1743 = vmatpush.xpose.msra.mxu0 0.0
        %1744 = vmatpush.xpose.msra.mxu0 0.0
        %1745 = vmatpush.xpose.msra.mxu0 0.0
        %1746 = vmatpush.xpose.msra.mxu0 0.0
        %1747 = vmatpush.xpose.msra.mxu0 0.0
        %1748 = vmatpush.xpose.msra.mxu0 0.0
        %1749 = vmatpush.xpose.msra.mxu0 0.0
        %1750 = vmatpush.xpose.msra.mxu0 0.0
        %1751 = vmatpush.xpose.msra.mxu0 0.0
        %1752 = vmatpush.xpose.msra.mxu0 0.0
        %1753 = vmatpush.xpose.msra.mxu0 %v1737
        %1754 = vmatpush.xpose.msra.mxu0 %v1735
        %1755 = vmatmul.f32.gmra.mxu0 %v1731
        %v1756 = vpop.f32.mrf.mxu0
        %v1757 = vadd.f32 0.0, %v1756
        %1758 = vmatmul.f32.gmra.mxu0 %v1733
        %v1759 = vpop.f32.mrf.mxu0
        %v1760 = vadd.f32 0.0, %v1759
        %1761 = vdwg.mxu0
        %1762 = vmatpush.xpose.msra.mxu0 0.0
        %1763 = vmatpush.xpose.msra.mxu0 0.0
        %1764 = vmatpush.xpose.msra.mxu0 0.0
        %1765 = vmatpush.xpose.msra.mxu0 0.0
        %1766 = vmatpush.xpose.msra.mxu0 0.0
        %1767 = vmatpush.xpose.msra.mxu0 0.0
        %1768 = vmatpush.xpose.msra.mxu0 0.0
        %1769 = vmatpush.xpose.msra.mxu0 0.0
        %1770 = vmatpush.xpose.msra.mxu0 0.0
        %1771 = vmatpush.xpose.msra.mxu0 0.0
        %1772 = vmatpush.xpose.msra.mxu0 0.0
        %1773 = vmatpush.xpose.msra.mxu0 0.0
        %1774 = vmatpush.xpose.msra.mxu0 0.0
        %1775 = vmatpush.xpose.msra.mxu0 0.0
        %1776 = vmatpush.xpose.msra.mxu0 0.0
        %1777 = vmatpush.xpose.msra.mxu0 %v703
        %1778 = vmatmul.f32.gmra.mxu0 %v1731
        %v1779 = vpop.f32.mrf.mxu0
        %v1780 = vadd.f32 0.0, %v1779
        %1781 = vmatmul.f32.gmra.mxu0 %v1733
        %v1782 = vpop.f32.mrf.mxu0
        %v1783 = vadd.f32 0.0, %v1782
        %1784 = vdwg.mxu0
        %1786 = vset.pattern.permute.xlu0 0
        %1787 = vperm.xlu0 %1786, %v1780
        %v1788 = vpop.permute.xlu0 %1787
        %1791 = vset.pattern.permute.xlu0 0
        %1792 = vperm.xlu0 %1791, %v1783
        %v1793 = vpop.permute.xlu0 %1792
        %v1795 = vmul.f32 %v732, %v1788
        %v1796 = vmul.f32 %v733, %v1793
        %v1797 = vadd.f32 %v1795, 0.0
        %v1798 = vadd.f32 %v1796, 0.0
        %1799 = vset.pattern.permute.xlu0 1
        %1800 = vperm.xlu0 %1799, %v1780
        %v1801 = vpop.permute.xlu0 %1800
        %1803 = vset.pattern.permute.xlu0 1
        %1804 = vperm.xlu0 %1803, %v1783
        %v1805 = vpop.permute.xlu0 %1804
        %v1807 = vmul.f32 %v752, %v1801
        %v1808 = vmul.f32 %v753, %v1805
        %v1809 = vadd.f32 %v1797, %v1807
        %v1810 = vadd.f32 %v1798, %v1808
        %1811 = vset.pattern.permute.xlu0 2
        %1812 = vperm.xlu0 %1811, %v1780
        %v1813 = vpop.permute.xlu0 %1812
        %1815 = vset.pattern.permute.xlu0 2
        %1816 = vperm.xlu0 %1815, %v1783
        %v1817 = vpop.permute.xlu0 %1816
        %v1819 = vmul.f32 %v770, %v1813
        %v1820 = vmul.f32 %v771, %v1817
        %v1821 = vadd.f32 %v1809, %v1819
        %v1822 = vadd.f32 %v1810, %v1820
        %1823 = vset.pattern.permute.xlu0 3
        %1824 = vperm.xlu0 %1823, %v1780
        %v1825 = vpop.permute.xlu0 %1824
        %1827 = vset.pattern.permute.xlu0 3
        %1828 = vperm.xlu0 %1827, %v1783
        %v1829 = vpop.permute.xlu0 %1828
        %v1831 = vmul.f32 %v788, %v1825
        %v1832 = vmul.f32 %v789, %v1829
        %v1833 = vadd.f32 %v1821, %v1831
        %v1834 = vadd.f32 %v1822, %v1832
        %1835 = vset.pattern.permute.xlu0 4
        %1836 = vperm.xlu0 %1835, %v1780
        %v1837 = vpop.permute.xlu0 %1836
        %1839 = vset.pattern.permute.xlu0 4
        %1840 = vperm.xlu0 %1839, %v1783
        %v1841 = vpop.permute.xlu0 %1840
        %v1843 = vmul.f32 %v806, %v1837
        %v1844 = vmul.f32 %v807, %v1841
        %v1845 = vadd.f32 %v1833, %v1843
        %v1846 = vadd.f32 %v1834, %v1844
        %1847 = vset.pattern.permute.xlu0 5
        %1848 = vperm.xlu0 %1847, %v1780
        %v1849 = vpop.permute.xlu0 %1848
        %1851 = vset.pattern.permute.xlu0 5
        %1852 = vperm.xlu0 %1851, %v1783
        %v1853 = vpop.permute.xlu0 %1852
        %v1855 = vmul.f32 %v824, %v1849
        %v1856 = vmul.f32 %v825, %v1853
        %v1857 = vadd.f32 %v1845, %v1855
        %v1858 = vadd.f32 %v1846, %v1856
        %1859 = vset.pattern.permute.xlu0 6
        %1860 = vperm.xlu0 %1859, %v1780
        %v1861 = vpop.permute.xlu0 %1860
        %1863 = vset.pattern.permute.xlu0 6
        %1864 = vperm.xlu0 %1863, %v1783
        %v1865 = vpop.permute.xlu0 %1864
        %v1867 = vmul.f32 %v842, %v1861
        %v1868 = vmul.f32 %v843, %v1865
        %v1869 = vadd.f32 %v1857, %v1867
        %v1870 = vadd.f32 %v1858, %v1868
        %1871 = vset.pattern.permute.xlu0 7
        %1872 = vperm.xlu0 %1871, %v1780
        %v1873 = vpop.permute.xlu0 %1872
        %1875 = vset.pattern.permute.xlu0 7
        %1876 = vperm.xlu0 %1875, %v1783
        %v1877 = vpop.permute.xlu0 %1876
        %v1879 = vmul.f32 %v860, %v1873
        %v1880 = vmul.f32 %v861, %v1877
        %v1881 = vadd.f32 %v1869, %v1879
        %v1882 = vadd.f32 %v1870, %v1880
        %vm1883 = vcmp.ne.f32.partialorder %v1757, 0.0
        %vm1884 = vcmp.ne.f32.partialorder %v1760, 0.0
        %vm1885 = vmand %vm624, %vm1883
        %vm1886 = vmand %vm625, %vm1884
        %v1887 = vadd.f32 %v1757, %v1881
        %v1888 = vadd.f32 %v1760, %v1882
        %v1889 = vsel %vm1885, %v1887, -1e+09
        %v1890 = vsel %vm1886, %v1888, -1e+09
        %v1891 = vsel %vm882, %v1889, -inf
        %1892 = vmax.xlane.f32.xlu0 %v1891
        %v1893 = vpop.xlane.xlu0 %1892
        %v1894 = vsel %vm882, %v1890, -inf
        %1895 = vmax.xlane.f32.xlu0 %v1894
        %v1896 = vpop.xlane.xlu0 %1895
        %v1897 = vsub.f32 %v1889, %v1893
        %v1898 = vsub.f32 %v1890, %v1896
        %v1899 = vmul.f32 %v1897, 1.442695
        %v1900 = vpow.pop %v1899
        %v1901 = vmul.f32 %v1898, 1.442695
        %v1902 = vpow.pop %v1901
        %v1903 = vsel %vm882, %v1900, 0.0
        %1904 = vadd.xlane.f32.xlu0 %v1903
        %v1905 = vpop.xlane.xlu0 %1904
        %v1906 = vsel %vm882, %v1902, 0.0
        %1907 = vadd.xlane.f32.xlu0 %v1906
        %v1908 = vpop.xlane.xlu0 %1907
        %v1909 = vrcp.pop %v1905
        %v1910 = vrcp.pop %v1908
        %v1911 = vmul.f32 %v1900, %v1909
        %v1912 = vmul.f32 %v1902, %v1910
        %1913 = vrot.lane.b32.xlu0 %v1720, 64
        %v1914 = vpop.permute.xlu0 %1913
        %1915 = vrot.lane.b32.xlu0 %v1723, 64
        %v1916 = vpop.permute.xlu0 %1915
        %v1920 = vsel %vm882, %v1911, 0
        %v1923 = vsel %vm882, %v1912, 0
        %1925 = vmatpush.msra.mxu0 0.0
        %1926 = vmatpush.msra.mxu0 0.0
        %1927 = vmatpush.msra.mxu0 0.0
        %1928 = vmatpush.msra.mxu0 0.0
        %1929 = vmatpush.msra.mxu0 0.0
        %1930 = vmatpush.msra.mxu0 0.0
        %1931 = vmatpush.msra.mxu0 0.0
        %1932 = vmatpush.msra.mxu0 0.0
        %1933 = vmatpush.msra.mxu0 0.0
        %1934 = vmatpush.msra.mxu0 0.0
        %1935 = vmatpush.msra.mxu0 0.0
        %1936 = vmatpush.msra.mxu0 0.0
        %1937 = vmatpush.msra.mxu0 0.0
        %1938 = vmatpush.msra.mxu0 0.0
        %1939 = vmatpush.msra.mxu0 %v1916
        %1940 = vmatpush.msra.mxu0 %v1914
        %1941 = vmatmul.f32.gmra.mxu0 %v1920
        %v1942 = vpop.f32.mrf.mxu0
        %v1943 = vadd.f32 0.0, %v1942
        %1944 = vmatmul.f32.gmra.mxu0 %v1923
        %v1945 = vpop.f32.mrf.mxu0
        %v1946 = vadd.f32 0.0, %v1945
        %1947 = vdwg.mxu0
        %s1948 = scalar_lea.vmem %s5, 64
        %v1949 = vld [vmem:[%s1948] sm:$0xff]
        %v1950 = vld [vmem:[%s1948 + $0x8] sm:$0xff]
        %v1951 = vld [vmem:[%s1948 + $0x10] sm:$0xff]
        %v1952 = vld [vmem:[%s1948 + $0x18] sm:$0xff]
        %s1953 = scalar_lea.vmem [#allocation2], 2
        %v1954 = vld [vmem:[%s1953] sm:$0x1]
        %v1956 = vperm.slane %v1954, 0
        %v1959 = vsel %vm635, %v1943, 0
        %v1962 = vsel %vm635, %v1946, 0
        %1964 = vmatpush.msra.mxu0 0.0
        %1965 = vmatpush.msra.mxu0 0.0
        %1966 = vmatpush.msra.mxu0 0.0
        %1967 = vmatpush.msra.mxu0 0.0
        %1968 = vmatpush.msra.mxu0 0.0
        %1969 = vmatpush.msra.mxu0 0.0
        %1970 = vmatpush.msra.mxu0 0.0
        %1971 = vmatpush.msra.mxu0 0.0
        %1972 = vmatpush.msra.mxu0 0.0
        %1973 = vmatpush.msra.mxu0 0.0
        %1974 = vmatpush.msra.mxu0 0.0
        %1975 = vmatpush.msra.mxu0 0.0
        %1976 = vmatpush.msra.mxu0 %v1952
        %1977 = vmatpush.msra.mxu0 %v1951
        %1978 = vmatpush.msra.mxu0 %v1950
        %1979 = vmatpush.msra.mxu0 %v1949
        %1980 = vmatmul.f32.gmra.mxu0 %v1959
        %v1981 = vpop.f32.mrf.mxu0
        %v1982 = vadd.f32 %v1956, %v1981
        %1983 = vmatmul.f32.gmra.mxu0 %v1962
        %v1984 = vpop.f32.mrf.mxu0
        %v1985 = vadd.f32 %v1956, %v1984
        %1986 = vdwg.mxu0
        %v1987 = vadd.f32 %v1684, %v1982
        %v1988 = vadd.f32 %v1685, %v1985
        %v1989 = vsel %vm635, %v1987, 0.0
        %1990 = vadd.xlane.f32.xlu0 %v1989
        %v1991 = vpop.xlane.xlu0 %1990
        %v1992 = vsel %vm635, %v1988, 0.0
        %1993 = vadd.xlane.f32.xlu0 %v1992
        %v1994 = vpop.xlane.xlu0 %1993
        %v1995 = vmul.f32 %v1991, %v991
        %v1996 = vmul.f32 %v1994, %v991
        %v1997 = vsub.f32 %v1987, %v1995
        %v1998 = vsub.f32 %v1988, %v1996
        %v1999 = vmul.f32 %v1997, %v1997
        %v2000 = vmul.f32 %v1998, %v1998
        %v2001 = vsel %vm635, %v1999, 0.0
        %2002 = vadd.xlane.f32.xlu0 %v2001
        %v2003 = vpop.xlane.xlu0 %2002
        %v2004 = vsel %vm635, %v2000, 0.0
        %2005 = vadd.xlane.f32.xlu0 %v2004
        %v2006 = vpop.xlane.xlu0 %2005
        %v2007 = vmul.f32 %v2003, %v991
        %v2008 = vmul.f32 %v2006, %v991
        %v2009 = vadd.f32 %v2007, 1e-05
        %v2010 = vadd.f32 %v2008, 1e-05
        %v2011 = vrsqrt.pop %v2009
        %v2012 = vmul.f32 %v2011, %v2009
        %v2013 = vmul.f32 %v2012, %v2011
        %v2014 = vmul.f32 0.5, %v2013
        %v2015 = vsub.f32 1.5, %v2014
        %v2016 = vmul.f32 %v2011, %v2015
        %vm2017 = vweird.f32 %v2009
        %vm2018 = vweird.f32 %v2011
        %vm2019 = vmor %vm2017, %vm2018
        %v2020 = vsel %vm2019, %v2011, %v2016
        %v2021 = vrsqrt.pop %v2010
        %v2022 = vmul.f32 %v2021, %v2010
        %v2023 = vmul.f32 %v2022, %v2021
        %v2024 = vmul.f32 0.5, %v2023
        %v2025 = vsub.f32 1.5, %v2024
        %v2026 = vmul.f32 %v2021, %v2025
        %vm2027 = vweird.f32 %v2010
        %vm2028 = vweird.f32 %v2021
        %vm2029 = vmor %vm2027, %vm2028
        %v2030 = vsel %vm2029, %v2021, %v2026
        %v2031 = vmul.f32 %v1997, %v2020
        %v2032 = vmul.f32 %v1998, %v2030
        %s2033 = scalar_lea.vmem [#allocation5], 2
        %v2034 = vld [vmem:[%s2033] sm:$0x1]
        %v2036 = vperm.slane %v2034, 0
        %v2038 = vmul.f32 %v2031, %v2036
        %v2039 = vmul.f32 %v2032, %v2036
        %s2040 = scalar_lea.vmem %s8, 2
        %v2041 = vld [vmem:[%s2040] sm:$0x1]
        %v2043 = vperm.slane %v2041, 0
        %v2045 = vadd.f32 %v2038, %v2043
        %v2046 = vadd.f32 %v2039, %v2043
        %s2047 = scalar_lea.vmem %s9, 64
        %v2048 = vld [vmem:[%s2047] sm:$0xff]
        %v2049 = vld [vmem:[%s2047 + $0x8] sm:$0xff]
        %v2050 = vld [vmem:[%s2047 + $0x10] sm:$0xff]
        %v2051 = vld [vmem:[%s2047 + $0x18] sm:$0xff]
        %s2052 = scalar_lea.vmem %s10, 2
        %v2053 = vld [vmem:[%s2052] sm:$0x1]
        %v2055 = vperm.slane %v2053, 0
        %v2058 = vsel %vm635, %v2045, 0
        %v2061 = vsel %vm635, %v2046, 0
        %2063 = vmatpush.msra.mxu0 0.0
        %2064 = vmatpush.msra.mxu0 0.0
        %2065 = vmatpush.msra.mxu0 0.0
        %2066 = vmatpush.msra.mxu0 0.0
        %2067 = vmatpush.msra.mxu0 0.0
        %2068 = vmatpush.msra.mxu0 0.0
        %2069 = vmatpush.msra.mxu0 0.0
        %2070 = vmatpush.msra.mxu0 0.0
        %2071 = vmatpush.msra.mxu0 0.0
        %2072 = vmatpush.msra.mxu0 0.0
        %2073 = vmatpush.msra.mxu0 0.0
        %2074 = vmatpush.msra.mxu0 0.0
        %2075 = vmatpush.msra.mxu0 %v2051
        %2076 = vmatpush.msra.mxu0 %v2050
        %2077 = vmatpush.msra.mxu0 %v2049
        %2078 = vmatpush.msra.mxu0 %v2048
        %2079 = vmatmul.f32.gmra.mxu0 %v2058
        %v2080 = vpop.f32.mrf.mxu0
        %v2081 = vadd.f32 %v2055, %v2080
        %2082 = vmatmul.f32.gmra.mxu0 %v2061
        %v2083 = vpop.f32.mrf.mxu0
        %v2084 = vadd.f32 %v2055, %v2083
        %2085 = vdwg.mxu0
        %v2086 = vmax.f32 %v2081, 0.0
        %v2087 = vmax.f32 %v2084, 0.0
        %s2088 = scalar_lea.vmem %s11, 128
        %v2089 = vld [vmem:[%s2088] sm:$0xff]
        %v2090 = vld [vmem:[%s2088 + $0x8] sm:$0xff]
        %v2091 = vld [vmem:[%s2088 + $0x10] sm:$0xff]
        %v2092 = vld [vmem:[%s2088 + $0x18] sm:$0xff]
        %v2093 = vld [vmem:[%s2088 + $0x20] sm:$0xff]
        %v2094 = vld [vmem:[%s2088 + $0x28] sm:$0xff]
        %v2095 = vld [vmem:[%s2088 + $0x30] sm:$0xff]
        %v2096 = vld [vmem:[%s2088 + $0x38] sm:$0xff]
        %s2097 = scalar_lea.vmem %s12, 2
        %v2098 = vld [vmem:[%s2097] sm:$0x1]
        %v2100 = vperm.slane %v2098, 0
        %v2103 = vsel %vm1093, %v2086, 0
        %v2106 = vsel %vm1093, %v2087, 0
        %2108 = vmatpush.msra.mxu0 0.0
        %2109 = vmatpush.msra.mxu0 0.0
        %2110 = vmatpush.msra.mxu0 0.0
        %2111 = vmatpush.msra.mxu0 0.0
        %2112 = vmatpush.msra.mxu0 0.0
        %2113 = vmatpush.msra.mxu0 0.0
        %2114 = vmatpush.msra.mxu0 0.0
        %2115 = vmatpush.msra.mxu0 0.0
        %2116 = vmatpush.msra.mxu0 %v2096
        %2117 = vmatpush.msra.mxu0 %v2095
        %2118 = vmatpush.msra.mxu0 %v2094
        %2119 = vmatpush.msra.mxu0 %v2093
        %2120 = vmatpush.msra.mxu0 %v2092
        %2121 = vmatpush.msra.mxu0 %v2091
        %2122 = vmatpush.msra.mxu0 %v2090
        %2123 = vmatpush.msra.mxu0 %v2089
        %2124 = vmatmul.f32.gmra.mxu0 %v2103
        %v2125 = vpop.f32.mrf.mxu0
        %v2126 = vadd.f32 %v2100, %v2125
        %2127 = vmatmul.f32.gmra.mxu0 %v2106
        %v2128 = vpop.f32.mrf.mxu0
        %v2129 = vadd.f32 %v2100, %v2128
        %2130 = vdwg.mxu0
        %v2131 = vadd.f32 %v2045, %v2126
        %v2132 = vadd.f32 %v2046, %v2129
        %v2133 = vsel %vm635, %v2131, 0.0
        %2134 = vadd.xlane.f32.xlu0 %v2133
        %v2135 = vpop.xlane.xlu0 %2134
        %v2136 = vsel %vm635, %v2132, 0.0
        %2137 = vadd.xlane.f32.xlu0 %v2136
        %v2138 = vpop.xlane.xlu0 %2137
        %v2139 = vmul.f32 %v2135, %v991
        %v2140 = vmul.f32 %v2138, %v991
        %v2141 = vsub.f32 %v2131, %v2139
        %v2142 = vsub.f32 %v2132, %v2140
        %v2143 = vmul.f32 %v2141, %v2141
        %v2144 = vmul.f32 %v2142, %v2142
        %v2145 = vsel %vm635, %v2143, 0.0
        %2146 = vadd.xlane.f32.xlu0 %v2145
        %v2147 = vpop.xlane.xlu0 %2146
        %v2148 = vsel %vm635, %v2144, 0.0
        %2149 = vadd.xlane.f32.xlu0 %v2148
        %v2150 = vpop.xlane.xlu0 %2149
        %v2151 = vmul.f32 %v2147, %v991
        %v2152 = vmul.f32 %v2150, %v991
        %v2153 = vadd.f32 %v2151, 1e-05
        %v2154 = vadd.f32 %v2152, 1e-05
        %v2155 = vrsqrt.pop %v2153
        %v2156 = vmul.f32 %v2155, %v2153
        %v2157 = vmul.f32 %v2156, %v2155
        %v2158 = vmul.f32 0.5, %v2157
        %v2159 = vsub.f32 1.5, %v2158
        %v2160 = vmul.f32 %v2155, %v2159
        %vm2161 = vweird.f32 %v2153
        %vm2162 = vweird.f32 %v2155
        %vm2163 = vmor %vm2161, %vm2162
        %v2164 = vsel %vm2163, %v2155, %v2160
        %v2165 = vrsqrt.pop %v2154
        %v2166 = vmul.f32 %v2165, %v2154
        %v2167 = vmul.f32 %v2166, %v2165
        %v2168 = vmul.f32 0.5, %v2167
        %v2169 = vsub.f32 1.5, %v2168
        %v2170 = vmul.f32 %v2165, %v2169
        %vm2171 = vweird.f32 %v2154
        %vm2172 = vweird.f32 %v2165
        %vm2173 = vmor %vm2171, %vm2172
        %v2174 = vsel %vm2173, %v2165, %v2170
        %v2175 = vmul.f32 %v2141, %v2164
        %v2176 = vmul.f32 %v2142, %v2174
        %s2177 = scalar_lea.vmem [#allocation7], 2
        %v2178 = vld [vmem:[%s2177] sm:$0x1]
        %v2180 = vperm.slane %v2178, 0
        %v2182 = vmul.f32 %v2175, %v2180
        %v2183 = vmul.f32 %v2176, %v2180
        %s2184 = scalar_lea.vmem [#allocation8], 2
        %v2185 = vld [vmem:[%s2184] sm:$0x1]
        %v2187 = vperm.slane %v2185, 0
        %v2189 = vadd.f32 %v2182, %v2187
        %v2190 = vadd.f32 %v2183, %v2187
        %2191 = vst.msk [vmem:[%s554] sm:$0xff] %vm635, %v2189
        %2192 = vst.msk [vmem:[%s554 + $0x8] sm:$0xff] %vm635, %v2190
        %s2193 = sand.u32 %s360, 1
        %s2194 = scalar_lea.sflag [#allocation4], %s2193
        %s2195 = sand.u32 %s360, 1
        %s2196 = smul.addr %s2195, 16
        %s2197 = scalar_lea.vmem [#allocation10], %s2196
        // Predicated region
        $region97: #{tpu_custom_call.1} parent=79 // pred_check
          %p2198 = pneg %p370
        $region98: #{tpu_custom_call.1} parent=79 // pred_check_branch
          %2200 = sbr.rel (%p2198) target = $region100
        $region99: #{tpu_custom_call.1} parent=79 // pred_region
          %2202 = vsyncadd %s2194, 0
          %s2203 = smul.addr %s32, 2
          %s2204 = smul.addr %s2203, 8
          %s2205 = scalar_lea.hbm %s15, %s2204
          %s2206 = sshll.u32 %s2197, 4
          %s2207 = int_to_ptr.vmem [resolvable:$true] %s2206
          %s2208 = sshll.u32 %s2205, 4
          %s2209 = int_to_ptr.hbm [resolvable:$true] %s2208
          %2214 = dma.vmem_to_hbm [thread:$0]  %s2207, 256, %s2209, %s2194, 128, 128, 8
        $region100: #{tpu_custom_call.1} parent=79 // pred_fallthru
          _
      $region80: #{tpu_custom_call.1} parent=5 // pred_fallthru
        _
      %p2215 = scmp.le.s32.totalorder 2, %s27
      // Predicated region
      $region101: #{tpu_custom_call.1} parent=5 // pred_check
        %p2216 = pneg %p2215
      $region102: #{tpu_custom_call.1} parent=5 // pred_check_branch
        %2218 = sbr.rel (%p2216) target = $region104
      $region103: #{tpu_custom_call.1} parent=5 // pred_region
        %s2219 = ssub.s32 %s27, 2
        // Predicated region
        $region105: #{tpu_custom_call.1} parent=103 // pred_check
          %p2220 = pneg %p376
        $region106: #{tpu_custom_call.1} parent=103 // pred_check_branch
          %2222 = sbr.rel (%p2220) target = $region108
        $region107: #{tpu_custom_call.1} parent=103 // pred_region
          %s2223 = sand.u32 %s361, 1
          %s2224 = scalar_lea.sflag [#allocation4], %s2223
          %s2225 = sand.u32 %s361, 1
          %s2226 = smul.addr %s2225, 16
          %s2227 = scalar_lea.vmem [#allocation10], %s2226
          %2229 = dma.done %s2224, 256
        $region108: #{tpu_custom_call.1} parent=103 // pred_fallthru
          _
      $region104: #{tpu_custom_call.1} parent=5 // pred_fallthru
        _
    $region6: #{tpu_custom_call.1} parent=1 // loop_footer
      %s31 = sadd.s32 1, %s27
    $region7: #{tpu_custom_call.1} parent=1 // loop_footer_branch
      %26 = sbr.rel target = $region3
    $region8: #{tpu_custom_call.1} parent=1 // loop_exit
      _
    %2230 = vsyncpa [#allocation3], 1
    %s2231 = scalar_lea.sflag [#allocation3], 1
    %2232 = vsyncpa %s2231, 1
    %2233 = vsyncpa [#allocation6], 1
    %2234 = vsyncpa [#allocation9], 1
    %2235 = vsyncpa [#allocation4], 1
    %s2236 = scalar_lea.sflag [#allocation4], 1
    %2237 = vsyncpa %s2236, 1

</llo_original>
